<compile_context>
chip_gen: v7x
topology: tpu7x:2x2x1
jax: 0.10.0
libtpu: 0.0.40
codegen_flags: <defaults>
</compile_context>

<pallas_src>
import jax
import jax.numpy as jnp
import numpy as np
from jax.experimental import pallas as pl
from jax.experimental.pallas import tpu as pltpu


# ----------------------------------------------------------------------------
# Fused Pallas kernel
# ----------------------------------------------------------------------------
def _make_fused_kernel(num_convs, n_rois, H, W):
    HW = H * W
    R = n_rois * HW          # lanes: roi * HW + h * W + w
    PAD = W + 1              # max |tap shift| = W + 1

    def kernel(*refs):
        x_ref, m_ref = refs[0], refs[1]
        conv_refs = refs[2:2 + 2 * num_convs]
        (wfc_ref, bfc_ref, wemb_ref, bemb_ref, wd_ref, bd_ref,
         o_ref, xp_ref, sc_ref) = refs[2 + 2 * num_convs:]

        xp_ref[...] = jnp.zeros_like(xp_ref)          # zero halo once per block
        masks = m_ref[...]                            # (9, R) 0/1 validity
        act = x_ref[...]                              # (C_in, R)

        # ---- conv tower: 3x3 + bias + ReLU, all ROIs at once ---------------
        for l in range(num_convs):
            w_ref = conv_refs[2 * l]                  # (C_out, 9*C_in)
            b_ref = conv_refs[2 * l + 1]              # (C_out, 1)
            c_out = w_ref.shape[0]
            c_in = w_ref.shape[1] // 9
            xp_ref[0:c_in, PAD:PAD + R] = act         # stage inside zero halo
            acc = jnp.zeros((c_out, R), jnp.float32)
            for t in range(9):
                ky, kx = t // 3 - 1, t % 3 - 1
                s = ky * W + kx
                tap = xp_ref[0:c_in, PAD + s:PAD + s + R] * masks[t:t + 1, :]
                acc = acc + jnp.dot(w_ref[:, t * c_in:(t + 1) * c_in], tap,
                                    preferred_element_type=jnp.float32)
            act = jnp.maximum(acc + b_ref[...], 0.0)

        # ---- flatten (torch NCHW order, folded into fc weight rows) --------
        c_conv = act.shape[0]
        for c in range(c_conv):                       # regroup lanes -> (c, roi, hw)
            for n in range(n_rois):
                sc_ref[c, n:n + 1, :] = act[c:c + 1, n * HW:(n + 1) * HW]
        d_fc = wfc_ref.shape[1]
        acc_fc = jnp.zeros((n_rois, d_fc), jnp.float32)
        for c in range(c_conv):                       # sum_c (N,HW) @ (HW,Dfc)
            acc_fc = acc_fc + jnp.dot(sc_ref[c], wfc_ref[c * HW:(c + 1) * HW, :],
                                      preferred_element_type=jnp.float32)
        h = jnp.maximum(acc_fc + bfc_ref[...], 0.0)

        # ---- lane-dense epilogue: emb & depth in one 128-wide slab ---------
        emb_pad = jnp.dot(h, wemb_ref[...],
                          preferred_element_type=jnp.float32) + bemb_ref[...]
        depth_pad = jnp.dot(emb_pad, wd_ref[...],
                            preferred_element_type=jnp.float32) + bd_ref[...]
        o_ref[...] = emb_pad + depth_pad              # single unmasked store

    return kernel


# ----------------------------------------------------------------------------
# Wrapper
# ----------------------------------------------------------------------------
def multipos3d_track_head_forward(x_nchw, params, roi_block=None):
    """Pallas equivalent of MultiPos3DTrackHead.forward.

    x_nchw: (N, in_channels, S, S) roi features (PyTorch NCHW layout).
    Returns (embed, depth): ((N, embed_channels), (N, 1)).
    """
    N, c_in0, H, W = x_nchw.shape
    HW = H * W
    convs = params["convs"]
    num_convs = len(convs)
    c_conv = convs[-1][0].shape[0] if num_convs else c_in0
    w_fc, b_fc = params["fc"]            # (Dfc, c_conv*HW), (Dfc,)
    w_emb, b_emb = params["fc_embed"]    # (Demb, Dfc), (Demb,)
    w_d, b_d = params["depth_embed"]     # (1, Demb), (1,)
    d_fc = w_fc.shape[0]
    d_emb = w_emb.shape[0]
    out_w = 128 * ((d_emb + 1 + 127) // 128)

    # ---- ROI blocking (single block at small N; blocks stay 8-aligned) -----
    if roi_block is None or roi_block >= N:
        nb, n_blocks = N, 1
    else:
        nb = ((roi_block + 7) // 8) * 8
        n_blocks = -(-N // nb)
    n_pad = nb * n_blocks

    # ---- input: NCHW -> (block, C, nb*HW), lane index = roi*HW + h*W + w ---
    xt = jnp.transpose(x_nchw, (1, 0, 2, 3)).reshape(c_in0, N, HW)
    if n_pad != N:
        xt = jnp.pad(xt, ((0, 0), (0, n_pad - N), (0, 0)))
    x3 = jnp.transpose(xt.reshape(c_in0, n_blocks, nb * HW), (1, 0, 2))

    # ---- constant 3x3 boundary masks (per tap, per lane) -------------------
    hw_idx = np.arange(nb * HW) % HW
    h_idx, w_idx = hw_idx // W, hw_idx % W
    mask_np = np.zeros((9, nb * HW), np.float32)
    for t in range(9):
        ky, kx = t // 3 - 1, t % 3 - 1
        ok = ((h_idx + ky >= 0) & (h_idx + ky < H) &
              (w_idx + kx >= 0) & (w_idx + kx < W))
        mask_np[t] = ok.astype(np.float32)
    mask = jnp.asarray(mask_np)

    # ---- weight pre-packing (2D, lane-friendly) -----------------------------
    conv_args = []
    for (w_oihw, b) in convs:
        co, ci = w_oihw.shape[0], w_oihw.shape[1]
        conv_args.append(jnp.transpose(w_oihw, (0, 2, 3, 1)).reshape(co, 9 * ci))
        conv_args.append(b.reshape(co, 1))
    wfc_t = jnp.transpose(w_fc)                      # (c_conv*HW, Dfc), NCHW row order
    bfc2 = b_fc.reshape(1, d_fc)
    wemb_pad = jnp.zeros((d_fc, out_w), jnp.float32).at[:, :d_emb].set(jnp.transpose(w_emb))
    bemb_pad = jnp.zeros((1, out_w), jnp.float32).at[:, :d_emb].set(b_emb.reshape(1, d_emb))
    wd_pad = jnp.zeros((out_w, out_w), jnp.float32).at[:d_emb, d_emb:d_emb + 1].set(jnp.transpose(w_d))
    bd_pad = jnp.zeros((1, out_w), jnp.float32).at[:, d_emb:d_emb + 1].set(b_d.reshape(1, 1))

    c_max = max([c_in0] + [w.shape[0] for (w, _) in convs])
    kernel = _make_fused_kernel(num_convs, nb, H, W)

    def _full(a):
        nd = a.ndim
        return pl.BlockSpec(a.shape, lambda i, _nd=nd: (0,) * _nd)

    in_specs = ([pl.BlockSpec((None, c_in0, nb * HW), lambda i: (i, 0, 0)),
                 _full(mask)]
                + [_full(a) for a in conv_args]
                + [_full(wfc_t), _full(bfc2), _full(wemb_pad), _full(bemb_pad),
                   _full(wd_pad), _full(bd_pad)])

    out = pl.pallas_call(
        kernel,
        out_shape=jax.ShapeDtypeStruct((n_pad, out_w), jnp.float32),
        grid=(n_blocks,),
        in_specs=in_specs,
        out_specs=pl.BlockSpec((nb, out_w), lambda i: (i, 0)),
        scratch_shapes=[pltpu.VMEM((c_max, nb * HW + 2 * (W + 1)), jnp.float32),
                        pltpu.VMEM((c_conv, nb, HW), jnp.float32)],
        compiler_params=pltpu.CompilerParams(dimension_semantics=("parallel",)),
    )(x3, mask, *conv_args, wfc_t, bfc2, wemb_pad, bemb_pad, wd_pad, bd_pad)

    emb = out[:N, :d_emb]
    depth = out[:N, d_emb:d_emb + 1]
    return emb, depth


# ----------------------------------------------------------------------------
# Pure-JAX reference (sanity check)
# ----------------------------------------------------------------------------
def reference_forward(x_nchw, params):
    hp = jax.lax.Precision.HIGHEST
    x = x_nchw
    for (w, b) in params["convs"]:
        x = jax.lax.conv_general_dilated(
            x, w, window_strides=(1, 1), padding="SAME",
            dimension_numbers=("NCHW", "OIHW", "NCHW"), precision=hp)
        x = jnp.maximum(x + b[None, :, None, None], 0.0)
    x = x.reshape(x.shape[0], -1)
    w_fc, b_fc = params["fc"]
    x = jnp.maximum(jnp.dot(x, w_fc.T, precision=hp) + b_fc, 0.0)
    w_e, b_e = params["fc_embed"]
    emb = jnp.dot(x, w_e.T, precision=hp) + b_e
    w_d, b_d = params["depth_embed"]
    depth = jnp.dot(emb, w_d.T, precision=hp) + b_d
    return emb, depth


# ----------------------------------------------------------------------------
# Deterministic parameter construction (synthetic; mirrors module __init__)
# ----------------------------------------------------------------------------
def make_params(key, num_convs, in_channels, conv_out, roi_feat_size, fc_out, embed):
    keys = jax.random.split(key, 2 * num_convs + 6)
    params = {"convs": []}
    kidx = 0
    cin = in_channels
    for _ in range(num_convs):
        w = 0.05 * jax.random.normal(keys[kidx], (conv_out, cin, 3, 3), jnp.float32)
        b = 0.01 * jax.random.normal(keys[kidx + 1], (conv_out,), jnp.float32)
        params["convs"].append((w, b))
        kidx += 2
        cin = conv_out
    flat = conv_out * roi_feat_size * roi_feat_size
    params["fc"] = (
        0.02 * jax.random.normal(keys[kidx], (fc_out, flat), jnp.float32),
        jnp.zeros((fc_out,), jnp.float32))
    params["fc_embed"] = (
        0.05 * jax.random.normal(keys[kidx + 1], (embed, fc_out), jnp.float32),
        jnp.zeros((embed,), jnp.float32))
    params["depth_embed"] = (
        0.05 * jax.random.normal(keys[kidx + 2], (1, embed), jnp.float32),
        jnp.zeros((1,), jnp.float32))
    return params


if __name__ == "__main__":
    # small config consistent with the module's forward
    num_convs = 4
    roi_feat_size = 7
    in_channels = 8
    conv_out_channels = 8
    fc_out_channels = 64
    embed_channels = 32
    N = 4                                # number of rois

    key = jax.random.PRNGKey(0)
    kx, kp = jax.random.split(key)
    x = jax.random.normal(kx, (N, in_channels, roi_feat_size, roi_feat_size),
                          jnp.float32)
    params = make_params(kp, num_convs, in_channels, conv_out_channels,
                         roi_feat_size, fc_out_channels, embed_channels)

    fwd = jax.jit(multipos3d_track_head_forward)
    emb, depth = jax.block_until_ready(fwd(x, params))

    assert emb.shape == (N, embed_channels) and depth.shape == (N, 1)
    assert bool(jnp.all(jnp.isfinite(emb))) and bool(jnp.all(jnp.isfinite(depth)))

    ref_emb, ref_depth = reference_forward(x, params)
    np.testing.assert_allclose(np.asarray(emb), np.asarray(ref_emb),
                               rtol=1e-4, atol=1e-5)
    np.testing.assert_allclose(np.asarray(depth), np.asarray(ref_depth),
                               rtol=1e-4, atol=1e-5)

    print("KERNEL_OK")
</pallas_src>

<mosaic_0001>
module attributes {stable_mosaic.version = 11 : i64} {
  func.func @kernel(%arg0: i32, %arg1: memref<1x8x196xf32, #tpu.memory_space<vmem>>, %arg2: memref<9x196xf32, #tpu.memory_space<vmem>>, %arg3: memref<8x72xf32, #tpu.memory_space<vmem>>, %arg4: memref<8x1xf32, #tpu.memory_space<vmem>>, %arg5: memref<8x72xf32, #tpu.memory_space<vmem>>, %arg6: memref<8x1xf32, #tpu.memory_space<vmem>>, %arg7: memref<8x72xf32, #tpu.memory_space<vmem>>, %arg8: memref<8x1xf32, #tpu.memory_space<vmem>>, %arg9: memref<8x72xf32, #tpu.memory_space<vmem>>, %arg10: memref<8x1xf32, #tpu.memory_space<vmem>>, %arg11: memref<392x64xf32, #tpu.memory_space<vmem>>, %arg12: memref<1x64xf32, #tpu.memory_space<vmem>>, %arg13: memref<64x128xf32, #tpu.memory_space<vmem>>, %arg14: memref<1x128xf32, #tpu.memory_space<vmem>>, %arg15: memref<128x128xf32, #tpu.memory_space<vmem>>, %arg16: memref<1x128xf32, #tpu.memory_space<vmem>>, %arg17: memref<4x128xf32, #tpu.memory_space<vmem>>, %arg18: memref<8x212xf32, #tpu.memory_space<vmem>>, %arg19: memref<8x4x49xf32, #tpu.memory_space<vmem>>) attributes {dimension_semantics = [#tpu.dimension_semantics<parallel>], iteration_bounds = array<i64: 1>, scalar_prefetch = 0 : i64, scratch_operands = 2 : i64, tpu.core_type = #tpu.core_type<tc>, window_params = [{transform_indices = @transform_0, window_bounds = array<i64: 1, 8, 196>}, {pipeline_mode = #tpu.pipeline_mode<synchronous>, transform_indices = @transform_1, window_bounds = array<i64: 9, 196>}, {pipeline_mode = #tpu.pipeline_mode<synchronous>, transform_indices = @transform_2, window_bounds = array<i64: 8, 72>}, {pipeline_mode = #tpu.pipeline_mode<synchronous>, transform_indices = @transform_3, window_bounds = array<i64: 8, 1>}, {pipeline_mode = #tpu.pipeline_mode<synchronous>, transform_indices = @transform_4, window_bounds = array<i64: 8, 72>}, {pipeline_mode = #tpu.pipeline_mode<synchronous>, transform_indices = @transform_5, window_bounds = array<i64: 8, 1>}, {pipeline_mode = #tpu.pipeline_mode<synchronous>, transform_indices = @transform_6, window_bounds = array<i64: 8, 72>}, {pipeline_mode = #tpu.pipeline_mode<synchronous>, transform_indices = @transform_7, window_bounds = array<i64: 8, 1>}, {pipeline_mode = #tpu.pipeline_mode<synchronous>, transform_indices = @transform_8, window_bounds = array<i64: 8, 72>}, {pipeline_mode = #tpu.pipeline_mode<synchronous>, transform_indices = @transform_9, window_bounds = array<i64: 8, 1>}, {pipeline_mode = #tpu.pipeline_mode<synchronous>, transform_indices = @transform_10, window_bounds = array<i64: 392, 64>}, {pipeline_mode = #tpu.pipeline_mode<synchronous>, transform_indices = @transform_11, window_bounds = array<i64: 1, 64>}, {pipeline_mode = #tpu.pipeline_mode<synchronous>, transform_indices = @transform_12, window_bounds = array<i64: 64, 128>}, {pipeline_mode = #tpu.pipeline_mode<synchronous>, transform_indices = @transform_13, window_bounds = array<i64: 1, 128>}, {pipeline_mode = #tpu.pipeline_mode<synchronous>, transform_indices = @transform_14, window_bounds = array<i64: 128, 128>}, {pipeline_mode = #tpu.pipeline_mode<synchronous>, transform_indices = @transform_15, window_bounds = array<i64: 1, 128>}, {transform_indices = @transform_16, window_bounds = array<i64: 4, 128>}]} {
    %cst = arith.constant 0.000000e+00 : f32
    %0 = vector.broadcast %cst : f32 to vector<8x212xf32>
    %c0 = arith.constant 0 : index
    %c0_0 = arith.constant 0 : index
    %1 = vector.load %arg18[%c0, %c0_0] : memref<8x212xf32, #tpu.memory_space<vmem>>, vector<8x212xf32>
    tpu.vector_store %arg18[%c0, %c0_0], %0 {strides = array<i32>} : memref<8x212xf32, #tpu.memory_space<vmem>>, vector<8x212xf32>,
    %c0_1 = arith.constant 0 : index
    %c0_2 = arith.constant 0 : index
    %2 = vector.load %arg2[%c0_1, %c0_2] : memref<9x196xf32, #tpu.memory_space<vmem>>, vector<9x196xf32>
    %c0_3 = arith.constant 0 : index
    %c0_4 = arith.constant 0 : index
    %c0_5 = arith.constant 0 : index
    %3 = vector.load %arg1[%c0_3, %c0_4, %c0_5] : memref<1x8x196xf32, #tpu.memory_space<vmem>>, vector<1x8x196xf32>
    %4 = vector.shape_cast %3 : vector<1x8x196xf32> to vector<8x196xf32>
    %c0_6 = arith.constant 0 : index
    %c8 = arith.constant 8 : index
    %5 = vector.load %arg18[%c0_6, %c8] : memref<8x212xf32, #tpu.memory_space<vmem>>, vector<8x196xf32>
    tpu.vector_store %arg18[%c0_6, %c8], %4 {strides = array<i32>} : memref<8x212xf32, #tpu.memory_space<vmem>>, vector<8x196xf32>,
    %cst_7 = arith.constant 0.000000e+00 : f32
    %6 = vector.broadcast %cst_7 : f32 to vector<8x196xf32>
    %c0_8 = arith.constant 0 : index
    %c0_9 = arith.constant 0 : index
    %7 = vector.load %arg18[%c0_8, %c0_9] : memref<8x212xf32, #tpu.memory_space<vmem>>, vector<8x196xf32>
    %8 = vector.extract_strided_slice %2 {offsets = [0, 0], sizes = [1, 196], strides = [1, 1]} : vector<9x196xf32> to vector<1x196xf32>
    %9 = vector.broadcast %8 : vector<1x196xf32> to vector<8x196xf32>
    %10 = arith.mulf %7, %9 : vector<8x196xf32>
    %c0_10 = arith.constant 0 : index
    %c0_11 = arith.constant 0 : index
    %11 = vector.load %arg3[%c0_10, %c0_11] : memref<8x72xf32, #tpu.memory_space<vmem>>, vector<8x8xf32>
    %cst_12 = arith.constant dense<0.000000e+00> : vector<8x196xf32>
    %12 = tpu.matmul %11, %10, %cst_12 {dimension_numbers = #tpu.dot_dimension_numbers<[1], [0], [0], [1], [0, 0, 1, 1], [], []>} : vector<8x8xf32>, vector<8x196xf32>, vector<8x196xf32> -> vector<8x196xf32>
    %13 = arith.addf %6, %12 : vector<8x196xf32>
    %c0_13 = arith.constant 0 : index
    %c1 = arith.constant 1 : index
    %14 = vector.load %arg18[%c0_13, %c1] : memref<8x212xf32, #tpu.memory_space<vmem>>, vector<8x196xf32>
    %15 = vector.extract_strided_slice %2 {offsets = [1, 0], sizes = [1, 196], strides = [1, 1]} : vector<9x196xf32> to vector<1x196xf32>
    %16 = vector.broadcast %15 : vector<1x196xf32> to vector<8x196xf32>
    %17 = arith.mulf %14, %16 : vector<8x196xf32>
    %c0_14 = arith.constant 0 : index
    %c8_15 = arith.constant 8 : index
    %18 = vector.load %arg3[%c0_14, %c8_15] : memref<8x72xf32, #tpu.memory_space<vmem>>, vector<8x8xf32>
    %cst_16 = arith.constant dense<0.000000e+00> : vector<8x196xf32>
    %19 = tpu.matmul %18, %17, %cst_16 {dimension_numbers = #tpu.dot_dimension_numbers<[1], [0], [0], [1], [0, 0, 1, 1], [], []>} : vector<8x8xf32>, vector<8x196xf32>, vector<8x196xf32> -> vector<8x196xf32>
    %20 = arith.addf %13, %19 : vector<8x196xf32>
    %c0_17 = arith.constant 0 : index
    %c2 = arith.constant 2 : index
    %21 = vector.load %arg18[%c0_17, %c2] : memref<8x212xf32, #tpu.memory_space<vmem>>, vector<8x196xf32>
    %22 = vector.extract_strided_slice %2 {offsets = [2, 0], sizes = [1, 196], strides = [1, 1]} : vector<9x196xf32> to vector<1x196xf32>
    %23 = vector.broadcast %22 : vector<1x196xf32> to vector<8x196xf32>
    %24 = arith.mulf %21, %23 : vector<8x196xf32>
    %c0_18 = arith.constant 0 : index
    %c16 = arith.constant 16 : index
    %25 = vector.load %arg3[%c0_18, %c16] : memref<8x72xf32, #tpu.memory_space<vmem>>, vector<8x8xf32>
    %cst_19 = arith.constant dense<0.000000e+00> : vector<8x196xf32>
    %26 = tpu.matmul %25, %24, %cst_19 {dimension_numbers = #tpu.dot_dimension_numbers<[1], [0], [0], [1], [0, 0, 1, 1], [], []>} : vector<8x8xf32>, vector<8x196xf32>, vector<8x196xf32> -> vector<8x196xf32>
    %27 = arith.addf %20, %26 : vector<8x196xf32>
    %c0_20 = arith.constant 0 : index
    %c7 = arith.constant 7 : index
    %28 = vector.load %arg18[%c0_20, %c7] : memref<8x212xf32, #tpu.memory_space<vmem>>, vector<8x196xf32>
    %29 = vector.extract_strided_slice %2 {offsets = [3, 0], sizes = [1, 196], strides = [1, 1]} : vector<9x196xf32> to vector<1x196xf32>
    %30 = vector.broadcast %29 : vector<1x196xf32> to vector<8x196xf32>
    %31 = arith.mulf %28, %30 : vector<8x196xf32>
    %c0_21 = arith.constant 0 : index
    %c24 = arith.constant 24 : index
    %32 = vector.load %arg3[%c0_21, %c24] : memref<8x72xf32, #tpu.memory_space<vmem>>, vector<8x8xf32>
    %cst_22 = arith.constant dense<0.000000e+00> : vector<8x196xf32>
    %33 = tpu.matmul %32, %31, %cst_22 {dimension_numbers = #tpu.dot_dimension_numbers<[1], [0], [0], [1], [0, 0, 1, 1], [], []>} : vector<8x8xf32>, vector<8x196xf32>, vector<8x196xf32> -> vector<8x196xf32>
    %34 = arith.addf %27, %33 : vector<8x196xf32>
    %c0_23 = arith.constant 0 : index
    %c8_24 = arith.constant 8 : index
    %35 = vector.load %arg18[%c0_23, %c8_24] : memref<8x212xf32, #tpu.memory_space<vmem>>, vector<8x196xf32>
    %36 = vector.extract_strided_slice %2 {offsets = [4, 0], sizes = [1, 196], strides = [1, 1]} : vector<9x196xf32> to vector<1x196xf32>
    %37 = vector.broadcast %36 : vector<1x196xf32> to vector<8x196xf32>
    %38 = arith.mulf %35, %37 : vector<8x196xf32>
    %c0_25 = arith.constant 0 : index
    %c32 = arith.constant 32 : index
    %39 = vector.load %arg3[%c0_25, %c32] : memref<8x72xf32, #tpu.memory_space<vmem>>, vector<8x8xf32>
    %cst_26 = arith.constant dense<0.000000e+00> : vector<8x196xf32>
    %40 = tpu.matmul %39, %38, %cst_26 {dimension_numbers = #tpu.dot_dimension_numbers<[1], [0], [0], [1], [0, 0, 1, 1], [], []>} : vector<8x8xf32>, vector<8x196xf32>, vector<8x196xf32> -> vector<8x196xf32>
    %41 = arith.addf %34, %40 : vector<8x196xf32>
    %c0_27 = arith.constant 0 : index
    %c9 = arith.constant 9 : index
    %42 = vector.load %arg18[%c0_27, %c9] : memref<8x212xf32, #tpu.memory_space<vmem>>, vector<8x196xf32>
    %43 = vector.extract_strided_slice %2 {offsets = [5, 0], sizes = [1, 196], strides = [1, 1]} : vector<9x196xf32> to vector<1x196xf32>
    %44 = vector.broadcast %43 : vector<1x196xf32> to vector<8x196xf32>
    %45 = arith.mulf %42, %44 : vector<8x196xf32>
    %c0_28 = arith.constant 0 : index
    %c40 = arith.constant 40 : index
    %46 = vector.load %arg3[%c0_28, %c40] : memref<8x72xf32, #tpu.memory_space<vmem>>, vector<8x8xf32>
    %cst_29 = arith.constant dense<0.000000e+00> : vector<8x196xf32>
    %47 = tpu.matmul %46, %45, %cst_29 {dimension_numbers = #tpu.dot_dimension_numbers<[1], [0], [0], [1], [0, 0, 1, 1], [], []>} : vector<8x8xf32>, vector<8x196xf32>, vector<8x196xf32> -> vector<8x196xf32>
    %48 = arith.addf %41, %47 : vector<8x196xf32>
    %c0_30 = arith.constant 0 : index
    %c14 = arith.constant 14 : index
    %49 = vector.load %arg18[%c0_30, %c14] : memref<8x212xf32, #tpu.memory_space<vmem>>, vector<8x196xf32>
    %50 = vector.extract_strided_slice %2 {offsets = [6, 0], sizes = [1, 196], strides = [1, 1]} : vector<9x196xf32> to vector<1x196xf32>
    %51 = vector.broadcast %50 : vector<1x196xf32> to vector<8x196xf32>
    %52 = arith.mulf %49, %51 : vector<8x196xf32>
    %c0_31 = arith.constant 0 : index
    %c48 = arith.constant 48 : index
    %53 = vector.load %arg3[%c0_31, %c48] : memref<8x72xf32, #tpu.memory_space<vmem>>, vector<8x8xf32>
    %cst_32 = arith.constant dense<0.000000e+00> : vector<8x196xf32>
    %54 = tpu.matmul %53, %52, %cst_32 {dimension_numbers = #tpu.dot_dimension_numbers<[1], [0], [0], [1], [0, 0, 1, 1], [], []>} : vector<8x8xf32>, vector<8x196xf32>, vector<8x196xf32> -> vector<8x196xf32>
    %55 = arith.addf %48, %54 : vector<8x196xf32>
    %c0_33 = arith.constant 0 : index
    %c15 = arith.constant 15 : index
    %56 = vector.load %arg18[%c0_33, %c15] : memref<8x212xf32, #tpu.memory_space<vmem>>, vector<8x196xf32>
    %57 = vector.extract_strided_slice %2 {offsets = [7, 0], sizes = [1, 196], strides = [1, 1]} : vector<9x196xf32> to vector<1x196xf32>
    %58 = vector.broadcast %57 : vector<1x196xf32> to vector<8x196xf32>
    %59 = arith.mulf %56, %58 : vector<8x196xf32>
    %c0_34 = arith.constant 0 : index
    %c56 = arith.constant 56 : index
    %60 = vector.load %arg3[%c0_34, %c56] : memref<8x72xf32, #tpu.memory_space<vmem>>, vector<8x8xf32>
    %cst_35 = arith.constant dense<0.000000e+00> : vector<8x196xf32>
    %61 = tpu.matmul %60, %59, %cst_35 {dimension_numbers = #tpu.dot_dimension_numbers<[1], [0], [0], [1], [0, 0, 1, 1], [], []>} : vector<8x8xf32>, vector<8x196xf32>, vector<8x196xf32> -> vector<8x196xf32>
    %62 = arith.addf %55, %61 : vector<8x196xf32>
    %c0_36 = arith.constant 0 : index
    %c16_37 = arith.constant 16 : index
    %63 = vector.load %arg18[%c0_36, %c16_37] : memref<8x212xf32, #tpu.memory_space<vmem>>, vector<8x196xf32>
    %64 = vector.extract_strided_slice %2 {offsets = [8, 0], sizes = [1, 196], strides = [1, 1]} : vector<9x196xf32> to vector<1x196xf32>
    %65 = vector.broadcast %64 : vector<1x196xf32> to vector<8x196xf32>
    %66 = arith.mulf %63, %65 : vector<8x196xf32>
    %c0_38 = arith.constant 0 : index
    %c64 = arith.constant 64 : index
    %67 = vector.load %arg3[%c0_38, %c64] : memref<8x72xf32, #tpu.memory_space<vmem>>, vector<8x8xf32>
    %cst_39 = arith.constant dense<0.000000e+00> : vector<8x196xf32>
    %68 = tpu.matmul %67, %66, %cst_39 {dimension_numbers = #tpu.dot_dimension_numbers<[1], [0], [0], [1], [0, 0, 1, 1], [], []>} : vector<8x8xf32>, vector<8x196xf32>, vector<8x196xf32> -> vector<8x196xf32>
    %69 = arith.addf %62, %68 : vector<8x196xf32>
    %c0_40 = arith.constant 0 : index
    %c0_41 = arith.constant 0 : index
    %70 = vector.load %arg4[%c0_40, %c0_41] : memref<8x1xf32, #tpu.memory_space<vmem>>, vector<8x1xf32>
    %71 = vector.broadcast %70 : vector<8x1xf32> to vector<8x196xf32>
    %72 = arith.addf %69, %71 : vector<8x196xf32>
    %cst_42 = arith.constant 0.000000e+00 : f32
    %73 = vector.broadcast %cst_42 : f32 to vector<8x196xf32>
    %74 = arith.maximumf %72, %73 : vector<8x196xf32>
    %c0_43 = arith.constant 0 : index
    %c8_44 = arith.constant 8 : index
    %75 = vector.load %arg18[%c0_43, %c8_44] : memref<8x212xf32, #tpu.memory_space<vmem>>, vector<8x196xf32>
    tpu.vector_store %arg18[%c0_43, %c8_44], %74 {strides = array<i32>} : memref<8x212xf32, #tpu.memory_space<vmem>>, vector<8x196xf32>,
    %cst_45 = arith.constant 0.000000e+00 : f32
    %76 = vector.broadcast %cst_45 : f32 to vector<8x196xf32>
    %c0_46 = arith.constant 0 : index
    %c0_47 = arith.constant 0 : index
    %77 = vector.load %arg18[%c0_46, %c0_47] : memref<8x212xf32, #tpu.memory_space<vmem>>, vector<8x196xf32>
    %78 = vector.extract_strided_slice %2 {offsets = [0, 0], sizes = [1, 196], strides = [1, 1]} : vector<9x196xf32> to vector<1x196xf32>
    %79 = vector.broadcast %78 : vector<1x196xf32> to vector<8x196xf32>
    %80 = arith.mulf %77, %79 : vector<8x196xf32>
    %c0_48 = arith.constant 0 : index
    %c0_49 = arith.constant 0 : index
    %81 = vector.load %arg5[%c0_48, %c0_49] : memref<8x72xf32, #tpu.memory_space<vmem>>, vector<8x8xf32>
    %cst_50 = arith.constant dense<0.000000e+00> : vector<8x196xf32>
    %82 = tpu.matmul %81, %80, %cst_50 {dimension_numbers = #tpu.dot_dimension_numbers<[1], [0], [0], [1], [0, 0, 1, 1], [], []>} : vector<8x8xf32>, vector<8x196xf32>, vector<8x196xf32> -> vector<8x196xf32>
    %83 = arith.addf %76, %82 : vector<8x196xf32>
    %c0_51 = arith.constant 0 : index
    %c1_52 = arith.constant 1 : index
    %84 = vector.load %arg18[%c0_51, %c1_52] : memref<8x212xf32, #tpu.memory_space<vmem>>, vector<8x196xf32>
    %85 = vector.extract_strided_slice %2 {offsets = [1, 0], sizes = [1, 196], strides = [1, 1]} : vector<9x196xf32> to vector<1x196xf32>
    %86 = vector.broadcast %85 : vector<1x196xf32> to vector<8x196xf32>
    %87 = arith.mulf %84, %86 : vector<8x196xf32>
    %c0_53 = arith.constant 0 : index
    %c8_54 = arith.constant 8 : index
    %88 = vector.load %arg5[%c0_53, %c8_54] : memref<8x72xf32, #tpu.memory_space<vmem>>, vector<8x8xf32>
    %cst_55 = arith.constant dense<0.000000e+00> : vector<8x196xf32>
    %89 = tpu.matmul %88, %87, %cst_55 {dimension_numbers = #tpu.dot_dimension_numbers<[1], [0], [0], [1], [0, 0, 1, 1], [], []>} : vector<8x8xf32>, vector<8x196xf32>, vector<8x196xf32> -> vector<8x196xf32>
    %90 = arith.addf %83, %89 : vector<8x196xf32>
    %c0_56 = arith.constant 0 : index
    %c2_57 = arith.constant 2 : index
    %91 = vector.load %arg18[%c0_56, %c2_57] : memref<8x212xf32, #tpu.memory_space<vmem>>, vector<8x196xf32>
    %92 = vector.extract_strided_slice %2 {offsets = [2, 0], sizes = [1, 196], strides = [1, 1]} : vector<9x196xf32> to vector<1x196xf32>
    %93 = vector.broadcast %92 : vector<1x196xf32> to vector<8x196xf32>
    %94 = arith.mulf %91, %93 : vector<8x196xf32>
    %c0_58 = arith.constant 0 : index
    %c16_59 = arith.constant 16 : index
    %95 = vector.load %arg5[%c0_58, %c16_59] : memref<8x72xf32, #tpu.memory_space<vmem>>, vector<8x8xf32>
    %cst_60 = arith.constant dense<0.000000e+00> : vector<8x196xf32>
    %96 = tpu.matmul %95, %94, %cst_60 {dimension_numbers = #tpu.dot_dimension_numbers<[1], [0], [0], [1], [0, 0, 1, 1], [], []>} : vector<8x8xf32>, vector<8x196xf32>, vector<8x196xf32> -> vector<8x196xf32>
    %97 = arith.addf %90, %96 : vector<8x196xf32>
    %c0_61 = arith.constant 0 : index
    %c7_62 = arith.constant 7 : index
    %98 = vector.load %arg18[%c0_61, %c7_62] : memref<8x212xf32, #tpu.memory_space<vmem>>, vector<8x196xf32>
    %99 = vector.extract_strided_slice %2 {offsets = [3, 0], sizes = [1, 196], strides = [1, 1]} : vector<9x196xf32> to vector<1x196xf32>
    %100 = vector.broadcast %99 : vector<1x196xf32> to vector<8x196xf32>
    %101 = arith.mulf %98, %100 : vector<8x196xf32>
    %c0_63 = arith.constant 0 : index
    %c24_64 = arith.constant 24 : index
    %102 = vector.load %arg5[%c0_63, %c24_64] : memref<8x72xf32, #tpu.memory_space<vmem>>, vector<8x8xf32>
    %cst_65 = arith.constant dense<0.000000e+00> : vector<8x196xf32>
    %103 = tpu.matmul %102, %101, %cst_65 {dimension_numbers = #tpu.dot_dimension_numbers<[1], [0], [0], [1], [0, 0, 1, 1], [], []>} : vector<8x8xf32>, vector<8x196xf32>, vector<8x196xf32> -> vector<8x196xf32>
    %104 = arith.addf %97, %103 : vector<8x196xf32>
    %c0_66 = arith.constant 0 : index
    %c8_67 = arith.constant 8 : index
    %105 = vector.load %arg18[%c0_66, %c8_67] : memref<8x212xf32, #tpu.memory_space<vmem>>, vector<8x196xf32>
    %106 = vector.extract_strided_slice %2 {offsets = [4, 0], sizes = [1, 196], strides = [1, 1]} : vector<9x196xf32> to vector<1x196xf32>
    %107 = vector.broadcast %106 : vector<1x196xf32> to vector<8x196xf32>
    %108 = arith.mulf %105, %107 : vector<8x196xf32>
    %c0_68 = arith.constant 0 : index
    %c32_69 = arith.constant 32 : index
    %109 = vector.load %arg5[%c0_68, %c32_69] : memref<8x72xf32, #tpu.memory_space<vmem>>, vector<8x8xf32>
    %cst_70 = arith.constant dense<0.000000e+00> : vector<8x196xf32>
    %110 = tpu.matmul %109, %108, %cst_70 {dimension_numbers = #tpu.dot_dimension_numbers<[1], [0], [0], [1], [0, 0, 1, 1], [], []>} : vector<8x8xf32>, vector<8x196xf32>, vector<8x196xf32> -> vector<8x196xf32>
    %111 = arith.addf %104, %110 : vector<8x196xf32>
    %c0_71 = arith.constant 0 : index
    %c9_72 = arith.constant 9 : index
    %112 = vector.load %arg18[%c0_71, %c9_72] : memref<8x212xf32, #tpu.memory_space<vmem>>, vector<8x196xf32>
    %113 = vector.extract_strided_slice %2 {offsets = [5, 0], sizes = [1, 196], strides = [1, 1]} : vector<9x196xf32> to vector<1x196xf32>
    %114 = vector.broadcast %113 : vector<1x196xf32> to vector<8x196xf32>
    %115 = arith.mulf %112, %114 : vector<8x196xf32>
    %c0_73 = arith.constant 0 : index
    %c40_74 = arith.constant 40 : index
    %116 = vector.load %arg5[%c0_73, %c40_74] : memref<8x72xf32, #tpu.memory_space<vmem>>, vector<8x8xf32>
    %cst_75 = arith.constant dense<0.000000e+00> : vector<8x196xf32>
    %117 = tpu.matmul %116, %115, %cst_75 {dimension_numbers = #tpu.dot_dimension_numbers<[1], [0], [0], [1], [0, 0, 1, 1], [], []>} : vector<8x8xf32>, vector<8x196xf32>, vector<8x196xf32> -> vector<8x196xf32>
    %118 = arith.addf %111, %117 : vector<8x196xf32>
    %c0_76 = arith.constant 0 : index
    %c14_77 = arith.constant 14 : index
    %119 = vector.load %arg18[%c0_76, %c14_77] : memref<8x212xf32, #tpu.memory_space<vmem>>, vector<8x196xf32>
    %120 = vector.extract_strided_slice %2 {offsets = [6, 0], sizes = [1, 196], strides = [1, 1]} : vector<9x196xf32> to vector<1x196xf32>
    %121 = vector.broadcast %120 : vector<1x196xf32> to vector<8x196xf32>
    %122 = arith.mulf %119, %121 : vector<8x196xf32>
    %c0_78 = arith.constant 0 : index
    %c48_79 = arith.constant 48 : index
    %123 = vector.load %arg5[%c0_78, %c48_79] : memref<8x72xf32, #tpu.memory_space<vmem>>, vector<8x8xf32>
    %cst_80 = arith.constant dense<0.000000e+00> : vector<8x196xf32>
    %124 = tpu.matmul %123, %122, %cst_80 {dimension_numbers = #tpu.dot_dimension_numbers<[1], [0], [0], [1], [0, 0, 1, 1], [], []>} : vector<8x8xf32>, vector<8x196xf32>, vector<8x196xf32> -> vector<8x196xf32>
    %125 = arith.addf %118, %124 : vector<8x196xf32>
    %c0_81 = arith.constant 0 : index
    %c15_82 = arith.constant 15 : index
    %126 = vector.load %arg18[%c0_81, %c15_82] : memref<8x212xf32, #tpu.memory_space<vmem>>, vector<8x196xf32>
    %127 = vector.extract_strided_slice %2 {offsets = [7, 0], sizes = [1, 196], strides = [1, 1]} : vector<9x196xf32> to vector<1x196xf32>
    %128 = vector.broadcast %127 : vector<1x196xf32> to vector<8x196xf32>
    %129 = arith.mulf %126, %128 : vector<8x196xf32>
    %c0_83 = arith.constant 0 : index
    %c56_84 = arith.constant 56 : index
    %130 = vector.load %arg5[%c0_83, %c56_84] : memref<8x72xf32, #tpu.memory_space<vmem>>, vector<8x8xf32>
    %cst_85 = arith.constant dense<0.000000e+00> : vector<8x196xf32>
    %131 = tpu.matmul %130, %129, %cst_85 {dimension_numbers = #tpu.dot_dimension_numbers<[1], [0], [0], [1], [0, 0, 1, 1], [], []>} : vector<8x8xf32>, vector<8x196xf32>, vector<8x196xf32> -> vector<8x196xf32>
    %132 = arith.addf %125, %131 : vector<8x196xf32>
    %c0_86 = arith.constant 0 : index
    %c16_87 = arith.constant 16 : index
    %133 = vector.load %arg18[%c0_86, %c16_87] : memref<8x212xf32, #tpu.memory_space<vmem>>, vector<8x196xf32>
    %134 = vector.extract_strided_slice %2 {offsets = [8, 0], sizes = [1, 196], strides = [1, 1]} : vector<9x196xf32> to vector<1x196xf32>
    %135 = vector.broadcast %134 : vector<1x196xf32> to vector<8x196xf32>
    %136 = arith.mulf %133, %135 : vector<8x196xf32>
    %c0_88 = arith.constant 0 : index
    %c64_89 = arith.constant 64 : index
    %137 = vector.load %arg5[%c0_88, %c64_89] : memref<8x72xf32, #tpu.memory_space<vmem>>, vector<8x8xf32>
    %cst_90 = arith.constant dense<0.000000e+00> : vector<8x196xf32>
    %138 = tpu.matmul %137, %136, %cst_90 {dimension_numbers = #tpu.dot_dimension_numbers<[1], [0], [0], [1], [0, 0, 1, 1], [], []>} : vector<8x8xf32>, vector<8x196xf32>, vector<8x196xf32> -> vector<8x196xf32>
    %139 = arith.addf %132, %138 : vector<8x196xf32>
    %c0_91 = arith.constant 0 : index
    %c0_92 = arith.constant 0 : index
    %140 = vector.load %arg6[%c0_91, %c0_92] : memref<8x1xf32, #tpu.memory_space<vmem>>, vector<8x1xf32>
    %141 = vector.broadcast %140 : vector<8x1xf32> to vector<8x196xf32>
    %142 = arith.addf %139, %141 : vector<8x196xf32>
    %cst_93 = arith.constant 0.000000e+00 : f32
    %143 = vector.broadcast %cst_93 : f32 to vector<8x196xf32>
    %144 = arith.maximumf %142, %143 : vector<8x196xf32>
    %c0_94 = arith.constant 0 : index
    %c8_95 = arith.constant 8 : index
    %145 = vector.load %arg18[%c0_94, %c8_95] : memref<8x212xf32, #tpu.memory_space<vmem>>, vector<8x196xf32>
    tpu.vector_store %arg18[%c0_94, %c8_95], %144 {strides = array<i32>} : memref<8x212xf32, #tpu.memory_space<vmem>>, vector<8x196xf32>,
    %cst_96 = arith.constant 0.000000e+00 : f32
    %146 = vector.broadcast %cst_96 : f32 to vector<8x196xf32>
    %c0_97 = arith.constant 0 : index
    %c0_98 = arith.constant 0 : index
    %147 = vector.load %arg18[%c0_97, %c0_98] : memref<8x212xf32, #tpu.memory_space<vmem>>, vector<8x196xf32>
    %148 = vector.extract_strided_slice %2 {offsets = [0, 0], sizes = [1, 196], strides = [1, 1]} : vector<9x196xf32> to vector<1x196xf32>
    %149 = vector.broadcast %148 : vector<1x196xf32> to vector<8x196xf32>
    %150 = arith.mulf %147, %149 : vector<8x196xf32>
    %c0_99 = arith.constant 0 : index
    %c0_100 = arith.constant 0 : index
    %151 = vector.load %arg7[%c0_99, %c0_100] : memref<8x72xf32, #tpu.memory_space<vmem>>, vector<8x8xf32>
    %cst_101 = arith.constant dense<0.000000e+00> : vector<8x196xf32>
    %152 = tpu.matmul %151, %150, %cst_101 {dimension_numbers = #tpu.dot_dimension_numbers<[1], [0], [0], [1], [0, 0, 1, 1], [], []>} : vector<8x8xf32>, vector<8x196xf32>, vector<8x196xf32> -> vector<8x196xf32>
    %153 = arith.addf %146, %152 : vector<8x196xf32>
    %c0_102 = arith.constant 0 : index
    %c1_103 = arith.constant 1 : index
    %154 = vector.load %arg18[%c0_102, %c1_103] : memref<8x212xf32, #tpu.memory_space<vmem>>, vector<8x196xf32>
    %155 = vector.extract_strided_slice %2 {offsets = [1, 0], sizes = [1, 196], strides = [1, 1]} : vector<9x196xf32> to vector<1x196xf32>
    %156 = vector.broadcast %155 : vector<1x196xf32> to vector<8x196xf32>
    %157 = arith.mulf %154, %156 : vector<8x196xf32>
    %c0_104 = arith.constant 0 : index
    %c8_105 = arith.constant 8 : index
    %158 = vector.load %arg7[%c0_104, %c8_105] : memref<8x72xf32, #tpu.memory_space<vmem>>, vector<8x8xf32>
    %cst_106 = arith.constant dense<0.000000e+00> : vector<8x196xf32>
    %159 = tpu.matmul %158, %157, %cst_106 {dimension_numbers = #tpu.dot_dimension_numbers<[1], [0], [0], [1], [0, 0, 1, 1], [], []>} : vector<8x8xf32>, vector<8x196xf32>, vector<8x196xf32> -> vector<8x196xf32>
    %160 = arith.addf %153, %159 : vector<8x196xf32>
    %c0_107 = arith.constant 0 : index
    %c2_108 = arith.constant 2 : index
    %161 = vector.load %arg18[%c0_107, %c2_108] : memref<8x212xf32, #tpu.memory_space<vmem>>, vector<8x196xf32>
    %162 = vector.extract_strided_slice %2 {offsets = [2, 0], sizes = [1, 196], strides = [1, 1]} : vector<9x196xf32> to vector<1x196xf32>
    %163 = vector.broadcast %162 : vector<1x196xf32> to vector<8x196xf32>
    %164 = arith.mulf %161, %163 : vector<8x196xf32>
    %c0_109 = arith.constant 0 : index
    %c16_110 = arith.constant 16 : index
    %165 = vector.load %arg7[%c0_109, %c16_110] : memref<8x72xf32, #tpu.memory_space<vmem>>, vector<8x8xf32>
    %cst_111 = arith.constant dense<0.000000e+00> : vector<8x196xf32>
    %166 = tpu.matmul %165, %164, %cst_111 {dimension_numbers = #tpu.dot_dimension_numbers<[1], [0], [0], [1], [0, 0, 1, 1], [], []>} : vector<8x8xf32>, vector<8x196xf32>, vector<8x196xf32> -> vector<8x196xf32>
    %167 = arith.addf %160, %166 : vector<8x196xf32>
    %c0_112 = arith.constant 0 : index
    %c7_113 = arith.constant 7 : index
    %168 = vector.load %arg18[%c0_112, %c7_113] : memref<8x212xf32, #tpu.memory_space<vmem>>, vector<8x196xf32>
    %169 = vector.extract_strided_slice %2 {offsets = [3, 0], sizes = [1, 196], strides = [1, 1]} : vector<9x196xf32> to vector<1x196xf32>
    %170 = vector.broadcast %169 : vector<1x196xf32> to vector<8x196xf32>
    %171 = arith.mulf %168, %170 : vector<8x196xf32>
    %c0_114 = arith.constant 0 : index
    %c24_115 = arith.constant 24 : index
    %172 = vector.load %arg7[%c0_114, %c24_115] : memref<8x72xf32, #tpu.memory_space<vmem>>, vector<8x8xf32>
    %cst_116 = arith.constant dense<0.000000e+00> : vector<8x196xf32>
    %173 = tpu.matmul %172, %171, %cst_116 {dimension_numbers = #tpu.dot_dimension_numbers<[1], [0], [0], [1], [0, 0, 1, 1], [], []>} : vector<8x8xf32>, vector<8x196xf32>, vector<8x196xf32> -> vector<8x196xf32>
    %174 = arith.addf %167, %173 : vector<8x196xf32>
    %c0_117 = arith.constant 0 : index
    %c8_118 = arith.constant 8 : index
    %175 = vector.load %arg18[%c0_117, %c8_118] : memref<8x212xf32, #tpu.memory_space<vmem>>, vector<8x196xf32>
    %176 = vector.extract_strided_slice %2 {offsets = [4, 0], sizes = [1, 196], strides = [1, 1]} : vector<9x196xf32> to vector<1x196xf32>
    %177 = vector.broadcast %176 : vector<1x196xf32> to vector<8x196xf32>
    %178 = arith.mulf %175, %177 : vector<8x196xf32>
    %c0_119 = arith.constant 0 : index
    %c32_120 = arith.constant 32 : index
    %179 = vector.load %arg7[%c0_119, %c32_120] : memref<8x72xf32, #tpu.memory_space<vmem>>, vector<8x8xf32>
    %cst_121 = arith.constant dense<0.000000e+00> : vector<8x196xf32>
    %180 = tpu.matmul %179, %178, %cst_121 {dimension_numbers = #tpu.dot_dimension_numbers<[1], [0], [0], [1], [0, 0, 1, 1], [], []>} : vector<8x8xf32>, vector<8x196xf32>, vector<8x196xf32> -> vector<8x196xf32>
    %181 = arith.addf %174, %180 : vector<8x196xf32>
    %c0_122 = arith.constant 0 : index
    %c9_123 = arith.constant 9 : index
    %182 = vector.load %arg18[%c0_122, %c9_123] : memref<8x212xf32, #tpu.memory_space<vmem>>, vector<8x196xf32>
    %183 = vector.extract_strided_slice %2 {offsets = [5, 0], sizes = [1, 196], strides = [1, 1]} : vector<9x196xf32> to vector<1x196xf32>
    %184 = vector.broadcast %183 : vector<1x196xf32> to vector<8x196xf32>
    %185 = arith.mulf %182, %184 : vector<8x196xf32>
    %c0_124 = arith.constant 0 : index
    %c40_125 = arith.constant 40 : index
    %186 = vector.load %arg7[%c0_124, %c40_125] : memref<8x72xf32, #tpu.memory_space<vmem>>, vector<8x8xf32>
    %cst_126 = arith.constant dense<0.000000e+00> : vector<8x196xf32>
    %187 = tpu.matmul %186, %185, %cst_126 {dimension_numbers = #tpu.dot_dimension_numbers<[1], [0], [0], [1], [0, 0, 1, 1], [], []>} : vector<8x8xf32>, vector<8x196xf32>, vector<8x196xf32> -> vector<8x196xf32>
    %188 = arith.addf %181, %187 : vector<8x196xf32>
    %c0_127 = arith.constant 0 : index
    %c14_128 = arith.constant 14 : index
    %189 = vector.load %arg18[%c0_127, %c14_128] : memref<8x212xf32, #tpu.memory_space<vmem>>, vector<8x196xf32>
    %190 = vector.extract_strided_slice %2 {offsets = [6, 0], sizes = [1, 196], strides = [1, 1]} : vector<9x196xf32> to vector<1x196xf32>
    %191 = vector.broadcast %190 : vector<1x196xf32> to vector<8x196xf32>
    %192 = arith.mulf %189, %191 : vector<8x196xf32>
    %c0_129 = arith.constant 0 : index
    %c48_130 = arith.constant 48 : index
    %193 = vector.load %arg7[%c0_129, %c48_130] : memref<8x72xf32, #tpu.memory_space<vmem>>, vector<8x8xf32>
    %cst_131 = arith.constant dense<0.000000e+00> : vector<8x196xf32>
    %194 = tpu.matmul %193, %192, %cst_131 {dimension_numbers = #tpu.dot_dimension_numbers<[1], [0], [0], [1], [0, 0, 1, 1], [], []>} : vector<8x8xf32>, vector<8x196xf32>, vector<8x196xf32> -> vector<8x196xf32>
    %195 = arith.addf %188, %194 : vector<8x196xf32>
    %c0_132 = arith.constant 0 : index
    %c15_133 = arith.constant 15 : index
    %196 = vector.load %arg18[%c0_132, %c15_133] : memref<8x212xf32, #tpu.memory_space<vmem>>, vector<8x196xf32>
    %197 = vector.extract_strided_slice %2 {offsets = [7, 0], sizes = [1, 196], strides = [1, 1]} : vector<9x196xf32> to vector<1x196xf32>
    %198 = vector.broadcast %197 : vector<1x196xf32> to vector<8x196xf32>
    %199 = arith.mulf %196, %198 : vector<8x196xf32>
    %c0_134 = arith.constant 0 : index
    %c56_135 = arith.constant 56 : index
    %200 = vector.load %arg7[%c0_134, %c56_135] : memref<8x72xf32, #tpu.memory_space<vmem>>, vector<8x8xf32>
    %cst_136 = arith.constant dense<0.000000e+00> : vector<8x196xf32>
    %201 = tpu.matmul %200, %199, %cst_136 {dimension_numbers = #tpu.dot_dimension_numbers<[1], [0], [0], [1], [0, 0, 1, 1], [], []>} : vector<8x8xf32>, vector<8x196xf32>, vector<8x196xf32> -> vector<8x196xf32>
    %202 = arith.addf %195, %201 : vector<8x196xf32>
    %c0_137 = arith.constant 0 : index
    %c16_138 = arith.constant 16 : index
    %203 = vector.load %arg18[%c0_137, %c16_138] : memref<8x212xf32, #tpu.memory_space<vmem>>, vector<8x196xf32>
    %204 = vector.extract_strided_slice %2 {offsets = [8, 0], sizes = [1, 196], strides = [1, 1]} : vector<9x196xf32> to vector<1x196xf32>
    %205 = vector.broadcast %204 : vector<1x196xf32> to vector<8x196xf32>
    %206 = arith.mulf %203, %205 : vector<8x196xf32>
    %c0_139 = arith.constant 0 : index
    %c64_140 = arith.constant 64 : index
    %207 = vector.load %arg7[%c0_139, %c64_140] : memref<8x72xf32, #tpu.memory_space<vmem>>, vector<8x8xf32>
    %cst_141 = arith.constant dense<0.000000e+00> : vector<8x196xf32>
    %208 = tpu.matmul %207, %206, %cst_141 {dimension_numbers = #tpu.dot_dimension_numbers<[1], [0], [0], [1], [0, 0, 1, 1], [], []>} : vector<8x8xf32>, vector<8x196xf32>, vector<8x196xf32> -> vector<8x196xf32>
    %209 = arith.addf %202, %208 : vector<8x196xf32>
    %c0_142 = arith.constant 0 : index
    %c0_143 = arith.constant 0 : index
    %210 = vector.load %arg8[%c0_142, %c0_143] : memref<8x1xf32, #tpu.memory_space<vmem>>, vector<8x1xf32>
    %211 = vector.broadcast %210 : vector<8x1xf32> to vector<8x196xf32>
    %212 = arith.addf %209, %211 : vector<8x196xf32>
    %cst_144 = arith.constant 0.000000e+00 : f32
    %213 = vector.broadcast %cst_144 : f32 to vector<8x196xf32>
    %214 = arith.maximumf %212, %213 : vector<8x196xf32>
    %c0_145 = arith.constant 0 : index
    %c8_146 = arith.constant 8 : index
    %215 = vector.load %arg18[%c0_145, %c8_146] : memref<8x212xf32, #tpu.memory_space<vmem>>, vector<8x196xf32>
    tpu.vector_store %arg18[%c0_145, %c8_146], %214 {strides = array<i32>} : memref<8x212xf32, #tpu.memory_space<vmem>>, vector<8x196xf32>,
    %cst_147 = arith.constant 0.000000e+00 : f32
    %216 = vector.broadcast %cst_147 : f32 to vector<8x196xf32>
    %c0_148 = arith.constant 0 : index
    %c0_149 = arith.constant 0 : index
    %217 = vector.load %arg18[%c0_148, %c0_149] : memref<8x212xf32, #tpu.memory_space<vmem>>, vector<8x196xf32>
    %218 = vector.extract_strided_slice %2 {offsets = [0, 0], sizes = [1, 196], strides = [1, 1]} : vector<9x196xf32> to vector<1x196xf32>
    %219 = vector.broadcast %218 : vector<1x196xf32> to vector<8x196xf32>
    %220 = arith.mulf %217, %219 : vector<8x196xf32>
    %c0_150 = arith.constant 0 : index
    %c0_151 = arith.constant 0 : index
    %221 = vector.load %arg9[%c0_150, %c0_151] : memref<8x72xf32, #tpu.memory_space<vmem>>, vector<8x8xf32>
    %cst_152 = arith.constant dense<0.000000e+00> : vector<8x196xf32>
    %222 = tpu.matmul %221, %220, %cst_152 {dimension_numbers = #tpu.dot_dimension_numbers<[1], [0], [0], [1], [0, 0, 1, 1], [], []>} : vector<8x8xf32>, vector<8x196xf32>, vector<8x196xf32> -> vector<8x196xf32>
    %223 = arith.addf %216, %222 : vector<8x196xf32>
    %c0_153 = arith.constant 0 : index
    %c1_154 = arith.constant 1 : index
    %224 = vector.load %arg18[%c0_153, %c1_154] : memref<8x212xf32, #tpu.memory_space<vmem>>, vector<8x196xf32>
    %225 = vector.extract_strided_slice %2 {offsets = [1, 0], sizes = [1, 196], strides = [1, 1]} : vector<9x196xf32> to vector<1x196xf32>
    %226 = vector.broadcast %225 : vector<1x196xf32> to vector<8x196xf32>
    %227 = arith.mulf %224, %226 : vector<8x196xf32>
    %c0_155 = arith.constant 0 : index
    %c8_156 = arith.constant 8 : index
    %228 = vector.load %arg9[%c0_155, %c8_156] : memref<8x72xf32, #tpu.memory_space<vmem>>, vector<8x8xf32>
    %cst_157 = arith.constant dense<0.000000e+00> : vector<8x196xf32>
    %229 = tpu.matmul %228, %227, %cst_157 {dimension_numbers = #tpu.dot_dimension_numbers<[1], [0], [0], [1], [0, 0, 1, 1], [], []>} : vector<8x8xf32>, vector<8x196xf32>, vector<8x196xf32> -> vector<8x196xf32>
    %230 = arith.addf %223, %229 : vector<8x196xf32>
    %c0_158 = arith.constant 0 : index
    %c2_159 = arith.constant 2 : index
    %231 = vector.load %arg18[%c0_158, %c2_159] : memref<8x212xf32, #tpu.memory_space<vmem>>, vector<8x196xf32>
    %232 = vector.extract_strided_slice %2 {offsets = [2, 0], sizes = [1, 196], strides = [1, 1]} : vector<9x196xf32> to vector<1x196xf32>
    %233 = vector.broadcast %232 : vector<1x196xf32> to vector<8x196xf32>
    %234 = arith.mulf %231, %233 : vector<8x196xf32>
    %c0_160 = arith.constant 0 : index
    %c16_161 = arith.constant 16 : index
    %235 = vector.load %arg9[%c0_160, %c16_161] : memref<8x72xf32, #tpu.memory_space<vmem>>, vector<8x8xf32>
    %cst_162 = arith.constant dense<0.000000e+00> : vector<8x196xf32>
    %236 = tpu.matmul %235, %234, %cst_162 {dimension_numbers = #tpu.dot_dimension_numbers<[1], [0], [0], [1], [0, 0, 1, 1], [], []>} : vector<8x8xf32>, vector<8x196xf32>, vector<8x196xf32> -> vector<8x196xf32>
    %237 = arith.addf %230, %236 : vector<8x196xf32>
    %c0_163 = arith.constant 0 : index
    %c7_164 = arith.constant 7 : index
    %238 = vector.load %arg18[%c0_163, %c7_164] : memref<8x212xf32, #tpu.memory_space<vmem>>, vector<8x196xf32>
    %239 = vector.extract_strided_slice %2 {offsets = [3, 0], sizes = [1, 196], strides = [1, 1]} : vector<9x196xf32> to vector<1x196xf32>
    %240 = vector.broadcast %239 : vector<1x196xf32> to vector<8x196xf32>
    %241 = arith.mulf %238, %240 : vector<8x196xf32>
    %c0_165 = arith.constant 0 : index
    %c24_166 = arith.constant 24 : index
    %242 = vector.load %arg9[%c0_165, %c24_166] : memref<8x72xf32, #tpu.memory_space<vmem>>, vector<8x8xf32>
    %cst_167 = arith.constant dense<0.000000e+00> : vector<8x196xf32>
    %243 = tpu.matmul %242, %241, %cst_167 {dimension_numbers = #tpu.dot_dimension_numbers<[1], [0], [0], [1], [0, 0, 1, 1], [], []>} : vector<8x8xf32>, vector<8x196xf32>, vector<8x196xf32> -> vector<8x196xf32>
    %244 = arith.addf %237, %243 : vector<8x196xf32>
    %c0_168 = arith.constant 0 : index
    %c8_169 = arith.constant 8 : index
    %245 = vector.load %arg18[%c0_168, %c8_169] : memref<8x212xf32, #tpu.memory_space<vmem>>, vector<8x196xf32>
    %246 = vector.extract_strided_slice %2 {offsets = [4, 0], sizes = [1, 196], strides = [1, 1]} : vector<9x196xf32> to vector<1x196xf32>
    %247 = vector.broadcast %246 : vector<1x196xf32> to vector<8x196xf32>
    %248 = arith.mulf %245, %247 : vector<8x196xf32>
    %c0_170 = arith.constant 0 : index
    %c32_171 = arith.constant 32 : index
    %249 = vector.load %arg9[%c0_170, %c32_171] : memref<8x72xf32, #tpu.memory_space<vmem>>, vector<8x8xf32>
    %cst_172 = arith.constant dense<0.000000e+00> : vector<8x196xf32>
    %250 = tpu.matmul %249, %248, %cst_172 {dimension_numbers = #tpu.dot_dimension_numbers<[1], [0], [0], [1], [0, 0, 1, 1], [], []>} : vector<8x8xf32>, vector<8x196xf32>, vector<8x196xf32> -> vector<8x196xf32>
    %251 = arith.addf %244, %250 : vector<8x196xf32>
    %c0_173 = arith.constant 0 : index
    %c9_174 = arith.constant 9 : index
    %252 = vector.load %arg18[%c0_173, %c9_174] : memref<8x212xf32, #tpu.memory_space<vmem>>, vector<8x196xf32>
    %253 = vector.extract_strided_slice %2 {offsets = [5, 0], sizes = [1, 196], strides = [1, 1]} : vector<9x196xf32> to vector<1x196xf32>
    %254 = vector.broadcast %253 : vector<1x196xf32> to vector<8x196xf32>
    %255 = arith.mulf %252, %254 : vector<8x196xf32>
    %c0_175 = arith.constant 0 : index
    %c40_176 = arith.constant 40 : index
    %256 = vector.load %arg9[%c0_175, %c40_176] : memref<8x72xf32, #tpu.memory_space<vmem>>, vector<8x8xf32>
    %cst_177 = arith.constant dense<0.000000e+00> : vector<8x196xf32>
    %257 = tpu.matmul %256, %255, %cst_177 {dimension_numbers = #tpu.dot_dimension_numbers<[1], [0], [0], [1], [0, 0, 1, 1], [], []>} : vector<8x8xf32>, vector<8x196xf32>, vector<8x196xf32> -> vector<8x196xf32>
    %258 = arith.addf %251, %257 : vector<8x196xf32>
    %c0_178 = arith.constant 0 : index
    %c14_179 = arith.constant 14 : index
    %259 = vector.load %arg18[%c0_178, %c14_179] : memref<8x212xf32, #tpu.memory_space<vmem>>, vector<8x196xf32>
    %260 = vector.extract_strided_slice %2 {offsets = [6, 0], sizes = [1, 196], strides = [1, 1]} : vector<9x196xf32> to vector<1x196xf32>
    %261 = vector.broadcast %260 : vector<1x196xf32> to vector<8x196xf32>
    %262 = arith.mulf %259, %261 : vector<8x196xf32>
    %c0_180 = arith.constant 0 : index
    %c48_181 = arith.constant 48 : index
    %263 = vector.load %arg9[%c0_180, %c48_181] : memref<8x72xf32, #tpu.memory_space<vmem>>, vector<8x8xf32>
    %cst_182 = arith.constant dense<0.000000e+00> : vector<8x196xf32>
    %264 = tpu.matmul %263, %262, %cst_182 {dimension_numbers = #tpu.dot_dimension_numbers<[1], [0], [0], [1], [0, 0, 1, 1], [], []>} : vector<8x8xf32>, vector<8x196xf32>, vector<8x196xf32> -> vector<8x196xf32>
    %265 = arith.addf %258, %264 : vector<8x196xf32>
    %c0_183 = arith.constant 0 : index
    %c15_184 = arith.constant 15 : index
    %266 = vector.load %arg18[%c0_183, %c15_184] : memref<8x212xf32, #tpu.memory_space<vmem>>, vector<8x196xf32>
    %267 = vector.extract_strided_slice %2 {offsets = [7, 0], sizes = [1, 196], strides = [1, 1]} : vector<9x196xf32> to vector<1x196xf32>
    %268 = vector.broadcast %267 : vector<1x196xf32> to vector<8x196xf32>
    %269 = arith.mulf %266, %268 : vector<8x196xf32>
    %c0_185 = arith.constant 0 : index
    %c56_186 = arith.constant 56 : index
    %270 = vector.load %arg9[%c0_185, %c56_186] : memref<8x72xf32, #tpu.memory_space<vmem>>, vector<8x8xf32>
    %cst_187 = arith.constant dense<0.000000e+00> : vector<8x196xf32>
    %271 = tpu.matmul %270, %269, %cst_187 {dimension_numbers = #tpu.dot_dimension_numbers<[1], [0], [0], [1], [0, 0, 1, 1], [], []>} : vector<8x8xf32>, vector<8x196xf32>, vector<8x196xf32> -> vector<8x196xf32>
    %272 = arith.addf %265, %271 : vector<8x196xf32>
    %c0_188 = arith.constant 0 : index
    %c16_189 = arith.constant 16 : index
    %273 = vector.load %arg18[%c0_188, %c16_189] : memref<8x212xf32, #tpu.memory_space<vmem>>, vector<8x196xf32>
    %274 = vector.extract_strided_slice %2 {offsets = [8, 0], sizes = [1, 196], strides = [1, 1]} : vector<9x196xf32> to vector<1x196xf32>
    %275 = vector.broadcast %274 : vector<1x196xf32> to vector<8x196xf32>
    %276 = arith.mulf %273, %275 : vector<8x196xf32>
    %c0_190 = arith.constant 0 : index
    %c64_191 = arith.constant 64 : index
    %277 = vector.load %arg9[%c0_190, %c64_191] : memref<8x72xf32, #tpu.memory_space<vmem>>, vector<8x8xf32>
    %cst_192 = arith.constant dense<0.000000e+00> : vector<8x196xf32>
    %278 = tpu.matmul %277, %276, %cst_192 {dimension_numbers = #tpu.dot_dimension_numbers<[1], [0], [0], [1], [0, 0, 1, 1], [], []>} : vector<8x8xf32>, vector<8x196xf32>, vector<8x196xf32> -> vector<8x196xf32>
    %279 = arith.addf %272, %278 : vector<8x196xf32>
    %c0_193 = arith.constant 0 : index
    %c0_194 = arith.constant 0 : index
    %280 = vector.load %arg10[%c0_193, %c0_194] : memref<8x1xf32, #tpu.memory_space<vmem>>, vector<8x1xf32>
    %281 = vector.broadcast %280 : vector<8x1xf32> to vector<8x196xf32>
    %282 = arith.addf %279, %281 : vector<8x196xf32>
    %cst_195 = arith.constant 0.000000e+00 : f32
    %283 = vector.broadcast %cst_195 : f32 to vector<8x196xf32>
    %284 = arith.maximumf %282, %283 : vector<8x196xf32>
    %285 = vector.extract_strided_slice %284 {offsets = [0, 0], sizes = [1, 49], strides = [1, 1]} : vector<8x196xf32> to vector<1x49xf32>
    %c0_196 = arith.constant 0 : index
    %c0_197 = arith.constant 0 : index
    %c0_198 = arith.constant 0 : index
    %286 = vector.load %arg19[%c0_196, %c0_197, %c0_198] : memref<8x4x49xf32, #tpu.memory_space<vmem>>, vector<1x1x49xf32>
    %287 = vector.shape_cast %286 : vector<1x1x49xf32> to vector<1x49xf32>
    %288 = vector.shape_cast %285 : vector<1x49xf32> to vector<1x1x49xf32>
    tpu.vector_store %arg19[%c0_196, %c0_197, %c0_198], %288 {strides = array<i32>} : memref<8x4x49xf32, #tpu.memory_space<vmem>>, vector<1x1x49xf32>,
    %289 = vector.extract_strided_slice %284 {offsets = [0, 49], sizes = [1, 49], strides = [1, 1]} : vector<8x196xf32> to vector<1x49xf32>
    %c0_199 = arith.constant 0 : index
    %c1_200 = arith.constant 1 : index
    %c0_201 = arith.constant 0 : index
    %290 = vector.load %arg19[%c0_199, %c1_200, %c0_201] : memref<8x4x49xf32, #tpu.memory_space<vmem>>, vector<1x1x49xf32>
    %291 = vector.shape_cast %290 : vector<1x1x49xf32> to vector<1x49xf32>
    %292 = vector.shape_cast %289 : vector<1x49xf32> to vector<1x1x49xf32>
    tpu.vector_store %arg19[%c0_199, %c1_200, %c0_201], %292 {strides = array<i32>} : memref<8x4x49xf32, #tpu.memory_space<vmem>>, vector<1x1x49xf32>,
    %293 = vector.extract_strided_slice %284 {offsets = [0, 98], sizes = [1, 49], strides = [1, 1]} : vector<8x196xf32> to vector<1x49xf32>
    %c0_202 = arith.constant 0 : index
    %c2_203 = arith.constant 2 : index
    %c0_204 = arith.constant 0 : index
    %294 = vector.load %arg19[%c0_202, %c2_203, %c0_204] : memref<8x4x49xf32, #tpu.memory_space<vmem>>, vector<1x1x49xf32>
    %295 = vector.shape_cast %294 : vector<1x1x49xf32> to vector<1x49xf32>
    %296 = vector.shape_cast %293 : vector<1x49xf32> to vector<1x1x49xf32>
    tpu.vector_store %arg19[%c0_202, %c2_203, %c0_204], %296 {strides = array<i32>} : memref<8x4x49xf32, #tpu.memory_space<vmem>>, vector<1x1x49xf32>,
    %297 = vector.extract_strided_slice %284 {offsets = [0, 147], sizes = [1, 49], strides = [1, 1]} : vector<8x196xf32> to vector<1x49xf32>
    %c0_205 = arith.constant 0 : index
    %c3 = arith.constant 3 : index
    %c0_206 = arith.constant 0 : index
    %298 = vector.load %arg19[%c0_205, %c3, %c0_206] : memref<8x4x49xf32, #tpu.memory_space<vmem>>, vector<1x1x49xf32>
    %299 = vector.shape_cast %298 : vector<1x1x49xf32> to vector<1x49xf32>
    %300 = vector.shape_cast %297 : vector<1x49xf32> to vector<1x1x49xf32>
    tpu.vector_store %arg19[%c0_205, %c3, %c0_206], %300 {strides = array<i32>} : memref<8x4x49xf32, #tpu.memory_space<vmem>>, vector<1x1x49xf32>,
    %301 = vector.extract_strided_slice %284 {offsets = [1, 0], sizes = [1, 49], strides = [1, 1]} : vector<8x196xf32> to vector<1x49xf32>
    %c1_207 = arith.constant 1 : index
    %c0_208 = arith.constant 0 : index
    %c0_209 = arith.constant 0 : index
    %302 = vector.load %arg19[%c1_207, %c0_208, %c0_209] : memref<8x4x49xf32, #tpu.memory_space<vmem>>, vector<1x1x49xf32>
    %303 = vector.shape_cast %302 : vector<1x1x49xf32> to vector<1x49xf32>
    %304 = vector.shape_cast %301 : vector<1x49xf32> to vector<1x1x49xf32>
    tpu.vector_store %arg19[%c1_207, %c0_208, %c0_209], %304 {strides = array<i32>} : memref<8x4x49xf32, #tpu.memory_space<vmem>>, vector<1x1x49xf32>,
    %305 = vector.extract_strided_slice %284 {offsets = [1, 49], sizes = [1, 49], strides = [1, 1]} : vector<8x196xf32> to vector<1x49xf32>
    %c1_210 = arith.constant 1 : index
    %c1_211 = arith.constant 1 : index
    %c0_212 = arith.constant 0 : index
    %306 = vector.load %arg19[%c1_210, %c1_211, %c0_212] : memref<8x4x49xf32, #tpu.memory_space<vmem>>, vector<1x1x49xf32>
    %307 = vector.shape_cast %306 : vector<1x1x49xf32> to vector<1x49xf32>
    %308 = vector.shape_cast %305 : vector<1x49xf32> to vector<1x1x49xf32>
    tpu.vector_store %arg19[%c1_210, %c1_211, %c0_212], %308 {strides = array<i32>} : memref<8x4x49xf32, #tpu.memory_space<vmem>>, vector<1x1x49xf32>,
    %309 = vector.extract_strided_slice %284 {offsets = [1, 98], sizes = [1, 49], strides = [1, 1]} : vector<8x196xf32> to vector<1x49xf32>
    %c1_213 = arith.constant 1 : index
    %c2_214 = arith.constant 2 : index
    %c0_215 = arith.constant 0 : index
    %310 = vector.load %arg19[%c1_213, %c2_214, %c0_215] : memref<8x4x49xf32, #tpu.memory_space<vmem>>, vector<1x1x49xf32>
    %311 = vector.shape_cast %310 : vector<1x1x49xf32> to vector<1x49xf32>
    %312 = vector.shape_cast %309 : vector<1x49xf32> to vector<1x1x49xf32>
    tpu.vector_store %arg19[%c1_213, %c2_214, %c0_215], %312 {strides = array<i32>} : memref<8x4x49xf32, #tpu.memory_space<vmem>>, vector<1x1x49xf32>,
    %313 = vector.extract_strided_slice %284 {offsets = [1, 147], sizes = [1, 49], strides = [1, 1]} : vector<8x196xf32> to vector<1x49xf32>
    %c1_216 = arith.constant 1 : index
    %c3_217 = arith.constant 3 : index
    %c0_218 = arith.constant 0 : index
    %314 = vector.load %arg19[%c1_216, %c3_217, %c0_218] : memref<8x4x49xf32, #tpu.memory_space<vmem>>, vector<1x1x49xf32>
    %315 = vector.shape_cast %314 : vector<1x1x49xf32> to vector<1x49xf32>
    %316 = vector.shape_cast %313 : vector<1x49xf32> to vector<1x1x49xf32>
    tpu.vector_store %arg19[%c1_216, %c3_217, %c0_218], %316 {strides = array<i32>} : memref<8x4x49xf32, #tpu.memory_space<vmem>>, vector<1x1x49xf32>,
    %317 = vector.extract_strided_slice %284 {offsets = [2, 0], sizes = [1, 49], strides = [1, 1]} : vector<8x196xf32> to vector<1x49xf32>
    %c2_219 = arith.constant 2 : index
    %c0_220 = arith.constant 0 : index
    %c0_221 = arith.constant 0 : index
    %318 = vector.load %arg19[%c2_219, %c0_220, %c0_221] : memref<8x4x49xf32, #tpu.memory_space<vmem>>, vector<1x1x49xf32>
    %319 = vector.shape_cast %318 : vector<1x1x49xf32> to vector<1x49xf32>
    %320 = vector.shape_cast %317 : vector<1x49xf32> to vector<1x1x49xf32>
    tpu.vector_store %arg19[%c2_219, %c0_220, %c0_221], %320 {strides = array<i32>} : memref<8x4x49xf32, #tpu.memory_space<vmem>>, vector<1x1x49xf32>,
    %321 = vector.extract_strided_slice %284 {offsets = [2, 49], sizes = [1, 49], strides = [1, 1]} : vector<8x196xf32> to vector<1x49xf32>
    %c2_222 = arith.constant 2 : index
    %c1_223 = arith.constant 1 : index
    %c0_224 = arith.constant 0 : index
    %322 = vector.load %arg19[%c2_222, %c1_223, %c0_224] : memref<8x4x49xf32, #tpu.memory_space<vmem>>, vector<1x1x49xf32>
    %323 = vector.shape_cast %322 : vector<1x1x49xf32> to vector<1x49xf32>
    %324 = vector.shape_cast %321 : vector<1x49xf32> to vector<1x1x49xf32>
    tpu.vector_store %arg19[%c2_222, %c1_223, %c0_224], %324 {strides = array<i32>} : memref<8x4x49xf32, #tpu.memory_space<vmem>>, vector<1x1x49xf32>,
    %325 = vector.extract_strided_slice %284 {offsets = [2, 98], sizes = [1, 49], strides = [1, 1]} : vector<8x196xf32> to vector<1x49xf32>
    %c2_225 = arith.constant 2 : index
    %c2_226 = arith.constant 2 : index
    %c0_227 = arith.constant 0 : index
    %326 = vector.load %arg19[%c2_225, %c2_226, %c0_227] : memref<8x4x49xf32, #tpu.memory_space<vmem>>, vector<1x1x49xf32>
    %327 = vector.shape_cast %326 : vector<1x1x49xf32> to vector<1x49xf32>
    %328 = vector.shape_cast %325 : vector<1x49xf32> to vector<1x1x49xf32>
    tpu.vector_store %arg19[%c2_225, %c2_226, %c0_227], %328 {strides = array<i32>} : memref<8x4x49xf32, #tpu.memory_space<vmem>>, vector<1x1x49xf32>,
    %329 = vector.extract_strided_slice %284 {offsets = [2, 147], sizes = [1, 49], strides = [1, 1]} : vector<8x196xf32> to vector<1x49xf32>
    %c2_228 = arith.constant 2 : index
    %c3_229 = arith.constant 3 : index
    %c0_230 = arith.constant 0 : index
    %330 = vector.load %arg19[%c2_228, %c3_229, %c0_230] : memref<8x4x49xf32, #tpu.memory_space<vmem>>, vector<1x1x49xf32>
    %331 = vector.shape_cast %330 : vector<1x1x49xf32> to vector<1x49xf32>
    %332 = vector.shape_cast %329 : vector<1x49xf32> to vector<1x1x49xf32>
    tpu.vector_store %arg19[%c2_228, %c3_229, %c0_230], %332 {strides = array<i32>} : memref<8x4x49xf32, #tpu.memory_space<vmem>>, vector<1x1x49xf32>,
    %333 = vector.extract_strided_slice %284 {offsets = [3, 0], sizes = [1, 49], strides = [1, 1]} : vector<8x196xf32> to vector<1x49xf32>
    %c3_231 = arith.constant 3 : index
    %c0_232 = arith.constant 0 : index
    %c0_233 = arith.constant 0 : index
    %334 = vector.load %arg19[%c3_231, %c0_232, %c0_233] : memref<8x4x49xf32, #tpu.memory_space<vmem>>, vector<1x1x49xf32>
    %335 = vector.shape_cast %334 : vector<1x1x49xf32> to vector<1x49xf32>
    %336 = vector.shape_cast %333 : vector<1x49xf32> to vector<1x1x49xf32>
    tpu.vector_store %arg19[%c3_231, %c0_232, %c0_233], %336 {strides = array<i32>} : memref<8x4x49xf32, #tpu.memory_space<vmem>>, vector<1x1x49xf32>,
    %337 = vector.extract_strided_slice %284 {offsets = [3, 49], sizes = [1, 49], strides = [1, 1]} : vector<8x196xf32> to vector<1x49xf32>
    %c3_234 = arith.constant 3 : index
    %c1_235 = arith.constant 1 : index
    %c0_236 = arith.constant 0 : index
    %338 = vector.load %arg19[%c3_234, %c1_235, %c0_236] : memref<8x4x49xf32, #tpu.memory_space<vmem>>, vector<1x1x49xf32>
    %339 = vector.shape_cast %338 : vector<1x1x49xf32> to vector<1x49xf32>
    %340 = vector.shape_cast %337 : vector<1x49xf32> to vector<1x1x49xf32>
    tpu.vector_store %arg19[%c3_234, %c1_235, %c0_236], %340 {strides = array<i32>} : memref<8x4x49xf32, #tpu.memory_space<vmem>>, vector<1x1x49xf32>,
    %341 = vector.extract_strided_slice %284 {offsets = [3, 98], sizes = [1, 49], strides = [1, 1]} : vector<8x196xf32> to vector<1x49xf32>
    %c3_237 = arith.constant 3 : index
    %c2_238 = arith.constant 2 : index
    %c0_239 = arith.constant 0 : index
    %342 = vector.load %arg19[%c3_237, %c2_238, %c0_239] : memref<8x4x49xf32, #tpu.memory_space<vmem>>, vector<1x1x49xf32>
    %343 = vector.shape_cast %342 : vector<1x1x49xf32> to vector<1x49xf32>
    %344 = vector.shape_cast %341 : vector<1x49xf32> to vector<1x1x49xf32>
    tpu.vector_store %arg19[%c3_237, %c2_238, %c0_239], %344 {strides = array<i32>} : memref<8x4x49xf32, #tpu.memory_space<vmem>>, vector<1x1x49xf32>,
    %345 = vector.extract_strided_slice %284 {offsets = [3, 147], sizes = [1, 49], strides = [1, 1]} : vector<8x196xf32> to vector<1x49xf32>
    %c3_240 = arith.constant 3 : index
    %c3_241 = arith.constant 3 : index
    %c0_242 = arith.constant 0 : index
    %346 = vector.load %arg19[%c3_240, %c3_241, %c0_242] : memref<8x4x49xf32, #tpu.memory_space<vmem>>, vector<1x1x49xf32>
    %347 = vector.shape_cast %346 : vector<1x1x49xf32> to vector<1x49xf32>
    %348 = vector.shape_cast %345 : vector<1x49xf32> to vector<1x1x49xf32>
    tpu.vector_store %arg19[%c3_240, %c3_241, %c0_242], %348 {strides = array<i32>} : memref<8x4x49xf32, #tpu.memory_space<vmem>>, vector<1x1x49xf32>,
    %349 = vector.extract_strided_slice %284 {offsets = [4, 0], sizes = [1, 49], strides = [1, 1]} : vector<8x196xf32> to vector<1x49xf32>
    %c4 = arith.constant 4 : index
    %c0_243 = arith.constant 0 : index
    %c0_244 = arith.constant 0 : index
    %350 = vector.load %arg19[%c4, %c0_243, %c0_244] : memref<8x4x49xf32, #tpu.memory_space<vmem>>, vector<1x1x49xf32>
    %351 = vector.shape_cast %350 : vector<1x1x49xf32> to vector<1x49xf32>
    %352 = vector.shape_cast %349 : vector<1x49xf32> to vector<1x1x49xf32>
    tpu.vector_store %arg19[%c4, %c0_243, %c0_244], %352 {strides = array<i32>} : memref<8x4x49xf32, #tpu.memory_space<vmem>>, vector<1x1x49xf32>,
    %353 = vector.extract_strided_slice %284 {offsets = [4, 49], sizes = [1, 49], strides = [1, 1]} : vector<8x196xf32> to vector<1x49xf32>
    %c4_245 = arith.constant 4 : index
    %c1_246 = arith.constant 1 : index
    %c0_247 = arith.constant 0 : index
    %354 = vector.load %arg19[%c4_245, %c1_246, %c0_247] : memref<8x4x49xf32, #tpu.memory_space<vmem>>, vector<1x1x49xf32>
    %355 = vector.shape_cast %354 : vector<1x1x49xf32> to vector<1x49xf32>
    %356 = vector.shape_cast %353 : vector<1x49xf32> to vector<1x1x49xf32>
    tpu.vector_store %arg19[%c4_245, %c1_246, %c0_247], %356 {strides = array<i32>} : memref<8x4x49xf32, #tpu.memory_space<vmem>>, vector<1x1x49xf32>,
    %357 = vector.extract_strided_slice %284 {offsets = [4, 98], sizes = [1, 49], strides = [1, 1]} : vector<8x196xf32> to vector<1x49xf32>
    %c4_248 = arith.constant 4 : index
    %c2_249 = arith.constant 2 : index
    %c0_250 = arith.constant 0 : index
    %358 = vector.load %arg19[%c4_248, %c2_249, %c0_250] : memref<8x4x49xf32, #tpu.memory_space<vmem>>, vector<1x1x49xf32>
    %359 = vector.shape_cast %358 : vector<1x1x49xf32> to vector<1x49xf32>
    %360 = vector.shape_cast %357 : vector<1x49xf32> to vector<1x1x49xf32>
    tpu.vector_store %arg19[%c4_248, %c2_249, %c0_250], %360 {strides = array<i32>} : memref<8x4x49xf32, #tpu.memory_space<vmem>>, vector<1x1x49xf32>,
    %361 = vector.extract_strided_slice %284 {offsets = [4, 147], sizes = [1, 49], strides = [1, 1]} : vector<8x196xf32> to vector<1x49xf32>
    %c4_251 = arith.constant 4 : index
    %c3_252 = arith.constant 3 : index
    %c0_253 = arith.constant 0 : index
    %362 = vector.load %arg19[%c4_251, %c3_252, %c0_253] : memref<8x4x49xf32, #tpu.memory_space<vmem>>, vector<1x1x49xf32>
    %363 = vector.shape_cast %362 : vector<1x1x49xf32> to vector<1x49xf32>
    %364 = vector.shape_cast %361 : vector<1x49xf32> to vector<1x1x49xf32>
    tpu.vector_store %arg19[%c4_251, %c3_252, %c0_253], %364 {strides = array<i32>} : memref<8x4x49xf32, #tpu.memory_space<vmem>>, vector<1x1x49xf32>,
    %365 = vector.extract_strided_slice %284 {offsets = [5, 0], sizes = [1, 49], strides = [1, 1]} : vector<8x196xf32> to vector<1x49xf32>
    %c5 = arith.constant 5 : index
    %c0_254 = arith.constant 0 : index
    %c0_255 = arith.constant 0 : index
    %366 = vector.load %arg19[%c5, %c0_254, %c0_255] : memref<8x4x49xf32, #tpu.memory_space<vmem>>, vector<1x1x49xf32>
    %367 = vector.shape_cast %366 : vector<1x1x49xf32> to vector<1x49xf32>
    %368 = vector.shape_cast %365 : vector<1x49xf32> to vector<1x1x49xf32>
    tpu.vector_store %arg19[%c5, %c0_254, %c0_255], %368 {strides = array<i32>} : memref<8x4x49xf32, #tpu.memory_space<vmem>>, vector<1x1x49xf32>,
    %369 = vector.extract_strided_slice %284 {offsets = [5, 49], sizes = [1, 49], strides = [1, 1]} : vector<8x196xf32> to vector<1x49xf32>
    %c5_256 = arith.constant 5 : index
    %c1_257 = arith.constant 1 : index
    %c0_258 = arith.constant 0 : index
    %370 = vector.load %arg19[%c5_256, %c1_257, %c0_258] : memref<8x4x49xf32, #tpu.memory_space<vmem>>, vector<1x1x49xf32>
    %371 = vector.shape_cast %370 : vector<1x1x49xf32> to vector<1x49xf32>
    %372 = vector.shape_cast %369 : vector<1x49xf32> to vector<1x1x49xf32>
    tpu.vector_store %arg19[%c5_256, %c1_257, %c0_258], %372 {strides = array<i32>} : memref<8x4x49xf32, #tpu.memory_space<vmem>>, vector<1x1x49xf32>,
    %373 = vector.extract_strided_slice %284 {offsets = [5, 98], sizes = [1, 49], strides = [1, 1]} : vector<8x196xf32> to vector<1x49xf32>
    %c5_259 = arith.constant 5 : index
    %c2_260 = arith.constant 2 : index
    %c0_261 = arith.constant 0 : index
    %374 = vector.load %arg19[%c5_259, %c2_260, %c0_261] : memref<8x4x49xf32, #tpu.memory_space<vmem>>, vector<1x1x49xf32>
    %375 = vector.shape_cast %374 : vector<1x1x49xf32> to vector<1x49xf32>
    %376 = vector.shape_cast %373 : vector<1x49xf32> to vector<1x1x49xf32>
    tpu.vector_store %arg19[%c5_259, %c2_260, %c0_261], %376 {strides = array<i32>} : memref<8x4x49xf32, #tpu.memory_space<vmem>>, vector<1x1x49xf32>,
    %377 = vector.extract_strided_slice %284 {offsets = [5, 147], sizes = [1, 49], strides = [1, 1]} : vector<8x196xf32> to vector<1x49xf32>
    %c5_262 = arith.constant 5 : index
    %c3_263 = arith.constant 3 : index
    %c0_264 = arith.constant 0 : index
    %378 = vector.load %arg19[%c5_262, %c3_263, %c0_264] : memref<8x4x49xf32, #tpu.memory_space<vmem>>, vector<1x1x49xf32>
    %379 = vector.shape_cast %378 : vector<1x1x49xf32> to vector<1x49xf32>
    %380 = vector.shape_cast %377 : vector<1x49xf32> to vector<1x1x49xf32>
    tpu.vector_store %arg19[%c5_262, %c3_263, %c0_264], %380 {strides = array<i32>} : memref<8x4x49xf32, #tpu.memory_space<vmem>>, vector<1x1x49xf32>,
    %381 = vector.extract_strided_slice %284 {offsets = [6, 0], sizes = [1, 49], strides = [1, 1]} : vector<8x196xf32> to vector<1x49xf32>
    %c6 = arith.constant 6 : index
    %c0_265 = arith.constant 0 : index
    %c0_266 = arith.constant 0 : index
    %382 = vector.load %arg19[%c6, %c0_265, %c0_266] : memref<8x4x49xf32, #tpu.memory_space<vmem>>, vector<1x1x49xf32>
    %383 = vector.shape_cast %382 : vector<1x1x49xf32> to vector<1x49xf32>
    %384 = vector.shape_cast %381 : vector<1x49xf32> to vector<1x1x49xf32>
    tpu.vector_store %arg19[%c6, %c0_265, %c0_266], %384 {strides = array<i32>} : memref<8x4x49xf32, #tpu.memory_space<vmem>>, vector<1x1x49xf32>,
    %385 = vector.extract_strided_slice %284 {offsets = [6, 49], sizes = [1, 49], strides = [1, 1]} : vector<8x196xf32> to vector<1x49xf32>
    %c6_267 = arith.constant 6 : index
    %c1_268 = arith.constant 1 : index
    %c0_269 = arith.constant 0 : index
    %386 = vector.load %arg19[%c6_267, %c1_268, %c0_269] : memref<8x4x49xf32, #tpu.memory_space<vmem>>, vector<1x1x49xf32>
    %387 = vector.shape_cast %386 : vector<1x1x49xf32> to vector<1x49xf32>
    %388 = vector.shape_cast %385 : vector<1x49xf32> to vector<1x1x49xf32>
    tpu.vector_store %arg19[%c6_267, %c1_268, %c0_269], %388 {strides = array<i32>} : memref<8x4x49xf32, #tpu.memory_space<vmem>>, vector<1x1x49xf32>,
    %389 = vector.extract_strided_slice %284 {offsets = [6, 98], sizes = [1, 49], strides = [1, 1]} : vector<8x196xf32> to vector<1x49xf32>
    %c6_270 = arith.constant 6 : index
    %c2_271 = arith.constant 2 : index
    %c0_272 = arith.constant 0 : index
    %390 = vector.load %arg19[%c6_270, %c2_271, %c0_272] : memref<8x4x49xf32, #tpu.memory_space<vmem>>, vector<1x1x49xf32>
    %391 = vector.shape_cast %390 : vector<1x1x49xf32> to vector<1x49xf32>
    %392 = vector.shape_cast %389 : vector<1x49xf32> to vector<1x1x49xf32>
    tpu.vector_store %arg19[%c6_270, %c2_271, %c0_272], %392 {strides = array<i32>} : memref<8x4x49xf32, #tpu.memory_space<vmem>>, vector<1x1x49xf32>,
    %393 = vector.extract_strided_slice %284 {offsets = [6, 147], sizes = [1, 49], strides = [1, 1]} : vector<8x196xf32> to vector<1x49xf32>
    %c6_273 = arith.constant 6 : index
    %c3_274 = arith.constant 3 : index
    %c0_275 = arith.constant 0 : index
    %394 = vector.load %arg19[%c6_273, %c3_274, %c0_275] : memref<8x4x49xf32, #tpu.memory_space<vmem>>, vector<1x1x49xf32>
    %395 = vector.shape_cast %394 : vector<1x1x49xf32> to vector<1x49xf32>
    %396 = vector.shape_cast %393 : vector<1x49xf32> to vector<1x1x49xf32>
    tpu.vector_store %arg19[%c6_273, %c3_274, %c0_275], %396 {strides = array<i32>} : memref<8x4x49xf32, #tpu.memory_space<vmem>>, vector<1x1x49xf32>,
    %397 = vector.extract_strided_slice %284 {offsets = [7, 0], sizes = [1, 49], strides = [1, 1]} : vector<8x196xf32> to vector<1x49xf32>
    %c7_276 = arith.constant 7 : index
    %c0_277 = arith.constant 0 : index
    %c0_278 = arith.constant 0 : index
    %398 = vector.load %arg19[%c7_276, %c0_277, %c0_278] : memref<8x4x49xf32, #tpu.memory_space<vmem>>, vector<1x1x49xf32>
    %399 = vector.shape_cast %398 : vector<1x1x49xf32> to vector<1x49xf32>
    %400 = vector.shape_cast %397 : vector<1x49xf32> to vector<1x1x49xf32>
    tpu.vector_store %arg19[%c7_276, %c0_277, %c0_278], %400 {strides = array<i32>} : memref<8x4x49xf32, #tpu.memory_space<vmem>>, vector<1x1x49xf32>,
    %401 = vector.extract_strided_slice %284 {offsets = [7, 49], sizes = [1, 49], strides = [1, 1]} : vector<8x196xf32> to vector<1x49xf32>
    %c7_279 = arith.constant 7 : index
    %c1_280 = arith.constant 1 : index
    %c0_281 = arith.constant 0 : index
    %402 = vector.load %arg19[%c7_279, %c1_280, %c0_281] : memref<8x4x49xf32, #tpu.memory_space<vmem>>, vector<1x1x49xf32>
    %403 = vector.shape_cast %402 : vector<1x1x49xf32> to vector<1x49xf32>
    %404 = vector.shape_cast %401 : vector<1x49xf32> to vector<1x1x49xf32>
    tpu.vector_store %arg19[%c7_279, %c1_280, %c0_281], %404 {strides = array<i32>} : memref<8x4x49xf32, #tpu.memory_space<vmem>>, vector<1x1x49xf32>,
    %405 = vector.extract_strided_slice %284 {offsets = [7, 98], sizes = [1, 49], strides = [1, 1]} : vector<8x196xf32> to vector<1x49xf32>
    %c7_282 = arith.constant 7 : index
    %c2_283 = arith.constant 2 : index
    %c0_284 = arith.constant 0 : index
    %406 = vector.load %arg19[%c7_282, %c2_283, %c0_284] : memref<8x4x49xf32, #tpu.memory_space<vmem>>, vector<1x1x49xf32>
    %407 = vector.shape_cast %406 : vector<1x1x49xf32> to vector<1x49xf32>
    %408 = vector.shape_cast %405 : vector<1x49xf32> to vector<1x1x49xf32>
    tpu.vector_store %arg19[%c7_282, %c2_283, %c0_284], %408 {strides = array<i32>} : memref<8x4x49xf32, #tpu.memory_space<vmem>>, vector<1x1x49xf32>,
    %409 = vector.extract_strided_slice %284 {offsets = [7, 147], sizes = [1, 49], strides = [1, 1]} : vector<8x196xf32> to vector<1x49xf32>
    %c7_285 = arith.constant 7 : index
    %c3_286 = arith.constant 3 : index
    %c0_287 = arith.constant 0 : index
    %410 = vector.load %arg19[%c7_285, %c3_286, %c0_287] : memref<8x4x49xf32, #tpu.memory_space<vmem>>, vector<1x1x49xf32>
    %411 = vector.shape_cast %410 : vector<1x1x49xf32> to vector<1x49xf32>
    %412 = vector.shape_cast %409 : vector<1x49xf32> to vector<1x1x49xf32>
    tpu.vector_store %arg19[%c7_285, %c3_286, %c0_287], %412 {strides = array<i32>} : memref<8x4x49xf32, #tpu.memory_space<vmem>>, vector<1x1x49xf32>,
    %cst_288 = arith.constant 0.000000e+00 : f32
    %413 = vector.broadcast %cst_288 : f32 to vector<4x64xf32>
    %c0_289 = arith.constant 0 : index
    %c0_290 = arith.constant 0 : index
    %c0_291 = arith.constant 0 : index
    %414 = vector.load %arg19[%c0_289, %c0_290, %c0_291] : memref<8x4x49xf32, #tpu.memory_space<vmem>>, vector<1x4x49xf32>
    %415 = vector.shape_cast %414 : vector<1x4x49xf32> to vector<4x49xf32>
    %c0_292 = arith.constant 0 : index
    %c0_293 = arith.constant 0 : index
    %416 = vector.load %arg11[%c0_292, %c0_293] : memref<392x64xf32, #tpu.memory_space<vmem>>, vector<49x64xf32>
    %cst_294 = arith.constant dense<0.000000e+00> : vector<4x64xf32>
    %417 = tpu.matmul %415, %416, %cst_294 {dimension_numbers = #tpu.dot_dimension_numbers<[1], [0], [0], [1], [0, 0, 1, 1], [], []>} : vector<4x49xf32>, vector<49x64xf32>, vector<4x64xf32> -> vector<4x64xf32>
    %418 = arith.addf %413, %417 : vector<4x64xf32>
    %c1_295 = arith.constant 1 : index
    %c0_296 = arith.constant 0 : index
    %c0_297 = arith.constant 0 : index
    %419 = vector.load %arg19[%c1_295, %c0_296, %c0_297] : memref<8x4x49xf32, #tpu.memory_space<vmem>>, vector<1x4x49xf32>
    %420 = vector.shape_cast %419 : vector<1x4x49xf32> to vector<4x49xf32>
    %c49 = arith.constant 49 : index
    %c0_298 = arith.constant 0 : index
    %421 = vector.load %arg11[%c49, %c0_298] : memref<392x64xf32, #tpu.memory_space<vmem>>, vector<49x64xf32>
    %cst_299 = arith.constant dense<0.000000e+00> : vector<4x64xf32>
    %422 = tpu.matmul %420, %421, %cst_299 {dimension_numbers = #tpu.dot_dimension_numbers<[1], [0], [0], [1], [0, 0, 1, 1], [], []>} : vector<4x49xf32>, vector<49x64xf32>, vector<4x64xf32> -> vector<4x64xf32>
    %423 = arith.addf %418, %422 : vector<4x64xf32>
    %c2_300 = arith.constant 2 : index
    %c0_301 = arith.constant 0 : index
    %c0_302 = arith.constant 0 : index
    %424 = vector.load %arg19[%c2_300, %c0_301, %c0_302] : memref<8x4x49xf32, #tpu.memory_space<vmem>>, vector<1x4x49xf32>
    %425 = vector.shape_cast %424 : vector<1x4x49xf32> to vector<4x49xf32>
    %c98 = arith.constant 98 : index
    %c0_303 = arith.constant 0 : index
    %426 = vector.load %arg11[%c98, %c0_303] : memref<392x64xf32, #tpu.memory_space<vmem>>, vector<49x64xf32>
    %cst_304 = arith.constant dense<0.000000e+00> : vector<4x64xf32>
    %427 = tpu.matmul %425, %426, %cst_304 {dimension_numbers = #tpu.dot_dimension_numbers<[1], [0], [0], [1], [0, 0, 1, 1], [], []>} : vector<4x49xf32>, vector<49x64xf32>, vector<4x64xf32> -> vector<4x64xf32>
    %428 = arith.addf %423, %427 : vector<4x64xf32>
    %c3_305 = arith.constant 3 : index
    %c0_306 = arith.constant 0 : index
    %c0_307 = arith.constant 0 : index
    %429 = vector.load %arg19[%c3_305, %c0_306, %c0_307] : memref<8x4x49xf32, #tpu.memory_space<vmem>>, vector<1x4x49xf32>
    %430 = vector.shape_cast %429 : vector<1x4x49xf32> to vector<4x49xf32>
    %c147 = arith.constant 147 : index
    %c0_308 = arith.constant 0 : index
    %431 = vector.load %arg11[%c147, %c0_308] : memref<392x64xf32, #tpu.memory_space<vmem>>, vector<49x64xf32>
    %cst_309 = arith.constant dense<0.000000e+00> : vector<4x64xf32>
    %432 = tpu.matmul %430, %431, %cst_309 {dimension_numbers = #tpu.dot_dimension_numbers<[1], [0], [0], [1], [0, 0, 1, 1], [], []>} : vector<4x49xf32>, vector<49x64xf32>, vector<4x64xf32> -> vector<4x64xf32>
    %433 = arith.addf %428, %432 : vector<4x64xf32>
    %c4_310 = arith.constant 4 : index
    %c0_311 = arith.constant 0 : index
    %c0_312 = arith.constant 0 : index
    %434 = vector.load %arg19[%c4_310, %c0_311, %c0_312] : memref<8x4x49xf32, #tpu.memory_space<vmem>>, vector<1x4x49xf32>
    %435 = vector.shape_cast %434 : vector<1x4x49xf32> to vector<4x49xf32>
    %c196 = arith.constant 196 : index
    %c0_313 = arith.constant 0 : index
    %436 = vector.load %arg11[%c196, %c0_313] : memref<392x64xf32, #tpu.memory_space<vmem>>, vector<49x64xf32>
    %cst_314 = arith.constant dense<0.000000e+00> : vector<4x64xf32>
    %437 = tpu.matmul %435, %436, %cst_314 {dimension_numbers = #tpu.dot_dimension_numbers<[1], [0], [0], [1], [0, 0, 1, 1], [], []>} : vector<4x49xf32>, vector<49x64xf32>, vector<4x64xf32> -> vector<4x64xf32>
    %438 = arith.addf %433, %437 : vector<4x64xf32>
    %c5_315 = arith.constant 5 : index
    %c0_316 = arith.constant 0 : index
    %c0_317 = arith.constant 0 : index
    %439 = vector.load %arg19[%c5_315, %c0_316, %c0_317] : memref<8x4x49xf32, #tpu.memory_space<vmem>>, vector<1x4x49xf32>
    %440 = vector.shape_cast %439 : vector<1x4x49xf32> to vector<4x49xf32>
    %c245 = arith.constant 245 : index
    %c0_318 = arith.constant 0 : index
    %441 = vector.load %arg11[%c245, %c0_318] : memref<392x64xf32, #tpu.memory_space<vmem>>, vector<49x64xf32>
    %cst_319 = arith.constant dense<0.000000e+00> : vector<4x64xf32>
    %442 = tpu.matmul %440, %441, %cst_319 {dimension_numbers = #tpu.dot_dimension_numbers<[1], [0], [0], [1], [0, 0, 1, 1], [], []>} : vector<4x49xf32>, vector<49x64xf32>, vector<4x64xf32> -> vector<4x64xf32>
    %443 = arith.addf %438, %442 : vector<4x64xf32>
    %c6_320 = arith.constant 6 : index
    %c0_321 = arith.constant 0 : index
    %c0_322 = arith.constant 0 : index
    %444 = vector.load %arg19[%c6_320, %c0_321, %c0_322] : memref<8x4x49xf32, #tpu.memory_space<vmem>>, vector<1x4x49xf32>
    %445 = vector.shape_cast %444 : vector<1x4x49xf32> to vector<4x49xf32>
    %c294 = arith.constant 294 : index
    %c0_323 = arith.constant 0 : index
    %446 = vector.load %arg11[%c294, %c0_323] : memref<392x64xf32, #tpu.memory_space<vmem>>, vector<49x64xf32>
    %cst_324 = arith.constant dense<0.000000e+00> : vector<4x64xf32>
    %447 = tpu.matmul %445, %446, %cst_324 {dimension_numbers = #tpu.dot_dimension_numbers<[1], [0], [0], [1], [0, 0, 1, 1], [], []>} : vector<4x49xf32>, vector<49x64xf32>, vector<4x64xf32> -> vector<4x64xf32>
    %448 = arith.addf %443, %447 : vector<4x64xf32>
    %c7_325 = arith.constant 7 : index
    %c0_326 = arith.constant 0 : index
    %c0_327 = arith.constant 0 : index
    %449 = vector.load %arg19[%c7_325, %c0_326, %c0_327] : memref<8x4x49xf32, #tpu.memory_space<vmem>>, vector<1x4x49xf32>
    %450 = vector.shape_cast %449 : vector<1x4x49xf32> to vector<4x49xf32>
    %c343 = arith.constant 343 : index
    %c0_328 = arith.constant 0 : index
    %451 = vector.load %arg11[%c343, %c0_328] : memref<392x64xf32, #tpu.memory_space<vmem>>, vector<49x64xf32>
    %cst_329 = arith.constant dense<0.000000e+00> : vector<4x64xf32>
    %452 = tpu.matmul %450, %451, %cst_329 {dimension_numbers = #tpu.dot_dimension_numbers<[1], [0], [0], [1], [0, 0, 1, 1], [], []>} : vector<4x49xf32>, vector<49x64xf32>, vector<4x64xf32> -> vector<4x64xf32>
    %453 = arith.addf %448, %452 : vector<4x64xf32>
    %c0_330 = arith.constant 0 : index
    %c0_331 = arith.constant 0 : index
    %454 = vector.load %arg12[%c0_330, %c0_331] : memref<1x64xf32, #tpu.memory_space<vmem>>, vector<1x64xf32>
    %455 = vector.broadcast %454 : vector<1x64xf32> to vector<4x64xf32>
    %456 = arith.addf %453, %455 : vector<4x64xf32>
    %cst_332 = arith.constant 0.000000e+00 : f32
    %457 = vector.broadcast %cst_332 : f32 to vector<4x64xf32>
    %458 = arith.maximumf %456, %457 : vector<4x64xf32>
    %c0_333 = arith.constant 0 : index
    %c0_334 = arith.constant 0 : index
    %459 = vector.load %arg13[%c0_333, %c0_334] : memref<64x128xf32, #tpu.memory_space<vmem>>, vector<64x128xf32>
    %cst_335 = arith.constant dense<0.000000e+00> : vector<4x128xf32>
    %460 = tpu.matmul %458, %459, %cst_335 {dimension_numbers = #tpu.dot_dimension_numbers<[1], [0], [0], [1], [0, 0, 1, 1], [], []>} : vector<4x64xf32>, vector<64x128xf32>, vector<4x128xf32> -> vector<4x128xf32>
    %c0_336 = arith.constant 0 : index
    %c0_337 = arith.constant 0 : index
    %461 = vector.load %arg14[%c0_336, %c0_337] : memref<1x128xf32, #tpu.memory_space<vmem>>, vector<1x128xf32>
    %462 = vector.broadcast %461 : vector<1x128xf32> to vector<4x128xf32>
    %463 = arith.addf %460, %462 : vector<4x128xf32>
    %c0_338 = arith.constant 0 : index
    %c0_339 = arith.constant 0 : index
    %464 = vector.load %arg15[%c0_338, %c0_339] : memref<128x128xf32, #tpu.memory_space<vmem>>, vector<128x128xf32>
    %cst_340 = arith.constant dense<0.000000e+00> : vector<4x128xf32>
    %465 = tpu.matmul %463, %464, %cst_340 {dimension_numbers = #tpu.dot_dimension_numbers<[1], [0], [0], [1], [0, 0, 1, 1], [], []>} : vector<4x128xf32>, vector<128x128xf32>, vector<4x128xf32> -> vector<4x128xf32>
    %c0_341 = arith.constant 0 : index
    %c0_342 = arith.constant 0 : index
    %466 = vector.load %arg16[%c0_341, %c0_342] : memref<1x128xf32, #tpu.memory_space<vmem>>, vector<1x128xf32>
    %467 = vector.broadcast %466 : vector<1x128xf32> to vector<4x128xf32>
    %468 = arith.addf %465, %467 : vector<4x128xf32>
    %469 = arith.addf %463, %468 : vector<4x128xf32>
    %c0_343 = arith.constant 0 : index
    %c0_344 = arith.constant 0 : index
    %470 = vector.load %arg17[%c0_343, %c0_344] : memref<4x128xf32, #tpu.memory_space<vmem>>, vector<4x128xf32>
    tpu.vector_store %arg17[%c0_343, %c0_344], %469 {strides = array<i32>} : memref<4x128xf32, #tpu.memory_space<vmem>>, vector<4x128xf32>,
    return
  }
  func.func @transform_0(%arg0: i32) -> (i32, i32, i32) {
    %c0_i32 = arith.constant 0 : i32
    %c0_i32_0 = arith.constant 0 : i32
    %c0_i32_1 = arith.constant 0 : i32
    return %arg0, %c0_i32, %c0_i32_0 : i32, i32, i32
  }
  func.func @transform_1(%arg0: i32) -> (i32, i32) {
    %c0_i32 = arith.constant 0 : i32
    %c0_i32_0 = arith.constant 0 : i32
    %c0_i32_1 = arith.constant 0 : i32
    return %c0_i32, %c0_i32_0 : i32, i32
  }
  func.func @transform_2(%arg0: i32) -> (i32, i32) {
    %c0_i32 = arith.constant 0 : i32
    %c0_i32_0 = arith.constant 0 : i32
    %c0_i32_1 = arith.constant 0 : i32
    return %c0_i32, %c0_i32_0 : i32, i32
  }
  func.func @transform_3(%arg0: i32) -> (i32, i32) {
    %c0_i32 = arith.constant 0 : i32
    %c0_i32_0 = arith.constant 0 : i32
    %c0_i32_1 = arith.constant 0 : i32
    return %c0_i32, %c0_i32_0 : i32, i32
  }
  func.func @transform_4(%arg0: i32) -> (i32, i32) {
    %c0_i32 = arith.constant 0 : i32
    %c0_i32_0 = arith.constant 0 : i32
    %c0_i32_1 = arith.constant 0 : i32
    return %c0_i32, %c0_i32_0 : i32, i32
  }
  func.func @transform_5(%arg0: i32) -> (i32, i32) {
    %c0_i32 = arith.constant 0 : i32
    %c0_i32_0 = arith.constant 0 : i32
    %c0_i32_1 = arith.constant 0 : i32
    return %c0_i32, %c0_i32_0 : i32, i32
  }
  func.func @transform_6(%arg0: i32) -> (i32, i32) {
    %c0_i32 = arith.constant 0 : i32
    %c0_i32_0 = arith.constant 0 : i32
    %c0_i32_1 = arith.constant 0 : i32
    return %c0_i32, %c0_i32_0 : i32, i32
  }
  func.func @transform_7(%arg0: i32) -> (i32, i32) {
    %c0_i32 = arith.constant 0 : i32
    %c0_i32_0 = arith.constant 0 : i32
    %c0_i32_1 = arith.constant 0 : i32
    return %c0_i32, %c0_i32_0 : i32, i32
  }
  func.func @transform_8(%arg0: i32) -> (i32, i32) {
    %c0_i32 = arith.constant 0 : i32
    %c0_i32_0 = arith.constant 0 : i32
    %c0_i32_1 = arith.constant 0 : i32
    return %c0_i32, %c0_i32_0 : i32, i32
  }
  func.func @transform_9(%arg0: i32) -> (i32, i32) {
    %c0_i32 = arith.constant 0 : i32
    %c0_i32_0 = arith.constant 0 : i32
    %c0_i32_1 = arith.constant 0 : i32
    return %c0_i32, %c0_i32_0 : i32, i32
  }
  func.func @transform_10(%arg0: i32) -> (i32, i32) {
    %c0_i32 = arith.constant 0 : i32
    %c0_i32_0 = arith.constant 0 : i32
    %c0_i32_1 = arith.constant 0 : i32
    return %c0_i32, %c0_i32_0 : i32, i32
  }
  func.func @transform_11(%arg0: i32) -> (i32, i32) {
    %c0_i32 = arith.constant 0 : i32
    %c0_i32_0 = arith.constant 0 : i32
    %c0_i32_1 = arith.constant 0 : i32
    return %c0_i32, %c0_i32_0 : i32, i32
  }
  func.func @transform_12(%arg0: i32) -> (i32, i32) {
    %c0_i32 = arith.constant 0 : i32
    %c0_i32_0 = arith.constant 0 : i32
    %c0_i32_1 = arith.constant 0 : i32
    return %c0_i32, %c0_i32_0 : i32, i32
  }
  func.func @transform_13(%arg0: i32) -> (i32, i32) {
    %c0_i32 = arith.constant 0 : i32
    %c0_i32_0 = arith.constant 0 : i32
    %c0_i32_1 = arith.constant 0 : i32
    return %c0_i32, %c0_i32_0 : i32, i32
  }
  func.func @transform_14(%arg0: i32) -> (i32, i32) {
    %c0_i32 = arith.constant 0 : i32
    %c0_i32_0 = arith.constant 0 : i32
    %c0_i32_1 = arith.constant 0 : i32
    return %c0_i32, %c0_i32_0 : i32, i32
  }
  func.func @transform_15(%arg0: i32) -> (i32, i32) {
    %c0_i32 = arith.constant 0 : i32
    %c0_i32_0 = arith.constant 0 : i32
    %c0_i32_1 = arith.constant 0 : i32
    return %c0_i32, %c0_i32_0 : i32, i32
  }
  func.func @transform_16(%arg0: i32) -> (i32, i32) {
    %c0_i32 = arith.constant 0 : i32
    %c0_i32_0 = arith.constant 0 : i32
    return %arg0, %c0_i32 : i32, i32
  }
}

</mosaic_0001>

<llo_original>
// kernel: multipos3d_track_head_forward.1
$region0: #{multipos3d_track_head_forward.1}
  #allocation0 [shape = 'u32[]', space=smem, size = 0x4, offset = 0x4, fixed_abs, tag = 'smem constant byte address 0x4 - core index']
  #allocation1 [shape = 'u32[144,128]{1,0:T(1,128)}', space=vmem, size = 0x12000, scoped, tag = 'internal scratch']
  #allocation2 [shape = 'f32[8,212]{1,0:T(8,128)}', space=vmem, size = 0x2000, scoped, tag = 'scratch operand']
  #allocation3 [shape = 'f32[8,4,49]{2,1,0:T(4,128)}', space=vmem, size = 0x4000, scoped, tag = 'scratch operand']
  %s0 = inlined_call_operand.vmem [shape: f32[1,8,196], index: 0, kind: input, shape index: {}]
  %s1 = inlined_call_operand.vmem [shape: f32[9,196], index: 1, kind: input, shape index: {}]
  %s2 = inlined_call_operand.vmem [shape: f32[8,72], index: 2, kind: input, shape index: {}]
  %s3 = inlined_call_operand.vmem [shape: f32[8,1], index: 3, kind: input, shape index: {}]
  %s4 = inlined_call_operand.vmem [shape: f32[8,72], index: 4, kind: input, shape index: {}]
  %s5 = inlined_call_operand.vmem [shape: f32[8,1], index: 5, kind: input, shape index: {}]
  %s6 = inlined_call_operand.vmem [shape: f32[8,72], index: 6, kind: input, shape index: {}]
  %s7 = inlined_call_operand.vmem [shape: f32[8,1], index: 7, kind: input, shape index: {}]
  %s8 = inlined_call_operand.vmem [shape: f32[8,72], index: 8, kind: input, shape index: {}]
  %s9 = inlined_call_operand.vmem [shape: f32[8,1], index: 9, kind: input, shape index: {}]
  %s10 = inlined_call_operand.vmem [shape: f32[392,64], index: 10, kind: input, shape index: {}]
  %s11 = inlined_call_operand.vmem [shape: f32[1,64], index: 11, kind: input, shape index: {}]
  %s12 = inlined_call_operand.vmem [shape: f32[64,128], index: 12, kind: input, shape index: {}]
  %s13 = inlined_call_operand.vmem [shape: f32[1,128], index: 13, kind: input, shape index: {}]
  %s14 = inlined_call_operand.vmem [shape: f32[128,128], index: 14, kind: input, shape index: {}]
  %s15 = inlined_call_operand.vmem [shape: f32[1,128], index: 15, kind: input, shape index: {}]
  %s16 = inlined_call_operand.vmem [shape: f32[4,128], index: 16, kind: output, shape index: {}]
  %s17 = sld [smem:[#allocation0]]
  $region74: #{multipos3d_track_head_forward.1} parent=0
    _
  %s19 = ssub.s32 1, %s17
  %s20 = scalar_select 0, %s19, %s17
  // Predicated region
  $region2: #{multipos3d_track_head_forward.1} parent=0 // pred_check
    _
  $region3: #{multipos3d_track_head_forward.1} parent=0 // pred_check_branch
    %22 = sbr.rel (0) target = $region5
  $region4: #{multipos3d_track_head_forward.1} parent=0 // pred_region
    _
  $region5: #{multipos3d_track_head_forward.1} parent=0 // pred_fallthru
    _
  // Predicated region
  $region6: #{multipos3d_track_head_forward.1} parent=0 // pred_check
    _
  $region7: #{multipos3d_track_head_forward.1} parent=0 // pred_check_branch
    %24 = sbr.rel (0) target = $region9
  $region8: #{multipos3d_track_head_forward.1} parent=0 // pred_region
    _
  $region9: #{multipos3d_track_head_forward.1} parent=0 // pred_fallthru
    _
  // Predicated region
  $region10: #{multipos3d_track_head_forward.1} parent=0 // pred_check
    _
  $region11: #{multipos3d_track_head_forward.1} parent=0 // pred_check_branch
    %26 = sbr.rel (0) target = $region13
  $region12: #{multipos3d_track_head_forward.1} parent=0 // pred_region
    _
  $region13: #{multipos3d_track_head_forward.1} parent=0 // pred_fallthru
    _
  // Predicated region
  $region14: #{multipos3d_track_head_forward.1} parent=0 // pred_check
    _
  $region15: #{multipos3d_track_head_forward.1} parent=0 // pred_check_branch
    %28 = sbr.rel (0) target = $region17
  $region16: #{multipos3d_track_head_forward.1} parent=0 // pred_region
    _
  $region17: #{multipos3d_track_head_forward.1} parent=0 // pred_fallthru
    _
  // Predicated region
  $region18: #{multipos3d_track_head_forward.1} parent=0 // pred_check
    _
  $region19: #{multipos3d_track_head_forward.1} parent=0 // pred_check_branch
    %30 = sbr.rel (0) target = $region21
  $region20: #{multipos3d_track_head_forward.1} parent=0 // pred_region
    _
  $region21: #{multipos3d_track_head_forward.1} parent=0 // pred_fallthru
    _
  // Predicated region
  $region22: #{multipos3d_track_head_forward.1} parent=0 // pred_check
    _
  $region23: #{multipos3d_track_head_forward.1} parent=0 // pred_check_branch
    %32 = sbr.rel (0) target = $region25
  $region24: #{multipos3d_track_head_forward.1} parent=0 // pred_region
    _
  $region25: #{multipos3d_track_head_forward.1} parent=0 // pred_fallthru
    _
  // Predicated region
  $region26: #{multipos3d_track_head_forward.1} parent=0 // pred_check
    _
  $region27: #{multipos3d_track_head_forward.1} parent=0 // pred_check_branch
    %34 = sbr.rel (0) target = $region29
  $region28: #{multipos3d_track_head_forward.1} parent=0 // pred_region
    _
  $region29: #{multipos3d_track_head_forward.1} parent=0 // pred_fallthru
    _
  // Predicated region
  $region30: #{multipos3d_track_head_forward.1} parent=0 // pred_check
    _
  $region31: #{multipos3d_track_head_forward.1} parent=0 // pred_check_branch
    %36 = sbr.rel (0) target = $region33
  $region32: #{multipos3d_track_head_forward.1} parent=0 // pred_region
    _
  $region33: #{multipos3d_track_head_forward.1} parent=0 // pred_fallthru
    _
  // Predicated region
  $region34: #{multipos3d_track_head_forward.1} parent=0 // pred_check
    _
  $region35: #{multipos3d_track_head_forward.1} parent=0 // pred_check_branch
    %38 = sbr.rel (0) target = $region37
  $region36: #{multipos3d_track_head_forward.1} parent=0 // pred_region
    _
  $region37: #{multipos3d_track_head_forward.1} parent=0 // pred_fallthru
    _
  // Predicated region
  $region38: #{multipos3d_track_head_forward.1} parent=0 // pred_check
    _
  $region39: #{multipos3d_track_head_forward.1} parent=0 // pred_check_branch
    %40 = sbr.rel (0) target = $region41
  $region40: #{multipos3d_track_head_forward.1} parent=0 // pred_region
    _
  $region41: #{multipos3d_track_head_forward.1} parent=0 // pred_fallthru
    _
  // Predicated region
  $region42: #{multipos3d_track_head_forward.1} parent=0 // pred_check
    _
  $region43: #{multipos3d_track_head_forward.1} parent=0 // pred_check_branch
    %42 = sbr.rel (0) target = $region45
  $region44: #{multipos3d_track_head_forward.1} parent=0 // pred_region
    _
  $region45: #{multipos3d_track_head_forward.1} parent=0 // pred_fallthru
    _
  // Predicated region
  $region46: #{multipos3d_track_head_forward.1} parent=0 // pred_check
    _
  $region47: #{multipos3d_track_head_forward.1} parent=0 // pred_check_branch
    %44 = sbr.rel (0) target = $region49
  $region48: #{multipos3d_track_head_forward.1} parent=0 // pred_region
    _
  $region49: #{multipos3d_track_head_forward.1} parent=0 // pred_fallthru
    _
  // Predicated region
  $region50: #{multipos3d_track_head_forward.1} parent=0 // pred_check
    _
  $region51: #{multipos3d_track_head_forward.1} parent=0 // pred_check_branch
    %46 = sbr.rel (0) target = $region53
  $region52: #{multipos3d_track_head_forward.1} parent=0 // pred_region
    _
  $region53: #{multipos3d_track_head_forward.1} parent=0 // pred_fallthru
    _
  // Predicated region
  $region54: #{multipos3d_track_head_forward.1} parent=0 // pred_check
    _
  $region55: #{multipos3d_track_head_forward.1} parent=0 // pred_check_branch
    %48 = sbr.rel (0) target = $region57
  $region56: #{multipos3d_track_head_forward.1} parent=0 // pred_region
    _
  $region57: #{multipos3d_track_head_forward.1} parent=0 // pred_fallthru
    _
  // Predicated region
  $region58: #{multipos3d_track_head_forward.1} parent=0 // pred_check
    _
  $region59: #{multipos3d_track_head_forward.1} parent=0 // pred_check_branch
    %50 = sbr.rel (0) target = $region61
  $region60: #{multipos3d_track_head_forward.1} parent=0 // pred_region
    _
  $region61: #{multipos3d_track_head_forward.1} parent=0 // pred_fallthru
    _
  // Predicated region
  $region62: #{multipos3d_track_head_forward.1} parent=0 // pred_check
    _
  $region63: #{multipos3d_track_head_forward.1} parent=0 // pred_check_branch
    %52 = sbr.rel (0) target = $region65
  $region64: #{multipos3d_track_head_forward.1} parent=0 // pred_region
    _
  $region65: #{multipos3d_track_head_forward.1} parent=0 // pred_fallthru
    _
  %53 = vst [vmem:[#allocation2] sm:$0xff] 0.0
  %vm54 = vcmask 687104
  %55 = vst.msk [vmem:[#allocation2 + $0x8] sm:$0xff] %vm54, 0.0
  %v56 = vld [vmem:[%s1] sm:$0xff]
  %v57 = vld [vmem:[%s1 + $0x8] sm:$0xff]
  %v58 = vld [vmem:[%s1 + $0x10] sm:$0x1]
  %v59 = vld [vmem:[%s1 + $0x18] sm:$0x1]
  %v60 = vld [vmem:[%s0] sm:$0xff]
  %v61 = vld [vmem:[%s0 + $0x8] sm:$0xff]
  %64 = vrot.lane.b32.xlu0 %v60, 8
  %v65 = vpop.permute.xlu0 %64
  %66 = vrot.lane.b32.xlu0 %v61, 8
  %v67 = vpop.permute.xlu0 %66
  %vm68 = vcmask 64512
  %v69 = vsel %vm68, %v65, %v67
  %vm72 = vcmask 1047616
  %73 = vst.msk [vmem:[#allocation2] sm:$0xff] %vm72, %v65
  %vm74 = vcmask 621568
  %75 = vst.msk [vmem:[#allocation2 + $0x8] sm:$0xff] %vm74, %v69
  %v76 = vld [vmem:[#allocation2] sm:$0xff]
  %v77 = vld [vmem:[#allocation2 + $0x8] sm:$0xff]
  %v78 = vlaneseq
  %v79 = vshrl.u32 %v78, 7
  %v80 = vsub.s32 0, %v79
  %v81 = vrot.slane %v56, %v80
  %v82 = vlaneseq
  %v83 = vshrl.u32 %v82, 7
  %v84 = vsub.s32 0, %v83
  %v85 = vrot.slane %v57, %v84
  %v86 = vmul.f32 %v76, %v81
  %v87 = vmul.f32 %v77, %v85
  %v88 = vld [vmem:[%s2] sm:$0xff]
  %v89 = vlaneseq
  %v90 = vshrl.u32 %v89, 7
  %v91 = vsub.s32 1, %v90
  %v92 = vrot.slane %v56, %v91
  %v93 = vlaneseq
  %v94 = vshrl.u32 %v93, 7
  %v95 = vsub.s32 1, %v94
  %v96 = vrot.slane %v57, %v95
  %99 = vrot.lane.b32.xlu0 %v92, 1
  %v100 = vpop.permute.xlu0 %99
  %101 = vrot.lane.b32.xlu0 %v96, 1
  %v102 = vpop.permute.xlu0 %101
  %vm103 = vcmask 7168
  %v104 = vsel %vm103, %v100, %v102
  %v107 = vmul.f32 %v76, %v100
  %v108 = vmul.f32 %v77, %v104
  %110 = vrot.lane.b32.xlu0 %v88, 120
  %v111 = vpop.permute.xlu0 %110
  %114 = vrot.lane.b32.xlu0 %v107, 127
  %v115 = vpop.permute.xlu0 %114
  %116 = vrot.lane.b32.xlu0 %v108, 127
  %v117 = vpop.permute.xlu0 %116
  %vm118 = vcmask 1039360
  %v119 = vsel %vm118, %v115, %v117
  %v122 = vsel %vm68, %v111, 0
  %124 = vmatprep.subr.mxu0 %v117
  %125 = vmatpush1.msra.mxu0 %v119
  %126 = vmatprep.subr.mxu0 0.0
  %127 = vmatpush1.msra.mxu0 0.0
  %128 = vmatprep.subr.mxu0 0.0
  %129 = vmatpush1.msra.mxu0 0.0
  %130 = vmatprep.subr.mxu0 0.0
  %131 = vmatpush1.msra.mxu0 0.0
  %132 = vmatprep.subr.mxu0 0.0
  %133 = vmatpush1.msra.mxu0 0.0
  %134 = vmatprep.subr.mxu0 0.0
  %135 = vmatpush1.msra.mxu0 0.0
  %136 = vmatprep.subr.mxu0 0.0
  %137 = vmatpush1.msra.mxu0 0.0
  %138 = vmatprep.subr.mxu0 0.0
  %139 = vmatpush1.msra.mxu0 0.0
  %140 = vmatprep.subr.mxu0 0.0
  %141 = vmatpush1.msra.mxu0 0.0
  %142 = vmatprep.subr.mxu0 0.0
  %143 = vmatpush1.msra.mxu0 0.0
  %144 = vmatprep.subr.mxu0 0.0
  %145 = vmatpush1.msra.mxu0 0.0
  %146 = vmatprep.subr.mxu0 0.0
  %147 = vmatpush1.msra.mxu0 0.0
  %148 = vmatprep.subr.mxu0 0.0
  %149 = vmatpush1.msra.mxu0 0.0
  %150 = vmatprep.subr.mxu0 0.0
  %151 = vmatpush1.msra.mxu0 0.0
  %152 = vmatprep.subr.mxu0 0.0
  %153 = vmatpush1.msra.mxu0 0.0
  %154 = vmatprep.subr.mxu0 0.0
  %155 = vmatpush1.msra.mxu0 0.0
  %156 = vmatprep.subr.mxu0 0.0
  %157 = vmatpush1.msra.mxu0 0.0
  %158 = vmatprep.subr.mxu0 0.0
  %159 = vmatpush1.msra.mxu0 0.0
  %160 = vmatprep.subr.mxu0 0.0
  %161 = vmatpush1.msra.mxu0 0.0
  %162 = vmatprep.subr.mxu0 0.0
  %163 = vmatpush1.msra.mxu0 0.0
  %164 = vmatprep.subr.mxu0 0.0
  %165 = vmatpush1.msra.mxu0 0.0
  %166 = vmatprep.subr.mxu0 0.0
  %167 = vmatpush1.msra.mxu0 0.0
  %168 = vmatprep.subr.mxu0 0.0
  %169 = vmatpush1.msra.mxu0 0.0
  %170 = vmatprep.subr.mxu0 0.0
  %171 = vmatpush1.msra.mxu0 0.0
  %172 = vmatprep.subr.mxu0 0.0
  %173 = vmatpush1.msra.mxu0 0.0
  %174 = vmatprep.subr.mxu0 0.0
  %175 = vmatpush1.msra.mxu0 0.0
  %176 = vmatprep.subr.mxu0 0.0
  %177 = vmatpush1.msra.mxu0 0.0
  %178 = vmatprep.subr.mxu0 0.0
  %179 = vmatpush1.msra.mxu0 0.0
  %180 = vmatprep.subr.mxu0 0.0
  %181 = vmatpush1.msra.mxu0 0.0
  %182 = vmatprep.subr.mxu0 0.0
  %183 = vmatpush1.msra.mxu0 0.0
  %184 = vmatprep.subr.mxu0 0.0
  %185 = vmatpush1.msra.mxu0 0.0
  %186 = vmatprep.subr.mxu0 0.0
  %187 = vmatpush1.msra.mxu0 0.0
  %188 = vmatprep.mubr.f32.mxu0 0.0
  %189 = vmatmul.mubr.f32.gmra.mrb[0].mxu0 %v122
  %v190 = vpop.f32.mrb[0].mxu0
  %v191 = vadd.f32 0.0, %v190
  %v192 = vpop.f32.mrb[0].mxu0
  %v193 = vadd.f32 0.0, %v192
  %194 = vdwg.mxu0
  %v195 = vsel %vm68, %v88, 0
  %197 = vmatprep.subr.mxu0 %v87
  %198 = vmatpush1.msra.mxu0 %v86
  %199 = vmatprep.subr.mxu0 0.0
  %200 = vmatpush1.msra.mxu0 0.0
  %201 = vmatprep.subr.mxu0 0.0
  %202 = vmatpush1.msra.mxu0 0.0
  %203 = vmatprep.subr.mxu0 0.0
  %204 = vmatpush1.msra.mxu0 0.0
  %205 = vmatprep.subr.mxu0 0.0
  %206 = vmatpush1.msra.mxu0 0.0
  %207 = vmatprep.subr.mxu0 0.0
  %208 = vmatpush1.msra.mxu0 0.0
  %209 = vmatprep.subr.mxu0 0.0
  %210 = vmatpush1.msra.mxu0 0.0
  %211 = vmatprep.subr.mxu0 0.0
  %212 = vmatpush1.msra.mxu0 0.0
  %213 = vmatprep.subr.mxu0 0.0
  %214 = vmatpush1.msra.mxu0 0.0
  %215 = vmatprep.subr.mxu0 0.0
  %216 = vmatpush1.msra.mxu0 0.0
  %217 = vmatprep.subr.mxu0 0.0
  %218 = vmatpush1.msra.mxu0 0.0
  %219 = vmatprep.subr.mxu0 0.0
  %220 = vmatpush1.msra.mxu0 0.0
  %221 = vmatprep.subr.mxu0 0.0
  %222 = vmatpush1.msra.mxu0 0.0
  %223 = vmatprep.subr.mxu0 0.0
  %224 = vmatpush1.msra.mxu0 0.0
  %225 = vmatprep.subr.mxu0 0.0
  %226 = vmatpush1.msra.mxu0 0.0
  %227 = vmatprep.subr.mxu0 0.0
  %228 = vmatpush1.msra.mxu0 0.0
  %229 = vmatprep.subr.mxu0 0.0
  %230 = vmatpush1.msra.mxu0 0.0
  %231 = vmatprep.subr.mxu0 0.0
  %232 = vmatpush1.msra.mxu0 0.0
  %233 = vmatprep.subr.mxu0 0.0
  %234 = vmatpush1.msra.mxu0 0.0
  %235 = vmatprep.subr.mxu0 0.0
  %236 = vmatpush1.msra.mxu0 0.0
  %237 = vmatprep.subr.mxu0 0.0
  %238 = vmatpush1.msra.mxu0 0.0
  %239 = vmatprep.subr.mxu0 0.0
  %240 = vmatpush1.msra.mxu0 0.0
  %241 = vmatprep.subr.mxu0 0.0
  %242 = vmatpush1.msra.mxu0 0.0
  %243 = vmatprep.subr.mxu0 0.0
  %244 = vmatpush1.msra.mxu0 0.0
  %245 = vmatprep.subr.mxu0 0.0
  %246 = vmatpush1.msra.mxu0 0.0
  %247 = vmatprep.subr.mxu0 0.0
  %248 = vmatpush1.msra.mxu0 0.0
  %249 = vmatprep.subr.mxu0 0.0
  %250 = vmatpush1.msra.mxu0 0.0
  %251 = vmatprep.subr.mxu0 0.0
  %252 = vmatpush1.msra.mxu0 0.0
  %253 = vmatprep.subr.mxu0 0.0
  %254 = vmatpush1.msra.mxu0 0.0
  %255 = vmatprep.subr.mxu0 0.0
  %256 = vmatpush1.msra.mxu0 0.0
  %257 = vmatprep.subr.mxu0 0.0
  %258 = vmatpush1.msra.mxu0 0.0
  %259 = vmatprep.subr.mxu0 0.0
  %260 = vmatpush1.msra.mxu0 0.0
  %261 = vmatprep.mubr.f32.mxu0 0.0
  %262 = vmatmul.mubr.f32.gmra.mrb[0].mxu0 %v195
  %v263 = vpop.f32.mrb[0].mxu0
  %v264 = vadd.f32 %v191, %v263
  %v265 = vpop.f32.mrb[0].mxu0
  %v266 = vadd.f32 %v193, %v265
  %267 = vdwg.mxu0
  %v268 = vlaneseq
  %v269 = vshrl.u32 %v268, 7
  %v270 = vsub.s32 2, %v269
  %v271 = vrot.slane %v56, %v270
  %v272 = vlaneseq
  %v273 = vshrl.u32 %v272, 7
  %v274 = vsub.s32 2, %v273
  %v275 = vrot.slane %v57, %v274
  %278 = vrot.lane.b32.xlu0 %v271, 2
  %v279 = vpop.permute.xlu0 %278
  %280 = vrot.lane.b32.xlu0 %v275, 2
  %v281 = vpop.permute.xlu0 %280
  %vm282 = vcmask 15360
  %v283 = vsel %vm282, %v279, %v281
  %v286 = vmul.f32 %v76, %v279
  %v287 = vmul.f32 %v77, %v283
  %288 = vrot.lane.b32.xlu0 %v88, 112
  %v289 = vpop.permute.xlu0 %288
  %292 = vrot.lane.b32.xlu0 %v286, 126
  %v293 = vpop.permute.xlu0 %292
  %294 = vrot.lane.b32.xlu0 %v287, 126
  %v295 = vpop.permute.xlu0 %294
  %vm296 = vcmask 1031168
  %v297 = vsel %vm296, %v293, %v295
  %v300 = vsel %vm68, %v289, 0
  %302 = vmatprep.subr.mxu0 %v295
  %303 = vmatpush1.msra.mxu0 %v297
  %304 = vmatprep.subr.mxu0 0.0
  %305 = vmatpush1.msra.mxu0 0.0
  %306 = vmatprep.subr.mxu0 0.0
  %307 = vmatpush1.msra.mxu0 0.0
  %308 = vmatprep.subr.mxu0 0.0
  %309 = vmatpush1.msra.mxu0 0.0
  %310 = vmatprep.subr.mxu0 0.0
  %311 = vmatpush1.msra.mxu0 0.0
  %312 = vmatprep.subr.mxu0 0.0
  %313 = vmatpush1.msra.mxu0 0.0
  %314 = vmatprep.subr.mxu0 0.0
  %315 = vmatpush1.msra.mxu0 0.0
  %316 = vmatprep.subr.mxu0 0.0
  %317 = vmatpush1.msra.mxu0 0.0
  %318 = vmatprep.subr.mxu0 0.0
  %319 = vmatpush1.msra.mxu0 0.0
  %320 = vmatprep.subr.mxu0 0.0
  %321 = vmatpush1.msra.mxu0 0.0
  %322 = vmatprep.subr.mxu0 0.0
  %323 = vmatpush1.msra.mxu0 0.0
  %324 = vmatprep.subr.mxu0 0.0
  %325 = vmatpush1.msra.mxu0 0.0
  %326 = vmatprep.subr.mxu0 0.0
  %327 = vmatpush1.msra.mxu0 0.0
  %328 = vmatprep.subr.mxu0 0.0
  %329 = vmatpush1.msra.mxu0 0.0
  %330 = vmatprep.subr.mxu0 0.0
  %331 = vmatpush1.msra.mxu0 0.0
  %332 = vmatprep.subr.mxu0 0.0
  %333 = vmatpush1.msra.mxu0 0.0
  %334 = vmatprep.subr.mxu0 0.0
  %335 = vmatpush1.msra.mxu0 0.0
  %336 = vmatprep.subr.mxu0 0.0
  %337 = vmatpush1.msra.mxu0 0.0
  %338 = vmatprep.subr.mxu0 0.0
  %339 = vmatpush1.msra.mxu0 0.0
  %340 = vmatprep.subr.mxu0 0.0
  %341 = vmatpush1.msra.mxu0 0.0
  %342 = vmatprep.subr.mxu0 0.0
  %343 = vmatpush1.msra.mxu0 0.0
  %344 = vmatprep.subr.mxu0 0.0
  %345 = vmatpush1.msra.mxu0 0.0
  %346 = vmatprep.subr.mxu0 0.0
  %347 = vmatpush1.msra.mxu0 0.0
  %348 = vmatprep.subr.mxu0 0.0
  %349 = vmatpush1.msra.mxu0 0.0
  %350 = vmatprep.subr.mxu0 0.0
  %351 = vmatpush1.msra.mxu0 0.0
  %352 = vmatprep.subr.mxu0 0.0
  %353 = vmatpush1.msra.mxu0 0.0
  %354 = vmatprep.subr.mxu0 0.0
  %355 = vmatpush1.msra.mxu0 0.0
  %356 = vmatprep.subr.mxu0 0.0
  %357 = vmatpush1.msra.mxu0 0.0
  %358 = vmatprep.subr.mxu0 0.0
  %359 = vmatpush1.msra.mxu0 0.0
  %360 = vmatprep.subr.mxu0 0.0
  %361 = vmatpush1.msra.mxu0 0.0
  %362 = vmatprep.subr.mxu0 0.0
  %363 = vmatpush1.msra.mxu0 0.0
  %364 = vmatprep.subr.mxu0 0.0
  %365 = vmatpush1.msra.mxu0 0.0
  %366 = vmatprep.mubr.f32.mxu0 0.0
  %367 = vmatmul.mubr.f32.gmra.mrb[0].mxu0 %v300
  %v368 = vpop.f32.mrb[0].mxu0
  %v369 = vadd.f32 0.0, %v368
  %v370 = vpop.f32.mrb[0].mxu0
  %v371 = vadd.f32 0.0, %v370
  %372 = vdwg.mxu0
  %v373 = vadd.f32 %v264, %v369
  %v374 = vadd.f32 %v266, %v371
  %v375 = vlaneseq
  %v376 = vshrl.u32 %v375, 7
  %v377 = vsub.s32 3, %v376
  %v378 = vrot.slane %v56, %v377
  %v379 = vlaneseq
  %v380 = vshrl.u32 %v379, 7
  %v381 = vsub.s32 3, %v380
  %v382 = vrot.slane %v57, %v381
  %385 = vrot.lane.b32.xlu0 %v378, 7
  %v386 = vpop.permute.xlu0 %385
  %387 = vrot.lane.b32.xlu0 %v382, 7
  %v388 = vpop.permute.xlu0 %387
  %vm389 = vcmask 56320
  %v390 = vsel %vm389, %v386, %v388
  %v393 = vmul.f32 %v76, %v386
  %v394 = vmul.f32 %v77, %v390
  %395 = vrot.lane.b32.xlu0 %v88, 104
  %v396 = vpop.permute.xlu0 %395
  %399 = vrot.lane.b32.xlu0 %v393, 121
  %v400 = vpop.permute.xlu0 %399
  %401 = vrot.lane.b32.xlu0 %v394, 121
  %v402 = vpop.permute.xlu0 %401
  %vm403 = vcmask 990208
  %v404 = vsel %vm403, %v400, %v402
  %v407 = vsel %vm68, %v396, 0
  %409 = vmatprep.subr.mxu0 %v402
  %410 = vmatpush1.msra.mxu0 %v404
  %411 = vmatprep.subr.mxu0 0.0
  %412 = vmatpush1.msra.mxu0 0.0
  %413 = vmatprep.subr.mxu0 0.0
  %414 = vmatpush1.msra.mxu0 0.0
  %415 = vmatprep.subr.mxu0 0.0
  %416 = vmatpush1.msra.mxu0 0.0
  %417 = vmatprep.subr.mxu0 0.0
  %418 = vmatpush1.msra.mxu0 0.0
  %419 = vmatprep.subr.mxu0 0.0
  %420 = vmatpush1.msra.mxu0 0.0
  %421 = vmatprep.subr.mxu0 0.0
  %422 = vmatpush1.msra.mxu0 0.0
  %423 = vmatprep.subr.mxu0 0.0
  %424 = vmatpush1.msra.mxu0 0.0
  %425 = vmatprep.subr.mxu0 0.0
  %426 = vmatpush1.msra.mxu0 0.0
  %427 = vmatprep.subr.mxu0 0.0
  %428 = vmatpush1.msra.mxu0 0.0
  %429 = vmatprep.subr.mxu0 0.0
  %430 = vmatpush1.msra.mxu0 0.0
  %431 = vmatprep.subr.mxu0 0.0
  %432 = vmatpush1.msra.mxu0 0.0
  %433 = vmatprep.subr.mxu0 0.0
  %434 = vmatpush1.msra.mxu0 0.0
  %435 = vmatprep.subr.mxu0 0.0
  %436 = vmatpush1.msra.mxu0 0.0
  %437 = vmatprep.subr.mxu0 0.0
  %438 = vmatpush1.msra.mxu0 0.0
  %439 = vmatprep.subr.mxu0 0.0
  %440 = vmatpush1.msra.mxu0 0.0
  %441 = vmatprep.subr.mxu0 0.0
  %442 = vmatpush1.msra.mxu0 0.0
  %443 = vmatprep.subr.mxu0 0.0
  %444 = vmatpush1.msra.mxu0 0.0
  %445 = vmatprep.subr.mxu0 0.0
  %446 = vmatpush1.msra.mxu0 0.0
  %447 = vmatprep.subr.mxu0 0.0
  %448 = vmatpush1.msra.mxu0 0.0
  %449 = vmatprep.subr.mxu0 0.0
  %450 = vmatpush1.msra.mxu0 0.0
  %451 = vmatprep.subr.mxu0 0.0
  %452 = vmatpush1.msra.mxu0 0.0
  %453 = vmatprep.subr.mxu0 0.0
  %454 = vmatpush1.msra.mxu0 0.0
  %455 = vmatprep.subr.mxu0 0.0
  %456 = vmatpush1.msra.mxu0 0.0
  %457 = vmatprep.subr.mxu0 0.0
  %458 = vmatpush1.msra.mxu0 0.0
  %459 = vmatprep.subr.mxu0 0.0
  %460 = vmatpush1.msra.mxu0 0.0
  %461 = vmatprep.subr.mxu0 0.0
  %462 = vmatpush1.msra.mxu0 0.0
  %463 = vmatprep.subr.mxu0 0.0
  %464 = vmatpush1.msra.mxu0 0.0
  %465 = vmatprep.subr.mxu0 0.0
  %466 = vmatpush1.msra.mxu0 0.0
  %467 = vmatprep.subr.mxu0 0.0
  %468 = vmatpush1.msra.mxu0 0.0
  %469 = vmatprep.subr.mxu0 0.0
  %470 = vmatpush1.msra.mxu0 0.0
  %471 = vmatprep.subr.mxu0 0.0
  %472 = vmatpush1.msra.mxu0 0.0
  %473 = vmatprep.mubr.f32.mxu0 0.0
  %474 = vmatmul.mubr.f32.gmra.mrb[0].mxu0 %v407
  %v475 = vpop.f32.mrb[0].mxu0
  %v476 = vadd.f32 0.0, %v475
  %v477 = vpop.f32.mrb[0].mxu0
  %v478 = vadd.f32 0.0, %v477
  %479 = vdwg.mxu0
  %v480 = vadd.f32 %v373, %v476
  %v481 = vadd.f32 %v374, %v478
  %v482 = vlaneseq
  %v483 = vshrl.u32 %v482, 7
  %v484 = vsub.s32 4, %v483
  %v485 = vrot.slane %v56, %v484
  %v486 = vlaneseq
  %v487 = vshrl.u32 %v486, 7
  %v488 = vsub.s32 4, %v487
  %v489 = vrot.slane %v57, %v488
  %492 = vrot.lane.b32.xlu0 %v485, 8
  %v493 = vpop.permute.xlu0 %492
  %494 = vrot.lane.b32.xlu0 %v489, 8
  %v495 = vpop.permute.xlu0 %494
  %v496 = vsel %vm68, %v493, %v495
  %v499 = vmul.f32 %v76, %v493
  %v500 = vmul.f32 %v77, %v496
  %501 = vrot.lane.b32.xlu0 %v88, 96
  %v502 = vpop.permute.xlu0 %501
  %505 = vrot.lane.b32.xlu0 %v499, 120
  %v506 = vpop.permute.xlu0 %505
  %507 = vrot.lane.b32.xlu0 %v500, 120
  %v508 = vpop.permute.xlu0 %507
  %vm509 = vcmask 982016
  %v510 = vsel %vm509, %v506, %v508
  %v513 = vsel %vm68, %v502, 0
  %515 = vmatprep.subr.mxu0 %v508
  %516 = vmatpush1.msra.mxu0 %v510
  %517 = vmatprep.subr.mxu0 0.0
  %518 = vmatpush1.msra.mxu0 0.0
  %519 = vmatprep.subr.mxu0 0.0
  %520 = vmatpush1.msra.mxu0 0.0
  %521 = vmatprep.subr.mxu0 0.0
  %522 = vmatpush1.msra.mxu0 0.0
  %523 = vmatprep.subr.mxu0 0.0
  %524 = vmatpush1.msra.mxu0 0.0
  %525 = vmatprep.subr.mxu0 0.0
  %526 = vmatpush1.msra.mxu0 0.0
  %527 = vmatprep.subr.mxu0 0.0
  %528 = vmatpush1.msra.mxu0 0.0
  %529 = vmatprep.subr.mxu0 0.0
  %530 = vmatpush1.msra.mxu0 0.0
  %531 = vmatprep.subr.mxu0 0.0
  %532 = vmatpush1.msra.mxu0 0.0
  %533 = vmatprep.subr.mxu0 0.0
  %534 = vmatpush1.msra.mxu0 0.0
  %535 = vmatprep.subr.mxu0 0.0
  %536 = vmatpush1.msra.mxu0 0.0
  %537 = vmatprep.subr.mxu0 0.0
  %538 = vmatpush1.msra.mxu0 0.0
  %539 = vmatprep.subr.mxu0 0.0
  %540 = vmatpush1.msra.mxu0 0.0
  %541 = vmatprep.subr.mxu0 0.0
  %542 = vmatpush1.msra.mxu0 0.0
  %543 = vmatprep.subr.mxu0 0.0
  %544 = vmatpush1.msra.mxu0 0.0
  %545 = vmatprep.subr.mxu0 0.0
  %546 = vmatpush1.msra.mxu0 0.0
  %547 = vmatprep.subr.mxu0 0.0
  %548 = vmatpush1.msra.mxu0 0.0
  %549 = vmatprep.subr.mxu0 0.0
  %550 = vmatpush1.msra.mxu0 0.0
  %551 = vmatprep.subr.mxu0 0.0
  %552 = vmatpush1.msra.mxu0 0.0
  %553 = vmatprep.subr.mxu0 0.0
  %554 = vmatpush1.msra.mxu0 0.0
  %555 = vmatprep.subr.mxu0 0.0
  %556 = vmatpush1.msra.mxu0 0.0
  %557 = vmatprep.subr.mxu0 0.0
  %558 = vmatpush1.msra.mxu0 0.0
  %559 = vmatprep.subr.mxu0 0.0
  %560 = vmatpush1.msra.mxu0 0.0
  %561 = vmatprep.subr.mxu0 0.0
  %562 = vmatpush1.msra.mxu0 0.0
  %563 = vmatprep.subr.mxu0 0.0
  %564 = vmatpush1.msra.mxu0 0.0
  %565 = vmatprep.subr.mxu0 0.0
  %566 = vmatpush1.msra.mxu0 0.0
  %567 = vmatprep.subr.mxu0 0.0
  %568 = vmatpush1.msra.mxu0 0.0
  %569 = vmatprep.subr.mxu0 0.0
  %570 = vmatpush1.msra.mxu0 0.0
  %571 = vmatprep.subr.mxu0 0.0
  %572 = vmatpush1.msra.mxu0 0.0
  %573 = vmatprep.subr.mxu0 0.0
  %574 = vmatpush1.msra.mxu0 0.0
  %575 = vmatprep.subr.mxu0 0.0
  %576 = vmatpush1.msra.mxu0 0.0
  %577 = vmatprep.subr.mxu0 0.0
  %578 = vmatpush1.msra.mxu0 0.0
  %579 = vmatprep.mubr.f32.mxu0 0.0
  %580 = vmatmul.mubr.f32.gmra.mrb[0].mxu0 %v513
  %v581 = vpop.f32.mrb[0].mxu0
  %v582 = vadd.f32 0.0, %v581
  %v583 = vpop.f32.mrb[0].mxu0
  %v584 = vadd.f32 0.0, %v583
  %585 = vdwg.mxu0
  %v586 = vadd.f32 %v480, %v582
  %v587 = vadd.f32 %v481, %v584
  %v588 = vlaneseq
  %v589 = vshrl.u32 %v588, 7
  %v590 = vsub.s32 5, %v589
  %v591 = vrot.slane %v56, %v590
  %v592 = vlaneseq
  %v593 = vshrl.u32 %v592, 7
  %v594 = vsub.s32 5, %v593
  %v595 = vrot.slane %v57, %v594
  %598 = vrot.lane.b32.xlu0 %v591, 9
  %v599 = vpop.permute.xlu0 %598
  %600 = vrot.lane.b32.xlu0 %v595, 9
  %v601 = vpop.permute.xlu0 %600
  %vm602 = vcmask 72704
  %v603 = vsel %vm602, %v599, %v601
  %v606 = vmul.f32 %v76, %v599
  %v607 = vmul.f32 %v77, %v603
  %608 = vrot.lane.b32.xlu0 %v88, 88
  %v609 = vpop.permute.xlu0 %608
  %612 = vrot.lane.b32.xlu0 %v606, 119
  %v613 = vpop.permute.xlu0 %612
  %614 = vrot.lane.b32.xlu0 %v607, 119
  %v615 = vpop.permute.xlu0 %614
  %vm616 = vcmask 973824
  %v617 = vsel %vm616, %v613, %v615
  %v620 = vsel %vm68, %v609, 0
  %622 = vmatprep.subr.mxu0 %v615
  %623 = vmatpush1.msra.mxu0 %v617
  %624 = vmatprep.subr.mxu0 0.0
  %625 = vmatpush1.msra.mxu0 0.0
  %626 = vmatprep.subr.mxu0 0.0
  %627 = vmatpush1.msra.mxu0 0.0
  %628 = vmatprep.subr.mxu0 0.0
  %629 = vmatpush1.msra.mxu0 0.0
  %630 = vmatprep.subr.mxu0 0.0
  %631 = vmatpush1.msra.mxu0 0.0
  %632 = vmatprep.subr.mxu0 0.0
  %633 = vmatpush1.msra.mxu0 0.0
  %634 = vmatprep.subr.mxu0 0.0
  %635 = vmatpush1.msra.mxu0 0.0
  %636 = vmatprep.subr.mxu0 0.0
  %637 = vmatpush1.msra.mxu0 0.0
  %638 = vmatprep.subr.mxu0 0.0
  %639 = vmatpush1.msra.mxu0 0.0
  %640 = vmatprep.subr.mxu0 0.0
  %641 = vmatpush1.msra.mxu0 0.0
  %642 = vmatprep.subr.mxu0 0.0
  %643 = vmatpush1.msra.mxu0 0.0
  %644 = vmatprep.subr.mxu0 0.0
  %645 = vmatpush1.msra.mxu0 0.0
  %646 = vmatprep.subr.mxu0 0.0
  %647 = vmatpush1.msra.mxu0 0.0
  %648 = vmatprep.subr.mxu0 0.0
  %649 = vmatpush1.msra.mxu0 0.0
  %650 = vmatprep.subr.mxu0 0.0
  %651 = vmatpush1.msra.mxu0 0.0
  %652 = vmatprep.subr.mxu0 0.0
  %653 = vmatpush1.msra.mxu0 0.0
  %654 = vmatprep.subr.mxu0 0.0
  %655 = vmatpush1.msra.mxu0 0.0
  %656 = vmatprep.subr.mxu0 0.0
  %657 = vmatpush1.msra.mxu0 0.0
  %658 = vmatprep.subr.mxu0 0.0
  %659 = vmatpush1.msra.mxu0 0.0
  %660 = vmatprep.subr.mxu0 0.0
  %661 = vmatpush1.msra.mxu0 0.0
  %662 = vmatprep.subr.mxu0 0.0
  %663 = vmatpush1.msra.mxu0 0.0
  %664 = vmatprep.subr.mxu0 0.0
  %665 = vmatpush1.msra.mxu0 0.0
  %666 = vmatprep.subr.mxu0 0.0
  %667 = vmatpush1.msra.mxu0 0.0
  %668 = vmatprep.subr.mxu0 0.0
  %669 = vmatpush1.msra.mxu0 0.0
  %670 = vmatprep.subr.mxu0 0.0
  %671 = vmatpush1.msra.mxu0 0.0
  %672 = vmatprep.subr.mxu0 0.0
  %673 = vmatpush1.msra.mxu0 0.0
  %674 = vmatprep.subr.mxu0 0.0
  %675 = vmatpush1.msra.mxu0 0.0
  %676 = vmatprep.subr.mxu0 0.0
  %677 = vmatpush1.msra.mxu0 0.0
  %678 = vmatprep.subr.mxu0 0.0
  %679 = vmatpush1.msra.mxu0 0.0
  %680 = vmatprep.subr.mxu0 0.0
  %681 = vmatpush1.msra.mxu0 0.0
  %682 = vmatprep.subr.mxu0 0.0
  %683 = vmatpush1.msra.mxu0 0.0
  %684 = vmatprep.subr.mxu0 0.0
  %685 = vmatpush1.msra.mxu0 0.0
  %686 = vmatprep.mubr.f32.mxu0 0.0
  %687 = vmatmul.mubr.f32.gmra.mrb[0].mxu0 %v620
  %v688 = vpop.f32.mrb[0].mxu0
  %v689 = vadd.f32 0.0, %v688
  %v690 = vpop.f32.mrb[0].mxu0
  %v691 = vadd.f32 0.0, %v690
  %692 = vdwg.mxu0
  %v693 = vadd.f32 %v586, %v689
  %v694 = vadd.f32 %v587, %v691
  %v695 = vlaneseq
  %v696 = vshrl.u32 %v695, 7
  %v697 = vsub.s32 6, %v696
  %v698 = vrot.slane %v56, %v697
  %v699 = vlaneseq
  %v700 = vshrl.u32 %v699, 7
  %v701 = vsub.s32 6, %v700
  %v702 = vrot.slane %v57, %v701
  %705 = vrot.lane.b32.xlu0 %v698, 14
  %v706 = vpop.permute.xlu0 %705
  %707 = vrot.lane.b32.xlu0 %v702, 14
  %v708 = vpop.permute.xlu0 %707
  %vm709 = vcmask 113664
  %v710 = vsel %vm709, %v706, %v708
  %v713 = vmul.f32 %v76, %v706
  %v714 = vmul.f32 %v77, %v710
  %715 = vrot.lane.b32.xlu0 %v88, 80
  %v716 = vpop.permute.xlu0 %715
  %719 = vrot.lane.b32.xlu0 %v713, 114
  %v720 = vpop.permute.xlu0 %719
  %721 = vrot.lane.b32.xlu0 %v714, 114
  %v722 = vpop.permute.xlu0 %721
  %vm723 = vcmask 932864
  %v724 = vsel %vm723, %v720, %v722
  %v727 = vsel %vm68, %v716, 0
  %729 = vmatprep.subr.mxu0 %v722
  %730 = vmatpush1.msra.mxu0 %v724
  %731 = vmatprep.subr.mxu0 0.0
  %732 = vmatpush1.msra.mxu0 0.0
  %733 = vmatprep.subr.mxu0 0.0
  %734 = vmatpush1.msra.mxu0 0.0
  %735 = vmatprep.subr.mxu0 0.0
  %736 = vmatpush1.msra.mxu0 0.0
  %737 = vmatprep.subr.mxu0 0.0
  %738 = vmatpush1.msra.mxu0 0.0
  %739 = vmatprep.subr.mxu0 0.0
  %740 = vmatpush1.msra.mxu0 0.0
  %741 = vmatprep.subr.mxu0 0.0
  %742 = vmatpush1.msra.mxu0 0.0
  %743 = vmatprep.subr.mxu0 0.0
  %744 = vmatpush1.msra.mxu0 0.0
  %745 = vmatprep.subr.mxu0 0.0
  %746 = vmatpush1.msra.mxu0 0.0
  %747 = vmatprep.subr.mxu0 0.0
  %748 = vmatpush1.msra.mxu0 0.0
  %749 = vmatprep.subr.mxu0 0.0
  %750 = vmatpush1.msra.mxu0 0.0
  %751 = vmatprep.subr.mxu0 0.0
  %752 = vmatpush1.msra.mxu0 0.0
  %753 = vmatprep.subr.mxu0 0.0
  %754 = vmatpush1.msra.mxu0 0.0
  %755 = vmatprep.subr.mxu0 0.0
  %756 = vmatpush1.msra.mxu0 0.0
  %757 = vmatprep.subr.mxu0 0.0
  %758 = vmatpush1.msra.mxu0 0.0
  %759 = vmatprep.subr.mxu0 0.0
  %760 = vmatpush1.msra.mxu0 0.0
  %761 = vmatprep.subr.mxu0 0.0
  %762 = vmatpush1.msra.mxu0 0.0
  %763 = vmatprep.subr.mxu0 0.0
  %764 = vmatpush1.msra.mxu0 0.0
  %765 = vmatprep.subr.mxu0 0.0
  %766 = vmatpush1.msra.mxu0 0.0
  %767 = vmatprep.subr.mxu0 0.0
  %768 = vmatpush1.msra.mxu0 0.0
  %769 = vmatprep.subr.mxu0 0.0
  %770 = vmatpush1.msra.mxu0 0.0
  %771 = vmatprep.subr.mxu0 0.0
  %772 = vmatpush1.msra.mxu0 0.0
  %773 = vmatprep.subr.mxu0 0.0
  %774 = vmatpush1.msra.mxu0 0.0
  %775 = vmatprep.subr.mxu0 0.0
  %776 = vmatpush1.msra.mxu0 0.0
  %777 = vmatprep.subr.mxu0 0.0
  %778 = vmatpush1.msra.mxu0 0.0
  %779 = vmatprep.subr.mxu0 0.0
  %780 = vmatpush1.msra.mxu0 0.0
  %781 = vmatprep.subr.mxu0 0.0
  %782 = vmatpush1.msra.mxu0 0.0
  %783 = vmatprep.subr.mxu0 0.0
  %784 = vmatpush1.msra.mxu0 0.0
  %785 = vmatprep.subr.mxu0 0.0
  %786 = vmatpush1.msra.mxu0 0.0
  %787 = vmatprep.subr.mxu0 0.0
  %788 = vmatpush1.msra.mxu0 0.0
  %789 = vmatprep.subr.mxu0 0.0
  %790 = vmatpush1.msra.mxu0 0.0
  %791 = vmatprep.subr.mxu0 0.0
  %792 = vmatpush1.msra.mxu0 0.0
  %793 = vmatprep.mubr.f32.mxu0 0.0
  %794 = vmatmul.mubr.f32.gmra.mrb[0].mxu0 %v727
  %v795 = vpop.f32.mrb[0].mxu0
  %v796 = vadd.f32 0.0, %v795
  %v797 = vpop.f32.mrb[0].mxu0
  %v798 = vadd.f32 0.0, %v797
  %799 = vdwg.mxu0
  %v800 = vadd.f32 %v693, %v796
  %v801 = vadd.f32 %v694, %v798
  %v802 = vlaneseq
  %v803 = vshrl.u32 %v802, 7
  %v804 = vsub.s32 7, %v803
  %v805 = vrot.slane %v56, %v804
  %v806 = vlaneseq
  %v807 = vshrl.u32 %v806, 7
  %v808 = vsub.s32 7, %v807
  %v809 = vrot.slane %v57, %v808
  %812 = vrot.lane.b32.xlu0 %v805, 15
  %v813 = vpop.permute.xlu0 %812
  %814 = vrot.lane.b32.xlu0 %v809, 15
  %v815 = vpop.permute.xlu0 %814
  %vm816 = vcmask 121856
  %v817 = vsel %vm816, %v813, %v815
  %v820 = vmul.f32 %v76, %v813
  %v821 = vmul.f32 %v77, %v817
  %822 = vrot.lane.b32.xlu0 %v88, 72
  %v823 = vpop.permute.xlu0 %822
  %826 = vrot.lane.b32.xlu0 %v820, 113
  %v827 = vpop.permute.xlu0 %826
  %828 = vrot.lane.b32.xlu0 %v821, 113
  %v829 = vpop.permute.xlu0 %828
  %vm830 = vcmask 924672
  %v831 = vsel %vm830, %v827, %v829
  %v834 = vsel %vm68, %v823, 0
  %836 = vmatprep.subr.mxu0 %v829
  %837 = vmatpush1.msra.mxu0 %v831
  %838 = vmatprep.subr.mxu0 0.0
  %839 = vmatpush1.msra.mxu0 0.0
  %840 = vmatprep.subr.mxu0 0.0
  %841 = vmatpush1.msra.mxu0 0.0
  %842 = vmatprep.subr.mxu0 0.0
  %843 = vmatpush1.msra.mxu0 0.0
  %844 = vmatprep.subr.mxu0 0.0
  %845 = vmatpush1.msra.mxu0 0.0
  %846 = vmatprep.subr.mxu0 0.0
  %847 = vmatpush1.msra.mxu0 0.0
  %848 = vmatprep.subr.mxu0 0.0
  %849 = vmatpush1.msra.mxu0 0.0
  %850 = vmatprep.subr.mxu0 0.0
  %851 = vmatpush1.msra.mxu0 0.0
  %852 = vmatprep.subr.mxu0 0.0
  %853 = vmatpush1.msra.mxu0 0.0
  %854 = vmatprep.subr.mxu0 0.0
  %855 = vmatpush1.msra.mxu0 0.0
  %856 = vmatprep.subr.mxu0 0.0
  %857 = vmatpush1.msra.mxu0 0.0
  %858 = vmatprep.subr.mxu0 0.0
  %859 = vmatpush1.msra.mxu0 0.0
  %860 = vmatprep.subr.mxu0 0.0
  %861 = vmatpush1.msra.mxu0 0.0
  %862 = vmatprep.subr.mxu0 0.0
  %863 = vmatpush1.msra.mxu0 0.0
  %864 = vmatprep.subr.mxu0 0.0
  %865 = vmatpush1.msra.mxu0 0.0
  %866 = vmatprep.subr.mxu0 0.0
  %867 = vmatpush1.msra.mxu0 0.0
  %868 = vmatprep.subr.mxu0 0.0
  %869 = vmatpush1.msra.mxu0 0.0
  %870 = vmatprep.subr.mxu0 0.0
  %871 = vmatpush1.msra.mxu0 0.0
  %872 = vmatprep.subr.mxu0 0.0
  %873 = vmatpush1.msra.mxu0 0.0
  %874 = vmatprep.subr.mxu0 0.0
  %875 = vmatpush1.msra.mxu0 0.0
  %876 = vmatprep.subr.mxu0 0.0
  %877 = vmatpush1.msra.mxu0 0.0
  %878 = vmatprep.subr.mxu0 0.0
  %879 = vmatpush1.msra.mxu0 0.0
  %880 = vmatprep.subr.mxu0 0.0
  %881 = vmatpush1.msra.mxu0 0.0
  %882 = vmatprep.subr.mxu0 0.0
  %883 = vmatpush1.msra.mxu0 0.0
  %884 = vmatprep.subr.mxu0 0.0
  %885 = vmatpush1.msra.mxu0 0.0
  %886 = vmatprep.subr.mxu0 0.0
  %887 = vmatpush1.msra.mxu0 0.0
  %888 = vmatprep.subr.mxu0 0.0
  %889 = vmatpush1.msra.mxu0 0.0
  %890 = vmatprep.subr.mxu0 0.0
  %891 = vmatpush1.msra.mxu0 0.0
  %892 = vmatprep.subr.mxu0 0.0
  %893 = vmatpush1.msra.mxu0 0.0
  %894 = vmatprep.subr.mxu0 0.0
  %895 = vmatpush1.msra.mxu0 0.0
  %896 = vmatprep.subr.mxu0 0.0
  %897 = vmatpush1.msra.mxu0 0.0
  %898 = vmatprep.subr.mxu0 0.0
  %899 = vmatpush1.msra.mxu0 0.0
  %900 = vmatprep.mubr.f32.mxu0 0.0
  %901 = vmatmul.mubr.f32.gmra.mrb[0].mxu0 %v834
  %v902 = vpop.f32.mrb[0].mxu0
  %v903 = vadd.f32 0.0, %v902
  %v904 = vpop.f32.mrb[0].mxu0
  %v905 = vadd.f32 0.0, %v904
  %906 = vdwg.mxu0
  %v907 = vadd.f32 %v800, %v903
  %v908 = vadd.f32 %v801, %v905
  %v909 = vlaneseq
  %v910 = vshrl.u32 %v909, 7
  %v911 = vsub.s32 0, %v910
  %v912 = vrot.slane %v58, %v911
  %v913 = vlaneseq
  %v914 = vshrl.u32 %v913, 7
  %v915 = vsub.s32 0, %v914
  %v916 = vrot.slane %v59, %v915
  %919 = vrot.lane.b32.xlu0 %v912, 16
  %v920 = vpop.permute.xlu0 %919
  %921 = vrot.lane.b32.xlu0 %v916, 16
  %v922 = vpop.permute.xlu0 %921
  %vm923 = vcmask 130048
  %v924 = vsel %vm923, %v920, %v922
  %v927 = vmul.f32 %v76, %v920
  %v928 = vmul.f32 %v77, %v924
  %929 = vrot.lane.b32.xlu0 %v88, 64
  %v930 = vpop.permute.xlu0 %929
  %933 = vrot.lane.b32.xlu0 %v927, 112
  %v934 = vpop.permute.xlu0 %933
  %935 = vrot.lane.b32.xlu0 %v928, 112
  %v936 = vpop.permute.xlu0 %935
  %vm937 = vcmask 916480
  %v938 = vsel %vm937, %v934, %v936
  %v941 = vsel %vm68, %v930, 0
  %943 = vmatprep.subr.mxu0 %v936
  %944 = vmatpush1.msra.mxu0 %v938
  %945 = vmatprep.subr.mxu0 0.0
  %946 = vmatpush1.msra.mxu0 0.0
  %947 = vmatprep.subr.mxu0 0.0
  %948 = vmatpush1.msra.mxu0 0.0
  %949 = vmatprep.subr.mxu0 0.0
  %950 = vmatpush1.msra.mxu0 0.0
  %951 = vmatprep.subr.mxu0 0.0
  %952 = vmatpush1.msra.mxu0 0.0
  %953 = vmatprep.subr.mxu0 0.0
  %954 = vmatpush1.msra.mxu0 0.0
  %955 = vmatprep.subr.mxu0 0.0
  %956 = vmatpush1.msra.mxu0 0.0
  %957 = vmatprep.subr.mxu0 0.0
  %958 = vmatpush1.msra.mxu0 0.0
  %959 = vmatprep.subr.mxu0 0.0
  %960 = vmatpush1.msra.mxu0 0.0
  %961 = vmatprep.subr.mxu0 0.0
  %962 = vmatpush1.msra.mxu0 0.0
  %963 = vmatprep.subr.mxu0 0.0
  %964 = vmatpush1.msra.mxu0 0.0
  %965 = vmatprep.subr.mxu0 0.0
  %966 = vmatpush1.msra.mxu0 0.0
  %967 = vmatprep.subr.mxu0 0.0
  %968 = vmatpush1.msra.mxu0 0.0
  %969 = vmatprep.subr.mxu0 0.0
  %970 = vmatpush1.msra.mxu0 0.0
  %971 = vmatprep.subr.mxu0 0.0
  %972 = vmatpush1.msra.mxu0 0.0
  %973 = vmatprep.subr.mxu0 0.0
  %974 = vmatpush1.msra.mxu0 0.0
  %975 = vmatprep.subr.mxu0 0.0
  %976 = vmatpush1.msra.mxu0 0.0
  %977 = vmatprep.subr.mxu0 0.0
  %978 = vmatpush1.msra.mxu0 0.0
  %979 = vmatprep.subr.mxu0 0.0
  %980 = vmatpush1.msra.mxu0 0.0
  %981 = vmatprep.subr.mxu0 0.0
  %982 = vmatpush1.msra.mxu0 0.0
  %983 = vmatprep.subr.mxu0 0.0
  %984 = vmatpush1.msra.mxu0 0.0
  %985 = vmatprep.subr.mxu0 0.0
  %986 = vmatpush1.msra.mxu0 0.0
  %987 = vmatprep.subr.mxu0 0.0
  %988 = vmatpush1.msra.mxu0 0.0
  %989 = vmatprep.subr.mxu0 0.0
  %990 = vmatpush1.msra.mxu0 0.0
  %991 = vmatprep.subr.mxu0 0.0
  %992 = vmatpush1.msra.mxu0 0.0
  %993 = vmatprep.subr.mxu0 0.0
  %994 = vmatpush1.msra.mxu0 0.0
  %995 = vmatprep.subr.mxu0 0.0
  %996 = vmatpush1.msra.mxu0 0.0
  %997 = vmatprep.subr.mxu0 0.0
  %998 = vmatpush1.msra.mxu0 0.0
  %999 = vmatprep.subr.mxu0 0.0
  %1000 = vmatpush1.msra.mxu0 0.0
  %1001 = vmatprep.subr.mxu0 0.0
  %1002 = vmatpush1.msra.mxu0 0.0
  %1003 = vmatprep.subr.mxu0 0.0
  %1004 = vmatpush1.msra.mxu0 0.0
  %1005 = vmatprep.subr.mxu0 0.0
  %1006 = vmatpush1.msra.mxu0 0.0
  %1007 = vmatprep.mubr.f32.mxu0 0.0
  %1008 = vmatmul.mubr.f32.gmra.mrb[0].mxu0 %v941
  %v1009 = vpop.f32.mrb[0].mxu0
  %v1010 = vadd.f32 0.0, %v1009
  %v1011 = vpop.f32.mrb[0].mxu0
  %v1012 = vadd.f32 0.0, %v1011
  %1013 = vdwg.mxu0
  %v1014 = vadd.f32 %v907, %v1010
  %v1015 = vadd.f32 %v908, %v1012
  %v1016 = vld [vmem:[%s3] sm:$0xff]
  %1018 = vset.pattern.permute.xlu0 0
  %1019 = vperm.xlu0 %1018, %v1016
  %v1020 = vpop.permute.xlu0 %1019
  %v1022 = vadd.f32 %v1014, %v1020
  %v1023 = vadd.f32 %v1015, %v1020
  %v1024 = vmax.f32 %v1022, 0.0
  %v1025 = vmax.f32 %v1023, 0.0
  %1028 = vrot.lane.b32.xlu0 %v1024, 8
  %v1029 = vpop.permute.xlu0 %1028
  %1030 = vrot.lane.b32.xlu0 %v1025, 8
  %v1031 = vpop.permute.xlu0 %1030
  %v1032 = vsel %vm68, %v1029, %v1031
  %1035 = vst.msk [vmem:[#allocation2] sm:$0xff] %vm72, %v1029
  %1036 = vst.msk [vmem:[#allocation2 + $0x8] sm:$0xff] %vm74, %v1032
  %v1037 = vld [vmem:[#allocation2] sm:$0xff]
  %v1038 = vld [vmem:[#allocation2 + $0x8] sm:$0xff]
  %v1039 = vmul.f32 %v1037, %v81
  %v1040 = vmul.f32 %v1038, %v85
  %v1041 = vld [vmem:[%s4] sm:$0xff]
  %v1042 = vmul.f32 %v1037, %v100
  %v1043 = vmul.f32 %v1038, %v104
  %1045 = vrot.lane.b32.xlu0 %v1041, 120
  %v1046 = vpop.permute.xlu0 %1045
  %1049 = vrot.lane.b32.xlu0 %v1042, 127
  %v1050 = vpop.permute.xlu0 %1049
  %1051 = vrot.lane.b32.xlu0 %v1043, 127
  %v1052 = vpop.permute.xlu0 %1051
  %v1053 = vsel %vm118, %v1050, %v1052
  %v1056 = vsel %vm68, %v1046, 0
  %1058 = vmatprep.subr.mxu0 %v1052
  %1059 = vmatpush1.msra.mxu0 %v1053
  %1060 = vmatprep.subr.mxu0 0.0
  %1061 = vmatpush1.msra.mxu0 0.0
  %1062 = vmatprep.subr.mxu0 0.0
  %1063 = vmatpush1.msra.mxu0 0.0
  %1064 = vmatprep.subr.mxu0 0.0
  %1065 = vmatpush1.msra.mxu0 0.0
  %1066 = vmatprep.subr.mxu0 0.0
  %1067 = vmatpush1.msra.mxu0 0.0
  %1068 = vmatprep.subr.mxu0 0.0
  %1069 = vmatpush1.msra.mxu0 0.0
  %1070 = vmatprep.subr.mxu0 0.0
  %1071 = vmatpush1.msra.mxu0 0.0
  %1072 = vmatprep.subr.mxu0 0.0
  %1073 = vmatpush1.msra.mxu0 0.0
  %1074 = vmatprep.subr.mxu0 0.0
  %1075 = vmatpush1.msra.mxu0 0.0
  %1076 = vmatprep.subr.mxu0 0.0
  %1077 = vmatpush1.msra.mxu0 0.0
  %1078 = vmatprep.subr.mxu0 0.0
  %1079 = vmatpush1.msra.mxu0 0.0
  %1080 = vmatprep.subr.mxu0 0.0
  %1081 = vmatpush1.msra.mxu0 0.0
  %1082 = vmatprep.subr.mxu0 0.0
  %1083 = vmatpush1.msra.mxu0 0.0
  %1084 = vmatprep.subr.mxu0 0.0
  %1085 = vmatpush1.msra.mxu0 0.0
  %1086 = vmatprep.subr.mxu0 0.0
  %1087 = vmatpush1.msra.mxu0 0.0
  %1088 = vmatprep.subr.mxu0 0.0
  %1089 = vmatpush1.msra.mxu0 0.0
  %1090 = vmatprep.subr.mxu0 0.0
  %1091 = vmatpush1.msra.mxu0 0.0
  %1092 = vmatprep.subr.mxu0 0.0
  %1093 = vmatpush1.msra.mxu0 0.0
  %1094 = vmatprep.subr.mxu0 0.0
  %1095 = vmatpush1.msra.mxu0 0.0
  %1096 = vmatprep.subr.mxu0 0.0
  %1097 = vmatpush1.msra.mxu0 0.0
  %1098 = vmatprep.subr.mxu0 0.0
  %1099 = vmatpush1.msra.mxu0 0.0
  %1100 = vmatprep.subr.mxu0 0.0
  %1101 = vmatpush1.msra.mxu0 0.0
  %1102 = vmatprep.subr.mxu0 0.0
  %1103 = vmatpush1.msra.mxu0 0.0
  %1104 = vmatprep.subr.mxu0 0.0
  %1105 = vmatpush1.msra.mxu0 0.0
  %1106 = vmatprep.subr.mxu0 0.0
  %1107 = vmatpush1.msra.mxu0 0.0
  %1108 = vmatprep.subr.mxu0 0.0
  %1109 = vmatpush1.msra.mxu0 0.0
  %1110 = vmatprep.subr.mxu0 0.0
  %1111 = vmatpush1.msra.mxu0 0.0
  %1112 = vmatprep.subr.mxu0 0.0
  %1113 = vmatpush1.msra.mxu0 0.0
  %1114 = vmatprep.subr.mxu0 0.0
  %1115 = vmatpush1.msra.mxu0 0.0
  %1116 = vmatprep.subr.mxu0 0.0
  %1117 = vmatpush1.msra.mxu0 0.0
  %1118 = vmatprep.subr.mxu0 0.0
  %1119 = vmatpush1.msra.mxu0 0.0
  %1120 = vmatprep.subr.mxu0 0.0
  %1121 = vmatpush1.msra.mxu0 0.0
  %1122 = vmatprep.mubr.f32.mxu0 0.0
  %1123 = vmatmul.mubr.f32.gmra.mrb[0].mxu0 %v1056
  %v1124 = vpop.f32.mrb[0].mxu0
  %v1125 = vadd.f32 0.0, %v1124
  %v1126 = vpop.f32.mrb[0].mxu0
  %v1127 = vadd.f32 0.0, %v1126
  %1128 = vdwg.mxu0
  %v1129 = vsel %vm68, %v1041, 0
  %1131 = vmatprep.subr.mxu0 %v1040
  %1132 = vmatpush1.msra.mxu0 %v1039
  %1133 = vmatprep.subr.mxu0 0.0
  %1134 = vmatpush1.msra.mxu0 0.0
  %1135 = vmatprep.subr.mxu0 0.0
  %1136 = vmatpush1.msra.mxu0 0.0
  %1137 = vmatprep.subr.mxu0 0.0
  %1138 = vmatpush1.msra.mxu0 0.0
  %1139 = vmatprep.subr.mxu0 0.0
  %1140 = vmatpush1.msra.mxu0 0.0
  %1141 = vmatprep.subr.mxu0 0.0
  %1142 = vmatpush1.msra.mxu0 0.0
  %1143 = vmatprep.subr.mxu0 0.0
  %1144 = vmatpush1.msra.mxu0 0.0
  %1145 = vmatprep.subr.mxu0 0.0
  %1146 = vmatpush1.msra.mxu0 0.0
  %1147 = vmatprep.subr.mxu0 0.0
  %1148 = vmatpush1.msra.mxu0 0.0
  %1149 = vmatprep.subr.mxu0 0.0
  %1150 = vmatpush1.msra.mxu0 0.0
  %1151 = vmatprep.subr.mxu0 0.0
  %1152 = vmatpush1.msra.mxu0 0.0
  %1153 = vmatprep.subr.mxu0 0.0
  %1154 = vmatpush1.msra.mxu0 0.0
  %1155 = vmatprep.subr.mxu0 0.0
  %1156 = vmatpush1.msra.mxu0 0.0
  %1157 = vmatprep.subr.mxu0 0.0
  %1158 = vmatpush1.msra.mxu0 0.0
  %1159 = vmatprep.subr.mxu0 0.0
  %1160 = vmatpush1.msra.mxu0 0.0
  %1161 = vmatprep.subr.mxu0 0.0
  %1162 = vmatpush1.msra.mxu0 0.0
  %1163 = vmatprep.subr.mxu0 0.0
  %1164 = vmatpush1.msra.mxu0 0.0
  %1165 = vmatprep.subr.mxu0 0.0
  %1166 = vmatpush1.msra.mxu0 0.0
  %1167 = vmatprep.subr.mxu0 0.0
  %1168 = vmatpush1.msra.mxu0 0.0
  %1169 = vmatprep.subr.mxu0 0.0
  %1170 = vmatpush1.msra.mxu0 0.0
  %1171 = vmatprep.subr.mxu0 0.0
  %1172 = vmatpush1.msra.mxu0 0.0
  %1173 = vmatprep.subr.mxu0 0.0
  %1174 = vmatpush1.msra.mxu0 0.0
  %1175 = vmatprep.subr.mxu0 0.0
  %1176 = vmatpush1.msra.mxu0 0.0
  %1177 = vmatprep.subr.mxu0 0.0
  %1178 = vmatpush1.msra.mxu0 0.0
  %1179 = vmatprep.subr.mxu0 0.0
  %1180 = vmatpush1.msra.mxu0 0.0
  %1181 = vmatprep.subr.mxu0 0.0
  %1182 = vmatpush1.msra.mxu0 0.0
  %1183 = vmatprep.subr.mxu0 0.0
  %1184 = vmatpush1.msra.mxu0 0.0
  %1185 = vmatprep.subr.mxu0 0.0
  %1186 = vmatpush1.msra.mxu0 0.0
  %1187 = vmatprep.subr.mxu0 0.0
  %1188 = vmatpush1.msra.mxu0 0.0
  %1189 = vmatprep.subr.mxu0 0.0
  %1190 = vmatpush1.msra.mxu0 0.0
  %1191 = vmatprep.subr.mxu0 0.0
  %1192 = vmatpush1.msra.mxu0 0.0
  %1193 = vmatprep.subr.mxu0 0.0
  %1194 = vmatpush1.msra.mxu0 0.0
  %1195 = vmatprep.mubr.f32.mxu0 0.0
  %1196 = vmatmul.mubr.f32.gmra.mrb[0].mxu0 %v1129
  %v1197 = vpop.f32.mrb[0].mxu0
  %v1198 = vadd.f32 %v1125, %v1197
  %v1199 = vpop.f32.mrb[0].mxu0
  %v1200 = vadd.f32 %v1127, %v1199
  %1201 = vdwg.mxu0
  %v1202 = vmul.f32 %v1037, %v279
  %v1203 = vmul.f32 %v1038, %v283
  %1204 = vrot.lane.b32.xlu0 %v1041, 112
  %v1205 = vpop.permute.xlu0 %1204
  %1208 = vrot.lane.b32.xlu0 %v1202, 126
  %v1209 = vpop.permute.xlu0 %1208
  %1210 = vrot.lane.b32.xlu0 %v1203, 126
  %v1211 = vpop.permute.xlu0 %1210
  %v1212 = vsel %vm296, %v1209, %v1211
  %v1215 = vsel %vm68, %v1205, 0
  %1217 = vmatprep.subr.mxu0 %v1211
  %1218 = vmatpush1.msra.mxu0 %v1212
  %1219 = vmatprep.subr.mxu0 0.0
  %1220 = vmatpush1.msra.mxu0 0.0
  %1221 = vmatprep.subr.mxu0 0.0
  %1222 = vmatpush1.msra.mxu0 0.0
  %1223 = vmatprep.subr.mxu0 0.0
  %1224 = vmatpush1.msra.mxu0 0.0
  %1225 = vmatprep.subr.mxu0 0.0
  %1226 = vmatpush1.msra.mxu0 0.0
  %1227 = vmatprep.subr.mxu0 0.0
  %1228 = vmatpush1.msra.mxu0 0.0
  %1229 = vmatprep.subr.mxu0 0.0
  %1230 = vmatpush1.msra.mxu0 0.0
  %1231 = vmatprep.subr.mxu0 0.0
  %1232 = vmatpush1.msra.mxu0 0.0
  %1233 = vmatprep.subr.mxu0 0.0
  %1234 = vmatpush1.msra.mxu0 0.0
  %1235 = vmatprep.subr.mxu0 0.0
  %1236 = vmatpush1.msra.mxu0 0.0
  %1237 = vmatprep.subr.mxu0 0.0
  %1238 = vmatpush1.msra.mxu0 0.0
  %1239 = vmatprep.subr.mxu0 0.0
  %1240 = vmatpush1.msra.mxu0 0.0
  %1241 = vmatprep.subr.mxu0 0.0
  %1242 = vmatpush1.msra.mxu0 0.0
  %1243 = vmatprep.subr.mxu0 0.0
  %1244 = vmatpush1.msra.mxu0 0.0
  %1245 = vmatprep.subr.mxu0 0.0
  %1246 = vmatpush1.msra.mxu0 0.0
  %1247 = vmatprep.subr.mxu0 0.0
  %1248 = vmatpush1.msra.mxu0 0.0
  %1249 = vmatprep.subr.mxu0 0.0
  %1250 = vmatpush1.msra.mxu0 0.0
  %1251 = vmatprep.subr.mxu0 0.0
  %1252 = vmatpush1.msra.mxu0 0.0
  %1253 = vmatprep.subr.mxu0 0.0
  %1254 = vmatpush1.msra.mxu0 0.0
  %1255 = vmatprep.subr.mxu0 0.0
  %1256 = vmatpush1.msra.mxu0 0.0
  %1257 = vmatprep.subr.mxu0 0.0
  %1258 = vmatpush1.msra.mxu0 0.0
  %1259 = vmatprep.subr.mxu0 0.0
  %1260 = vmatpush1.msra.mxu0 0.0
  %1261 = vmatprep.subr.mxu0 0.0
  %1262 = vmatpush1.msra.mxu0 0.0
  %1263 = vmatprep.subr.mxu0 0.0
  %1264 = vmatpush1.msra.mxu0 0.0
  %1265 = vmatprep.subr.mxu0 0.0
  %1266 = vmatpush1.msra.mxu0 0.0
  %1267 = vmatprep.subr.mxu0 0.0
  %1268 = vmatpush1.msra.mxu0 0.0
  %1269 = vmatprep.subr.mxu0 0.0
  %1270 = vmatpush1.msra.mxu0 0.0
  %1271 = vmatprep.subr.mxu0 0.0
  %1272 = vmatpush1.msra.mxu0 0.0
  %1273 = vmatprep.subr.mxu0 0.0
  %1274 = vmatpush1.msra.mxu0 0.0
  %1275 = vmatprep.subr.mxu0 0.0
  %1276 = vmatpush1.msra.mxu0 0.0
  %1277 = vmatprep.subr.mxu0 0.0
  %1278 = vmatpush1.msra.mxu0 0.0
  %1279 = vmatprep.subr.mxu0 0.0
  %1280 = vmatpush1.msra.mxu0 0.0
  %1281 = vmatprep.mubr.f32.mxu0 0.0
  %1282 = vmatmul.mubr.f32.gmra.mrb[0].mxu0 %v1215
  %v1283 = vpop.f32.mrb[0].mxu0
  %v1284 = vadd.f32 0.0, %v1283
  %v1285 = vpop.f32.mrb[0].mxu0
  %v1286 = vadd.f32 0.0, %v1285
  %1287 = vdwg.mxu0
  %v1288 = vadd.f32 %v1198, %v1284
  %v1289 = vadd.f32 %v1200, %v1286
  %v1290 = vmul.f32 %v1037, %v386
  %v1291 = vmul.f32 %v1038, %v390
  %1292 = vrot.lane.b32.xlu0 %v1041, 104
  %v1293 = vpop.permute.xlu0 %1292
  %1296 = vrot.lane.b32.xlu0 %v1290, 121
  %v1297 = vpop.permute.xlu0 %1296
  %1298 = vrot.lane.b32.xlu0 %v1291, 121
  %v1299 = vpop.permute.xlu0 %1298
  %v1300 = vsel %vm403, %v1297, %v1299
  %v1303 = vsel %vm68, %v1293, 0
  %1305 = vmatprep.subr.mxu0 %v1299
  %1306 = vmatpush1.msra.mxu0 %v1300
  %1307 = vmatprep.subr.mxu0 0.0
  %1308 = vmatpush1.msra.mxu0 0.0
  %1309 = vmatprep.subr.mxu0 0.0
  %1310 = vmatpush1.msra.mxu0 0.0
  %1311 = vmatprep.subr.mxu0 0.0
  %1312 = vmatpush1.msra.mxu0 0.0
  %1313 = vmatprep.subr.mxu0 0.0
  %1314 = vmatpush1.msra.mxu0 0.0
  %1315 = vmatprep.subr.mxu0 0.0
  %1316 = vmatpush1.msra.mxu0 0.0
  %1317 = vmatprep.subr.mxu0 0.0
  %1318 = vmatpush1.msra.mxu0 0.0
  %1319 = vmatprep.subr.mxu0 0.0
  %1320 = vmatpush1.msra.mxu0 0.0
  %1321 = vmatprep.subr.mxu0 0.0
  %1322 = vmatpush1.msra.mxu0 0.0
  %1323 = vmatprep.subr.mxu0 0.0
  %1324 = vmatpush1.msra.mxu0 0.0
  %1325 = vmatprep.subr.mxu0 0.0
  %1326 = vmatpush1.msra.mxu0 0.0
  %1327 = vmatprep.subr.mxu0 0.0
  %1328 = vmatpush1.msra.mxu0 0.0
  %1329 = vmatprep.subr.mxu0 0.0
  %1330 = vmatpush1.msra.mxu0 0.0
  %1331 = vmatprep.subr.mxu0 0.0
  %1332 = vmatpush1.msra.mxu0 0.0
  %1333 = vmatprep.subr.mxu0 0.0
  %1334 = vmatpush1.msra.mxu0 0.0
  %1335 = vmatprep.subr.mxu0 0.0
  %1336 = vmatpush1.msra.mxu0 0.0
  %1337 = vmatprep.subr.mxu0 0.0
  %1338 = vmatpush1.msra.mxu0 0.0
  %1339 = vmatprep.subr.mxu0 0.0
  %1340 = vmatpush1.msra.mxu0 0.0
  %1341 = vmatprep.subr.mxu0 0.0
  %1342 = vmatpush1.msra.mxu0 0.0
  %1343 = vmatprep.subr.mxu0 0.0
  %1344 = vmatpush1.msra.mxu0 0.0
  %1345 = vmatprep.subr.mxu0 0.0
  %1346 = vmatpush1.msra.mxu0 0.0
  %1347 = vmatprep.subr.mxu0 0.0
  %1348 = vmatpush1.msra.mxu0 0.0
  %1349 = vmatprep.subr.mxu0 0.0
  %1350 = vmatpush1.msra.mxu0 0.0
  %1351 = vmatprep.subr.mxu0 0.0
  %1352 = vmatpush1.msra.mxu0 0.0
  %1353 = vmatprep.subr.mxu0 0.0
  %1354 = vmatpush1.msra.mxu0 0.0
  %1355 = vmatprep.subr.mxu0 0.0
  %1356 = vmatpush1.msra.mxu0 0.0
  %1357 = vmatprep.subr.mxu0 0.0
  %1358 = vmatpush1.msra.mxu0 0.0
  %1359 = vmatprep.subr.mxu0 0.0
  %1360 = vmatpush1.msra.mxu0 0.0
  %1361 = vmatprep.subr.mxu0 0.0
  %1362 = vmatpush1.msra.mxu0 0.0
  %1363 = vmatprep.subr.mxu0 0.0
  %1364 = vmatpush1.msra.mxu0 0.0
  %1365 = vmatprep.subr.mxu0 0.0
  %1366 = vmatpush1.msra.mxu0 0.0
  %1367 = vmatprep.subr.mxu0 0.0
  %1368 = vmatpush1.msra.mxu0 0.0
  %1369 = vmatprep.mubr.f32.mxu0 0.0
  %1370 = vmatmul.mubr.f32.gmra.mrb[0].mxu0 %v1303
  %v1371 = vpop.f32.mrb[0].mxu0
  %v1372 = vadd.f32 0.0, %v1371
  %v1373 = vpop.f32.mrb[0].mxu0
  %v1374 = vadd.f32 0.0, %v1373
  %1375 = vdwg.mxu0
  %v1376 = vadd.f32 %v1288, %v1372
  %v1377 = vadd.f32 %v1289, %v1374
  %v1378 = vmul.f32 %v1037, %v493
  %v1379 = vmul.f32 %v1038, %v496
  %1380 = vrot.lane.b32.xlu0 %v1041, 96
  %v1381 = vpop.permute.xlu0 %1380
  %1384 = vrot.lane.b32.xlu0 %v1378, 120
  %v1385 = vpop.permute.xlu0 %1384
  %1386 = vrot.lane.b32.xlu0 %v1379, 120
  %v1387 = vpop.permute.xlu0 %1386
  %v1388 = vsel %vm509, %v1385, %v1387
  %v1391 = vsel %vm68, %v1381, 0
  %1393 = vmatprep.subr.mxu0 %v1387
  %1394 = vmatpush1.msra.mxu0 %v1388
  %1395 = vmatprep.subr.mxu0 0.0
  %1396 = vmatpush1.msra.mxu0 0.0
  %1397 = vmatprep.subr.mxu0 0.0
  %1398 = vmatpush1.msra.mxu0 0.0
  %1399 = vmatprep.subr.mxu0 0.0
  %1400 = vmatpush1.msra.mxu0 0.0
  %1401 = vmatprep.subr.mxu0 0.0
  %1402 = vmatpush1.msra.mxu0 0.0
  %1403 = vmatprep.subr.mxu0 0.0
  %1404 = vmatpush1.msra.mxu0 0.0
  %1405 = vmatprep.subr.mxu0 0.0
  %1406 = vmatpush1.msra.mxu0 0.0
  %1407 = vmatprep.subr.mxu0 0.0
  %1408 = vmatpush1.msra.mxu0 0.0
  %1409 = vmatprep.subr.mxu0 0.0
  %1410 = vmatpush1.msra.mxu0 0.0
  %1411 = vmatprep.subr.mxu0 0.0
  %1412 = vmatpush1.msra.mxu0 0.0
  %1413 = vmatprep.subr.mxu0 0.0
  %1414 = vmatpush1.msra.mxu0 0.0
  %1415 = vmatprep.subr.mxu0 0.0
  %1416 = vmatpush1.msra.mxu0 0.0
  %1417 = vmatprep.subr.mxu0 0.0
  %1418 = vmatpush1.msra.mxu0 0.0
  %1419 = vmatprep.subr.mxu0 0.0
  %1420 = vmatpush1.msra.mxu0 0.0
  %1421 = vmatprep.subr.mxu0 0.0
  %1422 = vmatpush1.msra.mxu0 0.0
  %1423 = vmatprep.subr.mxu0 0.0
  %1424 = vmatpush1.msra.mxu0 0.0
  %1425 = vmatprep.subr.mxu0 0.0
  %1426 = vmatpush1.msra.mxu0 0.0
  %1427 = vmatprep.subr.mxu0 0.0
  %1428 = vmatpush1.msra.mxu0 0.0
  %1429 = vmatprep.subr.mxu0 0.0
  %1430 = vmatpush1.msra.mxu0 0.0
  %1431 = vmatprep.subr.mxu0 0.0
  %1432 = vmatpush1.msra.mxu0 0.0
  %1433 = vmatprep.subr.mxu0 0.0
  %1434 = vmatpush1.msra.mxu0 0.0
  %1435 = vmatprep.subr.mxu0 0.0
  %1436 = vmatpush1.msra.mxu0 0.0
  %1437 = vmatprep.subr.mxu0 0.0
  %1438 = vmatpush1.msra.mxu0 0.0
  %1439 = vmatprep.subr.mxu0 0.0
  %1440 = vmatpush1.msra.mxu0 0.0
  %1441 = vmatprep.subr.mxu0 0.0
  %1442 = vmatpush1.msra.mxu0 0.0
  %1443 = vmatprep.subr.mxu0 0.0
  %1444 = vmatpush1.msra.mxu0 0.0
  %1445 = vmatprep.subr.mxu0 0.0
  %1446 = vmatpush1.msra.mxu0 0.0
  %1447 = vmatprep.subr.mxu0 0.0
  %1448 = vmatpush1.msra.mxu0 0.0
  %1449 = vmatprep.subr.mxu0 0.0
  %1450 = vmatpush1.msra.mxu0 0.0
  %1451 = vmatprep.subr.mxu0 0.0
  %1452 = vmatpush1.msra.mxu0 0.0
  %1453 = vmatprep.subr.mxu0 0.0
  %1454 = vmatpush1.msra.mxu0 0.0
  %1455 = vmatprep.subr.mxu0 0.0
  %1456 = vmatpush1.msra.mxu0 0.0
  %1457 = vmatprep.mubr.f32.mxu0 0.0
  %1458 = vmatmul.mubr.f32.gmra.mrb[0].mxu0 %v1391
  %v1459 = vpop.f32.mrb[0].mxu0
  %v1460 = vadd.f32 0.0, %v1459
  %v1461 = vpop.f32.mrb[0].mxu0
  %v1462 = vadd.f32 0.0, %v1461
  %1463 = vdwg.mxu0
  %v1464 = vadd.f32 %v1376, %v1460
  %v1465 = vadd.f32 %v1377, %v1462
  %v1466 = vmul.f32 %v1037, %v599
  %v1467 = vmul.f32 %v1038, %v603
  %1468 = vrot.lane.b32.xlu0 %v1041, 88
  %v1469 = vpop.permute.xlu0 %1468
  %1472 = vrot.lane.b32.xlu0 %v1466, 119
  %v1473 = vpop.permute.xlu0 %1472
  %1474 = vrot.lane.b32.xlu0 %v1467, 119
  %v1475 = vpop.permute.xlu0 %1474
  %v1476 = vsel %vm616, %v1473, %v1475
  %v1479 = vsel %vm68, %v1469, 0
  %1481 = vmatprep.subr.mxu0 %v1475
  %1482 = vmatpush1.msra.mxu0 %v1476
  %1483 = vmatprep.subr.mxu0 0.0
  %1484 = vmatpush1.msra.mxu0 0.0
  %1485 = vmatprep.subr.mxu0 0.0
  %1486 = vmatpush1.msra.mxu0 0.0
  %1487 = vmatprep.subr.mxu0 0.0
  %1488 = vmatpush1.msra.mxu0 0.0
  %1489 = vmatprep.subr.mxu0 0.0
  %1490 = vmatpush1.msra.mxu0 0.0
  %1491 = vmatprep.subr.mxu0 0.0
  %1492 = vmatpush1.msra.mxu0 0.0
  %1493 = vmatprep.subr.mxu0 0.0
  %1494 = vmatpush1.msra.mxu0 0.0
  %1495 = vmatprep.subr.mxu0 0.0
  %1496 = vmatpush1.msra.mxu0 0.0
  %1497 = vmatprep.subr.mxu0 0.0
  %1498 = vmatpush1.msra.mxu0 0.0
  %1499 = vmatprep.subr.mxu0 0.0
  %1500 = vmatpush1.msra.mxu0 0.0
  %1501 = vmatprep.subr.mxu0 0.0
  %1502 = vmatpush1.msra.mxu0 0.0
  %1503 = vmatprep.subr.mxu0 0.0
  %1504 = vmatpush1.msra.mxu0 0.0
  %1505 = vmatprep.subr.mxu0 0.0
  %1506 = vmatpush1.msra.mxu0 0.0
  %1507 = vmatprep.subr.mxu0 0.0
  %1508 = vmatpush1.msra.mxu0 0.0
  %1509 = vmatprep.subr.mxu0 0.0
  %1510 = vmatpush1.msra.mxu0 0.0
  %1511 = vmatprep.subr.mxu0 0.0
  %1512 = vmatpush1.msra.mxu0 0.0
  %1513 = vmatprep.subr.mxu0 0.0
  %1514 = vmatpush1.msra.mxu0 0.0
  %1515 = vmatprep.subr.mxu0 0.0
  %1516 = vmatpush1.msra.mxu0 0.0
  %1517 = vmatprep.subr.mxu0 0.0
  %1518 = vmatpush1.msra.mxu0 0.0
  %1519 = vmatprep.subr.mxu0 0.0
  %1520 = vmatpush1.msra.mxu0 0.0
  %1521 = vmatprep.subr.mxu0 0.0
  %1522 = vmatpush1.msra.mxu0 0.0
  %1523 = vmatprep.subr.mxu0 0.0
  %1524 = vmatpush1.msra.mxu0 0.0
  %1525 = vmatprep.subr.mxu0 0.0
  %1526 = vmatpush1.msra.mxu0 0.0
  %1527 = vmatprep.subr.mxu0 0.0
  %1528 = vmatpush1.msra.mxu0 0.0
  %1529 = vmatprep.subr.mxu0 0.0
  %1530 = vmatpush1.msra.mxu0 0.0
  %1531 = vmatprep.subr.mxu0 0.0
  %1532 = vmatpush1.msra.mxu0 0.0
  %1533 = vmatprep.subr.mxu0 0.0
  %1534 = vmatpush1.msra.mxu0 0.0
  %1535 = vmatprep.subr.mxu0 0.0
  %1536 = vmatpush1.msra.mxu0 0.0
  %1537 = vmatprep.subr.mxu0 0.0
  %1538 = vmatpush1.msra.mxu0 0.0
  %1539 = vmatprep.subr.mxu0 0.0
  %1540 = vmatpush1.msra.mxu0 0.0
  %1541 = vmatprep.subr.mxu0 0.0
  %1542 = vmatpush1.msra.mxu0 0.0
  %1543 = vmatprep.subr.mxu0 0.0
  %1544 = vmatpush1.msra.mxu0 0.0
  %1545 = vmatprep.mubr.f32.mxu0 0.0
  %1546 = vmatmul.mubr.f32.gmra.mrb[0].mxu0 %v1479
  %v1547 = vpop.f32.mrb[0].mxu0
  %v1548 = vadd.f32 0.0, %v1547
  %v1549 = vpop.f32.mrb[0].mxu0
  %v1550 = vadd.f32 0.0, %v1549
  %1551 = vdwg.mxu0
  %v1552 = vadd.f32 %v1464, %v1548
  %v1553 = vadd.f32 %v1465, %v1550
  %v1554 = vmul.f32 %v1037, %v706
  %v1555 = vmul.f32 %v1038, %v710
  %1556 = vrot.lane.b32.xlu0 %v1041, 80
  %v1557 = vpop.permute.xlu0 %1556
  %1560 = vrot.lane.b32.xlu0 %v1554, 114
  %v1561 = vpop.permute.xlu0 %1560
  %1562 = vrot.lane.b32.xlu0 %v1555, 114
  %v1563 = vpop.permute.xlu0 %1562
  %v1564 = vsel %vm723, %v1561, %v1563
  %v1567 = vsel %vm68, %v1557, 0
  %1569 = vmatprep.subr.mxu0 %v1563
  %1570 = vmatpush1.msra.mxu0 %v1564
  %1571 = vmatprep.subr.mxu0 0.0
  %1572 = vmatpush1.msra.mxu0 0.0
  %1573 = vmatprep.subr.mxu0 0.0
  %1574 = vmatpush1.msra.mxu0 0.0
  %1575 = vmatprep.subr.mxu0 0.0
  %1576 = vmatpush1.msra.mxu0 0.0
  %1577 = vmatprep.subr.mxu0 0.0
  %1578 = vmatpush1.msra.mxu0 0.0
  %1579 = vmatprep.subr.mxu0 0.0
  %1580 = vmatpush1.msra.mxu0 0.0
  %1581 = vmatprep.subr.mxu0 0.0
  %1582 = vmatpush1.msra.mxu0 0.0
  %1583 = vmatprep.subr.mxu0 0.0
  %1584 = vmatpush1.msra.mxu0 0.0
  %1585 = vmatprep.subr.mxu0 0.0
  %1586 = vmatpush1.msra.mxu0 0.0
  %1587 = vmatprep.subr.mxu0 0.0
  %1588 = vmatpush1.msra.mxu0 0.0
  %1589 = vmatprep.subr.mxu0 0.0
  %1590 = vmatpush1.msra.mxu0 0.0
  %1591 = vmatprep.subr.mxu0 0.0
  %1592 = vmatpush1.msra.mxu0 0.0
  %1593 = vmatprep.subr.mxu0 0.0
  %1594 = vmatpush1.msra.mxu0 0.0
  %1595 = vmatprep.subr.mxu0 0.0
  %1596 = vmatpush1.msra.mxu0 0.0
  %1597 = vmatprep.subr.mxu0 0.0
  %1598 = vmatpush1.msra.mxu0 0.0
  %1599 = vmatprep.subr.mxu0 0.0
  %1600 = vmatpush1.msra.mxu0 0.0
  %1601 = vmatprep.subr.mxu0 0.0
  %1602 = vmatpush1.msra.mxu0 0.0
  %1603 = vmatprep.subr.mxu0 0.0
  %1604 = vmatpush1.msra.mxu0 0.0
  %1605 = vmatprep.subr.mxu0 0.0
  %1606 = vmatpush1.msra.mxu0 0.0
  %1607 = vmatprep.subr.mxu0 0.0
  %1608 = vmatpush1.msra.mxu0 0.0
  %1609 = vmatprep.subr.mxu0 0.0
  %1610 = vmatpush1.msra.mxu0 0.0
  %1611 = vmatprep.subr.mxu0 0.0
  %1612 = vmatpush1.msra.mxu0 0.0
  %1613 = vmatprep.subr.mxu0 0.0
  %1614 = vmatpush1.msra.mxu0 0.0
  %1615 = vmatprep.subr.mxu0 0.0
  %1616 = vmatpush1.msra.mxu0 0.0
  %1617 = vmatprep.subr.mxu0 0.0
  %1618 = vmatpush1.msra.mxu0 0.0
  %1619 = vmatprep.subr.mxu0 0.0
  %1620 = vmatpush1.msra.mxu0 0.0
  %1621 = vmatprep.subr.mxu0 0.0
  %1622 = vmatpush1.msra.mxu0 0.0
  %1623 = vmatprep.subr.mxu0 0.0
  %1624 = vmatpush1.msra.mxu0 0.0
  %1625 = vmatprep.subr.mxu0 0.0
  %1626 = vmatpush1.msra.mxu0 0.0
  %1627 = vmatprep.subr.mxu0 0.0
  %1628 = vmatpush1.msra.mxu0 0.0
  %1629 = vmatprep.subr.mxu0 0.0
  %1630 = vmatpush1.msra.mxu0 0.0
  %1631 = vmatprep.subr.mxu0 0.0
  %1632 = vmatpush1.msra.mxu0 0.0
  %1633 = vmatprep.mubr.f32.mxu0 0.0
  %1634 = vmatmul.mubr.f32.gmra.mrb[0].mxu0 %v1567
  %v1635 = vpop.f32.mrb[0].mxu0
  %v1636 = vadd.f32 0.0, %v1635
  %v1637 = vpop.f32.mrb[0].mxu0
  %v1638 = vadd.f32 0.0, %v1637
  %1639 = vdwg.mxu0
  %v1640 = vadd.f32 %v1552, %v1636
  %v1641 = vadd.f32 %v1553, %v1638
  %v1642 = vmul.f32 %v1037, %v813
  %v1643 = vmul.f32 %v1038, %v817
  %1644 = vrot.lane.b32.xlu0 %v1041, 72
  %v1645 = vpop.permute.xlu0 %1644
  %1648 = vrot.lane.b32.xlu0 %v1642, 113
  %v1649 = vpop.permute.xlu0 %1648
  %1650 = vrot.lane.b32.xlu0 %v1643, 113
  %v1651 = vpop.permute.xlu0 %1650
  %v1652 = vsel %vm830, %v1649, %v1651
  %v1655 = vsel %vm68, %v1645, 0
  %1657 = vmatprep.subr.mxu0 %v1651
  %1658 = vmatpush1.msra.mxu0 %v1652
  %1659 = vmatprep.subr.mxu0 0.0
  %1660 = vmatpush1.msra.mxu0 0.0
  %1661 = vmatprep.subr.mxu0 0.0
  %1662 = vmatpush1.msra.mxu0 0.0
  %1663 = vmatprep.subr.mxu0 0.0
  %1664 = vmatpush1.msra.mxu0 0.0
  %1665 = vmatprep.subr.mxu0 0.0
  %1666 = vmatpush1.msra.mxu0 0.0
  %1667 = vmatprep.subr.mxu0 0.0
  %1668 = vmatpush1.msra.mxu0 0.0
  %1669 = vmatprep.subr.mxu0 0.0
  %1670 = vmatpush1.msra.mxu0 0.0
  %1671 = vmatprep.subr.mxu0 0.0
  %1672 = vmatpush1.msra.mxu0 0.0
  %1673 = vmatprep.subr.mxu0 0.0
  %1674 = vmatpush1.msra.mxu0 0.0
  %1675 = vmatprep.subr.mxu0 0.0
  %1676 = vmatpush1.msra.mxu0 0.0
  %1677 = vmatprep.subr.mxu0 0.0
  %1678 = vmatpush1.msra.mxu0 0.0
  %1679 = vmatprep.subr.mxu0 0.0
  %1680 = vmatpush1.msra.mxu0 0.0
  %1681 = vmatprep.subr.mxu0 0.0
  %1682 = vmatpush1.msra.mxu0 0.0
  %1683 = vmatprep.subr.mxu0 0.0
  %1684 = vmatpush1.msra.mxu0 0.0
  %1685 = vmatprep.subr.mxu0 0.0
  %1686 = vmatpush1.msra.mxu0 0.0
  %1687 = vmatprep.subr.mxu0 0.0
  %1688 = vmatpush1.msra.mxu0 0.0
  %1689 = vmatprep.subr.mxu0 0.0
  %1690 = vmatpush1.msra.mxu0 0.0
  %1691 = vmatprep.subr.mxu0 0.0
  %1692 = vmatpush1.msra.mxu0 0.0
  %1693 = vmatprep.subr.mxu0 0.0
  %1694 = vmatpush1.msra.mxu0 0.0
  %1695 = vmatprep.subr.mxu0 0.0
  %1696 = vmatpush1.msra.mxu0 0.0
  %1697 = vmatprep.subr.mxu0 0.0
  %1698 = vmatpush1.msra.mxu0 0.0
  %1699 = vmatprep.subr.mxu0 0.0
  %1700 = vmatpush1.msra.mxu0 0.0
  %1701 = vmatprep.subr.mxu0 0.0
  %1702 = vmatpush1.msra.mxu0 0.0
  %1703 = vmatprep.subr.mxu0 0.0
  %1704 = vmatpush1.msra.mxu0 0.0
  %1705 = vmatprep.subr.mxu0 0.0
  %1706 = vmatpush1.msra.mxu0 0.0
  %1707 = vmatprep.subr.mxu0 0.0
  %1708 = vmatpush1.msra.mxu0 0.0
  %1709 = vmatprep.subr.mxu0 0.0
  %1710 = vmatpush1.msra.mxu0 0.0
  %1711 = vmatprep.subr.mxu0 0.0
  %1712 = vmatpush1.msra.mxu0 0.0
  %1713 = vmatprep.subr.mxu0 0.0
  %1714 = vmatpush1.msra.mxu0 0.0
  %1715 = vmatprep.subr.mxu0 0.0
  %1716 = vmatpush1.msra.mxu0 0.0
  %1717 = vmatprep.subr.mxu0 0.0
  %1718 = vmatpush1.msra.mxu0 0.0
  %1719 = vmatprep.subr.mxu0 0.0
  %1720 = vmatpush1.msra.mxu0 0.0
  %1721 = vmatprep.mubr.f32.mxu0 0.0
  %1722 = vmatmul.mubr.f32.gmra.mrb[0].mxu0 %v1655
  %v1723 = vpop.f32.mrb[0].mxu0
  %v1724 = vadd.f32 0.0, %v1723
  %v1725 = vpop.f32.mrb[0].mxu0
  %v1726 = vadd.f32 0.0, %v1725
  %1727 = vdwg.mxu0
  %v1728 = vadd.f32 %v1640, %v1724
  %v1729 = vadd.f32 %v1641, %v1726
  %v1730 = vmul.f32 %v1037, %v920
  %v1731 = vmul.f32 %v1038, %v924
  %1732 = vrot.lane.b32.xlu0 %v1041, 64
  %v1733 = vpop.permute.xlu0 %1732
  %1736 = vrot.lane.b32.xlu0 %v1730, 112
  %v1737 = vpop.permute.xlu0 %1736
  %1738 = vrot.lane.b32.xlu0 %v1731, 112
  %v1739 = vpop.permute.xlu0 %1738
  %v1740 = vsel %vm937, %v1737, %v1739
  %v1743 = vsel %vm68, %v1733, 0
  %1745 = vmatprep.subr.mxu0 %v1739
  %1746 = vmatpush1.msra.mxu0 %v1740
  %1747 = vmatprep.subr.mxu0 0.0
  %1748 = vmatpush1.msra.mxu0 0.0
  %1749 = vmatprep.subr.mxu0 0.0
  %1750 = vmatpush1.msra.mxu0 0.0
  %1751 = vmatprep.subr.mxu0 0.0
  %1752 = vmatpush1.msra.mxu0 0.0
  %1753 = vmatprep.subr.mxu0 0.0
  %1754 = vmatpush1.msra.mxu0 0.0
  %1755 = vmatprep.subr.mxu0 0.0
  %1756 = vmatpush1.msra.mxu0 0.0
  %1757 = vmatprep.subr.mxu0 0.0
  %1758 = vmatpush1.msra.mxu0 0.0
  %1759 = vmatprep.subr.mxu0 0.0
  %1760 = vmatpush1.msra.mxu0 0.0
  %1761 = vmatprep.subr.mxu0 0.0
  %1762 = vmatpush1.msra.mxu0 0.0
  %1763 = vmatprep.subr.mxu0 0.0
  %1764 = vmatpush1.msra.mxu0 0.0
  %1765 = vmatprep.subr.mxu0 0.0
  %1766 = vmatpush1.msra.mxu0 0.0
  %1767 = vmatprep.subr.mxu0 0.0
  %1768 = vmatpush1.msra.mxu0 0.0
  %1769 = vmatprep.subr.mxu0 0.0
  %1770 = vmatpush1.msra.mxu0 0.0
  %1771 = vmatprep.subr.mxu0 0.0
  %1772 = vmatpush1.msra.mxu0 0.0
  %1773 = vmatprep.subr.mxu0 0.0
  %1774 = vmatpush1.msra.mxu0 0.0
  %1775 = vmatprep.subr.mxu0 0.0
  %1776 = vmatpush1.msra.mxu0 0.0
  %1777 = vmatprep.subr.mxu0 0.0
  %1778 = vmatpush1.msra.mxu0 0.0
  %1779 = vmatprep.subr.mxu0 0.0
  %1780 = vmatpush1.msra.mxu0 0.0
  %1781 = vmatprep.subr.mxu0 0.0
  %1782 = vmatpush1.msra.mxu0 0.0
  %1783 = vmatprep.subr.mxu0 0.0
  %1784 = vmatpush1.msra.mxu0 0.0
  %1785 = vmatprep.subr.mxu0 0.0
  %1786 = vmatpush1.msra.mxu0 0.0
  %1787 = vmatprep.subr.mxu0 0.0
  %1788 = vmatpush1.msra.mxu0 0.0
  %1789 = vmatprep.subr.mxu0 0.0
  %1790 = vmatpush1.msra.mxu0 0.0
  %1791 = vmatprep.subr.mxu0 0.0
  %1792 = vmatpush1.msra.mxu0 0.0
  %1793 = vmatprep.subr.mxu0 0.0
  %1794 = vmatpush1.msra.mxu0 0.0
  %1795 = vmatprep.subr.mxu0 0.0
  %1796 = vmatpush1.msra.mxu0 0.0
  %1797 = vmatprep.subr.mxu0 0.0
  %1798 = vmatpush1.msra.mxu0 0.0
  %1799 = vmatprep.subr.mxu0 0.0
  %1800 = vmatpush1.msra.mxu0 0.0
  %1801 = vmatprep.subr.mxu0 0.0
  %1802 = vmatpush1.msra.mxu0 0.0
  %1803 = vmatprep.subr.mxu0 0.0
  %1804 = vmatpush1.msra.mxu0 0.0
  %1805 = vmatprep.subr.mxu0 0.0
  %1806 = vmatpush1.msra.mxu0 0.0
  %1807 = vmatprep.subr.mxu0 0.0
  %1808 = vmatpush1.msra.mxu0 0.0
  %1809 = vmatprep.mubr.f32.mxu0 0.0
  %1810 = vmatmul.mubr.f32.gmra.mrb[0].mxu0 %v1743
  %v1811 = vpop.f32.mrb[0].mxu0
  %v1812 = vadd.f32 0.0, %v1811
  %v1813 = vpop.f32.mrb[0].mxu0
  %v1814 = vadd.f32 0.0, %v1813
  %1815 = vdwg.mxu0
  %v1816 = vadd.f32 %v1728, %v1812
  %v1817 = vadd.f32 %v1729, %v1814
  %v1818 = vld [vmem:[%s5] sm:$0xff]
  %1820 = vset.pattern.permute.xlu0 0
  %1821 = vperm.xlu0 %1820, %v1818
  %v1822 = vpop.permute.xlu0 %1821
  %v1824 = vadd.f32 %v1816, %v1822
  %v1825 = vadd.f32 %v1817, %v1822
  %v1826 = vmax.f32 %v1824, 0.0
  %v1827 = vmax.f32 %v1825, 0.0
  %1830 = vrot.lane.b32.xlu0 %v1826, 8
  %v1831 = vpop.permute.xlu0 %1830
  %1832 = vrot.lane.b32.xlu0 %v1827, 8
  %v1833 = vpop.permute.xlu0 %1832
  %v1834 = vsel %vm68, %v1831, %v1833
  %1837 = vst.msk [vmem:[#allocation2] sm:$0xff] %vm72, %v1831
  %1838 = vst.msk [vmem:[#allocation2 + $0x8] sm:$0xff] %vm74, %v1834
  %v1839 = vld [vmem:[#allocation2] sm:$0xff]
  %v1840 = vld [vmem:[#allocation2 + $0x8] sm:$0xff]
  %v1841 = vmul.f32 %v1839, %v81
  %v1842 = vmul.f32 %v1840, %v85
  %v1843 = vld [vmem:[%s6] sm:$0xff]
  %v1844 = vmul.f32 %v1839, %v100
  %v1845 = vmul.f32 %v1840, %v104
  %1847 = vrot.lane.b32.xlu0 %v1843, 120
  %v1848 = vpop.permute.xlu0 %1847
  %1851 = vrot.lane.b32.xlu0 %v1844, 127
  %v1852 = vpop.permute.xlu0 %1851
  %1853 = vrot.lane.b32.xlu0 %v1845, 127
  %v1854 = vpop.permute.xlu0 %1853
  %v1855 = vsel %vm118, %v1852, %v1854
  %v1858 = vsel %vm68, %v1848, 0
  %1860 = vmatprep.subr.mxu0 %v1854
  %1861 = vmatpush1.msra.mxu0 %v1855
  %1862 = vmatprep.subr.mxu0 0.0
  %1863 = vmatpush1.msra.mxu0 0.0
  %1864 = vmatprep.subr.mxu0 0.0
  %1865 = vmatpush1.msra.mxu0 0.0
  %1866 = vmatprep.subr.mxu0 0.0
  %1867 = vmatpush1.msra.mxu0 0.0
  %1868 = vmatprep.subr.mxu0 0.0
  %1869 = vmatpush1.msra.mxu0 0.0
  %1870 = vmatprep.subr.mxu0 0.0
  %1871 = vmatpush1.msra.mxu0 0.0
  %1872 = vmatprep.subr.mxu0 0.0
  %1873 = vmatpush1.msra.mxu0 0.0
  %1874 = vmatprep.subr.mxu0 0.0
  %1875 = vmatpush1.msra.mxu0 0.0
  %1876 = vmatprep.subr.mxu0 0.0
  %1877 = vmatpush1.msra.mxu0 0.0
  %1878 = vmatprep.subr.mxu0 0.0
  %1879 = vmatpush1.msra.mxu0 0.0
  %1880 = vmatprep.subr.mxu0 0.0
  %1881 = vmatpush1.msra.mxu0 0.0
  %1882 = vmatprep.subr.mxu0 0.0
  %1883 = vmatpush1.msra.mxu0 0.0
  %1884 = vmatprep.subr.mxu0 0.0
  %1885 = vmatpush1.msra.mxu0 0.0
  %1886 = vmatprep.subr.mxu0 0.0
  %1887 = vmatpush1.msra.mxu0 0.0
  %1888 = vmatprep.subr.mxu0 0.0
  %1889 = vmatpush1.msra.mxu0 0.0
  %1890 = vmatprep.subr.mxu0 0.0
  %1891 = vmatpush1.msra.mxu0 0.0
  %1892 = vmatprep.subr.mxu0 0.0
  %1893 = vmatpush1.msra.mxu0 0.0
  %1894 = vmatprep.subr.mxu0 0.0
  %1895 = vmatpush1.msra.mxu0 0.0
  %1896 = vmatprep.subr.mxu0 0.0
  %1897 = vmatpush1.msra.mxu0 0.0
  %1898 = vmatprep.subr.mxu0 0.0
  %1899 = vmatpush1.msra.mxu0 0.0
  %1900 = vmatprep.subr.mxu0 0.0
  %1901 = vmatpush1.msra.mxu0 0.0
  %1902 = vmatprep.subr.mxu0 0.0
  %1903 = vmatpush1.msra.mxu0 0.0
  %1904 = vmatprep.subr.mxu0 0.0
  %1905 = vmatpush1.msra.mxu0 0.0
  %1906 = vmatprep.subr.mxu0 0.0
  %1907 = vmatpush1.msra.mxu0 0.0
  %1908 = vmatprep.subr.mxu0 0.0
  %1909 = vmatpush1.msra.mxu0 0.0
  %1910 = vmatprep.subr.mxu0 0.0
  %1911 = vmatpush1.msra.mxu0 0.0
  %1912 = vmatprep.subr.mxu0 0.0
  %1913 = vmatpush1.msra.mxu0 0.0
  %1914 = vmatprep.subr.mxu0 0.0
  %1915 = vmatpush1.msra.mxu0 0.0
  %1916 = vmatprep.subr.mxu0 0.0
  %1917 = vmatpush1.msra.mxu0 0.0
  %1918 = vmatprep.subr.mxu0 0.0
  %1919 = vmatpush1.msra.mxu0 0.0
  %1920 = vmatprep.subr.mxu0 0.0
  %1921 = vmatpush1.msra.mxu0 0.0
  %1922 = vmatprep.subr.mxu0 0.0
  %1923 = vmatpush1.msra.mxu0 0.0
  %1924 = vmatprep.mubr.f32.mxu0 0.0
  %1925 = vmatmul.mubr.f32.gmra.mrb[0].mxu0 %v1858
  %v1926 = vpop.f32.mrb[0].mxu0
  %v1927 = vadd.f32 0.0, %v1926
  %v1928 = vpop.f32.mrb[0].mxu0
  %v1929 = vadd.f32 0.0, %v1928
  %1930 = vdwg.mxu0
  %v1931 = vsel %vm68, %v1843, 0
  %1933 = vmatprep.subr.mxu0 %v1842
  %1934 = vmatpush1.msra.mxu0 %v1841
  %1935 = vmatprep.subr.mxu0 0.0
  %1936 = vmatpush1.msra.mxu0 0.0
  %1937 = vmatprep.subr.mxu0 0.0
  %1938 = vmatpush1.msra.mxu0 0.0
  %1939 = vmatprep.subr.mxu0 0.0
  %1940 = vmatpush1.msra.mxu0 0.0
  %1941 = vmatprep.subr.mxu0 0.0
  %1942 = vmatpush1.msra.mxu0 0.0
  %1943 = vmatprep.subr.mxu0 0.0
  %1944 = vmatpush1.msra.mxu0 0.0
  %1945 = vmatprep.subr.mxu0 0.0
  %1946 = vmatpush1.msra.mxu0 0.0
  %1947 = vmatprep.subr.mxu0 0.0
  %1948 = vmatpush1.msra.mxu0 0.0
  %1949 = vmatprep.subr.mxu0 0.0
  %1950 = vmatpush1.msra.mxu0 0.0
  %1951 = vmatprep.subr.mxu0 0.0
  %1952 = vmatpush1.msra.mxu0 0.0
  %1953 = vmatprep.subr.mxu0 0.0
  %1954 = vmatpush1.msra.mxu0 0.0
  %1955 = vmatprep.subr.mxu0 0.0
  %1956 = vmatpush1.msra.mxu0 0.0
  %1957 = vmatprep.subr.mxu0 0.0
  %1958 = vmatpush1.msra.mxu0 0.0
  %1959 = vmatprep.subr.mxu0 0.0
  %1960 = vmatpush1.msra.mxu0 0.0
  %1961 = vmatprep.subr.mxu0 0.0
  %1962 = vmatpush1.msra.mxu0 0.0
  %1963 = vmatprep.subr.mxu0 0.0
  %1964 = vmatpush1.msra.mxu0 0.0
  %1965 = vmatprep.subr.mxu0 0.0
  %1966 = vmatpush1.msra.mxu0 0.0
  %1967 = vmatprep.subr.mxu0 0.0
  %1968 = vmatpush1.msra.mxu0 0.0
  %1969 = vmatprep.subr.mxu0 0.0
  %1970 = vmatpush1.msra.mxu0 0.0
  %1971 = vmatprep.subr.mxu0 0.0
  %1972 = vmatpush1.msra.mxu0 0.0
  %1973 = vmatprep.subr.mxu0 0.0
  %1974 = vmatpush1.msra.mxu0 0.0
  %1975 = vmatprep.subr.mxu0 0.0
  %1976 = vmatpush1.msra.mxu0 0.0
  %1977 = vmatprep.subr.mxu0 0.0
  %1978 = vmatpush1.msra.mxu0 0.0
  %1979 = vmatprep.subr.mxu0 0.0
  %1980 = vmatpush1.msra.mxu0 0.0
  %1981 = vmatprep.subr.mxu0 0.0
  %1982 = vmatpush1.msra.mxu0 0.0
  %1983 = vmatprep.subr.mxu0 0.0
  %1984 = vmatpush1.msra.mxu0 0.0
  %1985 = vmatprep.subr.mxu0 0.0
  %1986 = vmatpush1.msra.mxu0 0.0
  %1987 = vmatprep.subr.mxu0 0.0
  %1988 = vmatpush1.msra.mxu0 0.0
  %1989 = vmatprep.subr.mxu0 0.0
  %1990 = vmatpush1.msra.mxu0 0.0
  %1991 = vmatprep.subr.mxu0 0.0
  %1992 = vmatpush1.msra.mxu0 0.0
  %1993 = vmatprep.subr.mxu0 0.0
  %1994 = vmatpush1.msra.mxu0 0.0
  %1995 = vmatprep.subr.mxu0 0.0
  %1996 = vmatpush1.msra.mxu0 0.0
  %1997 = vmatprep.mubr.f32.mxu0 0.0
  %1998 = vmatmul.mubr.f32.gmra.mrb[0].mxu0 %v1931
  %v1999 = vpop.f32.mrb[0].mxu0
  %v2000 = vadd.f32 %v1927, %v1999
  %v2001 = vpop.f32.mrb[0].mxu0
  %v2002 = vadd.f32 %v1929, %v2001
  %2003 = vdwg.mxu0
  %v2004 = vmul.f32 %v1839, %v279
  %v2005 = vmul.f32 %v1840, %v283
  %2006 = vrot.lane.b32.xlu0 %v1843, 112
  %v2007 = vpop.permute.xlu0 %2006
  %2010 = vrot.lane.b32.xlu0 %v2004, 126
  %v2011 = vpop.permute.xlu0 %2010
  %2012 = vrot.lane.b32.xlu0 %v2005, 126
  %v2013 = vpop.permute.xlu0 %2012
  %v2014 = vsel %vm296, %v2011, %v2013
  %v2017 = vsel %vm68, %v2007, 0
  %2019 = vmatprep.subr.mxu0 %v2013
  %2020 = vmatpush1.msra.mxu0 %v2014
  %2021 = vmatprep.subr.mxu0 0.0
  %2022 = vmatpush1.msra.mxu0 0.0
  %2023 = vmatprep.subr.mxu0 0.0
  %2024 = vmatpush1.msra.mxu0 0.0
  %2025 = vmatprep.subr.mxu0 0.0
  %2026 = vmatpush1.msra.mxu0 0.0
  %2027 = vmatprep.subr.mxu0 0.0
  %2028 = vmatpush1.msra.mxu0 0.0
  %2029 = vmatprep.subr.mxu0 0.0
  %2030 = vmatpush1.msra.mxu0 0.0
  %2031 = vmatprep.subr.mxu0 0.0
  %2032 = vmatpush1.msra.mxu0 0.0
  %2033 = vmatprep.subr.mxu0 0.0
  %2034 = vmatpush1.msra.mxu0 0.0
  %2035 = vmatprep.subr.mxu0 0.0
  %2036 = vmatpush1.msra.mxu0 0.0
  %2037 = vmatprep.subr.mxu0 0.0
  %2038 = vmatpush1.msra.mxu0 0.0
  %2039 = vmatprep.subr.mxu0 0.0
  %2040 = vmatpush1.msra.mxu0 0.0
  %2041 = vmatprep.subr.mxu0 0.0
  %2042 = vmatpush1.msra.mxu0 0.0
  %2043 = vmatprep.subr.mxu0 0.0
  %2044 = vmatpush1.msra.mxu0 0.0
  %2045 = vmatprep.subr.mxu0 0.0
  %2046 = vmatpush1.msra.mxu0 0.0
  %2047 = vmatprep.subr.mxu0 0.0
  %2048 = vmatpush1.msra.mxu0 0.0
  %2049 = vmatprep.subr.mxu0 0.0
  %2050 = vmatpush1.msra.mxu0 0.0
  %2051 = vmatprep.subr.mxu0 0.0
  %2052 = vmatpush1.msra.mxu0 0.0
  %2053 = vmatprep.subr.mxu0 0.0
  %2054 = vmatpush1.msra.mxu0 0.0
  %2055 = vmatprep.subr.mxu0 0.0
  %2056 = vmatpush1.msra.mxu0 0.0
  %2057 = vmatprep.subr.mxu0 0.0
  %2058 = vmatpush1.msra.mxu0 0.0
  %2059 = vmatprep.subr.mxu0 0.0
  %2060 = vmatpush1.msra.mxu0 0.0
  %2061 = vmatprep.subr.mxu0 0.0
  %2062 = vmatpush1.msra.mxu0 0.0
  %2063 = vmatprep.subr.mxu0 0.0
  %2064 = vmatpush1.msra.mxu0 0.0
  %2065 = vmatprep.subr.mxu0 0.0
  %2066 = vmatpush1.msra.mxu0 0.0
  %2067 = vmatprep.subr.mxu0 0.0
  %2068 = vmatpush1.msra.mxu0 0.0
  %2069 = vmatprep.subr.mxu0 0.0
  %2070 = vmatpush1.msra.mxu0 0.0
  %2071 = vmatprep.subr.mxu0 0.0
  %2072 = vmatpush1.msra.mxu0 0.0
  %2073 = vmatprep.subr.mxu0 0.0
  %2074 = vmatpush1.msra.mxu0 0.0
  %2075 = vmatprep.subr.mxu0 0.0
  %2076 = vmatpush1.msra.mxu0 0.0
  %2077 = vmatprep.subr.mxu0 0.0
  %2078 = vmatpush1.msra.mxu0 0.0
  %2079 = vmatprep.subr.mxu0 0.0
  %2080 = vmatpush1.msra.mxu0 0.0
  %2081 = vmatprep.subr.mxu0 0.0
  %2082 = vmatpush1.msra.mxu0 0.0
  %2083 = vmatprep.mubr.f32.mxu0 0.0
  %2084 = vmatmul.mubr.f32.gmra.mrb[0].mxu0 %v2017
  %v2085 = vpop.f32.mrb[0].mxu0
  %v2086 = vadd.f32 0.0, %v2085
  %v2087 = vpop.f32.mrb[0].mxu0
  %v2088 = vadd.f32 0.0, %v2087
  %2089 = vdwg.mxu0
  %v2090 = vadd.f32 %v2000, %v2086
  %v2091 = vadd.f32 %v2002, %v2088
  %v2092 = vmul.f32 %v1839, %v386
  %v2093 = vmul.f32 %v1840, %v390
  %2094 = vrot.lane.b32.xlu0 %v1843, 104
  %v2095 = vpop.permute.xlu0 %2094
  %2098 = vrot.lane.b32.xlu0 %v2092, 121
  %v2099 = vpop.permute.xlu0 %2098
  %2100 = vrot.lane.b32.xlu0 %v2093, 121
  %v2101 = vpop.permute.xlu0 %2100
  %v2102 = vsel %vm403, %v2099, %v2101
  %v2105 = vsel %vm68, %v2095, 0
  %2107 = vmatprep.subr.mxu0 %v2101
  %2108 = vmatpush1.msra.mxu0 %v2102
  %2109 = vmatprep.subr.mxu0 0.0
  %2110 = vmatpush1.msra.mxu0 0.0
  %2111 = vmatprep.subr.mxu0 0.0
  %2112 = vmatpush1.msra.mxu0 0.0
  %2113 = vmatprep.subr.mxu0 0.0
  %2114 = vmatpush1.msra.mxu0 0.0
  %2115 = vmatprep.subr.mxu0 0.0
  %2116 = vmatpush1.msra.mxu0 0.0
  %2117 = vmatprep.subr.mxu0 0.0
  %2118 = vmatpush1.msra.mxu0 0.0
  %2119 = vmatprep.subr.mxu0 0.0
  %2120 = vmatpush1.msra.mxu0 0.0
  %2121 = vmatprep.subr.mxu0 0.0
  %2122 = vmatpush1.msra.mxu0 0.0
  %2123 = vmatprep.subr.mxu0 0.0
  %2124 = vmatpush1.msra.mxu0 0.0
  %2125 = vmatprep.subr.mxu0 0.0
  %2126 = vmatpush1.msra.mxu0 0.0
  %2127 = vmatprep.subr.mxu0 0.0
  %2128 = vmatpush1.msra.mxu0 0.0
  %2129 = vmatprep.subr.mxu0 0.0
  %2130 = vmatpush1.msra.mxu0 0.0
  %2131 = vmatprep.subr.mxu0 0.0
  %2132 = vmatpush1.msra.mxu0 0.0
  %2133 = vmatprep.subr.mxu0 0.0
  %2134 = vmatpush1.msra.mxu0 0.0
  %2135 = vmatprep.subr.mxu0 0.0
  %2136 = vmatpush1.msra.mxu0 0.0
  %2137 = vmatprep.subr.mxu0 0.0
  %2138 = vmatpush1.msra.mxu0 0.0
  %2139 = vmatprep.subr.mxu0 0.0
  %2140 = vmatpush1.msra.mxu0 0.0
  %2141 = vmatprep.subr.mxu0 0.0
  %2142 = vmatpush1.msra.mxu0 0.0
  %2143 = vmatprep.subr.mxu0 0.0
  %2144 = vmatpush1.msra.mxu0 0.0
  %2145 = vmatprep.subr.mxu0 0.0
  %2146 = vmatpush1.msra.mxu0 0.0
  %2147 = vmatprep.subr.mxu0 0.0
  %2148 = vmatpush1.msra.mxu0 0.0
  %2149 = vmatprep.subr.mxu0 0.0
  %2150 = vmatpush1.msra.mxu0 0.0
  %2151 = vmatprep.subr.mxu0 0.0
  %2152 = vmatpush1.msra.mxu0 0.0
  %2153 = vmatprep.subr.mxu0 0.0
  %2154 = vmatpush1.msra.mxu0 0.0
  %2155 = vmatprep.subr.mxu0 0.0
  %2156 = vmatpush1.msra.mxu0 0.0
  %2157 = vmatprep.subr.mxu0 0.0
  %2158 = vmatpush1.msra.mxu0 0.0
  %2159 = vmatprep.subr.mxu0 0.0
  %2160 = vmatpush1.msra.mxu0 0.0
  %2161 = vmatprep.subr.mxu0 0.0
  %2162 = vmatpush1.msra.mxu0 0.0
  %2163 = vmatprep.subr.mxu0 0.0
  %2164 = vmatpush1.msra.mxu0 0.0
  %2165 = vmatprep.subr.mxu0 0.0
  %2166 = vmatpush1.msra.mxu0 0.0
  %2167 = vmatprep.subr.mxu0 0.0
  %2168 = vmatpush1.msra.mxu0 0.0
  %2169 = vmatprep.subr.mxu0 0.0
  %2170 = vmatpush1.msra.mxu0 0.0
  %2171 = vmatprep.mubr.f32.mxu0 0.0
  %2172 = vmatmul.mubr.f32.gmra.mrb[0].mxu0 %v2105
  %v2173 = vpop.f32.mrb[0].mxu0
  %v2174 = vadd.f32 0.0, %v2173
  %v2175 = vpop.f32.mrb[0].mxu0
  %v2176 = vadd.f32 0.0, %v2175
  %2177 = vdwg.mxu0
  %v2178 = vadd.f32 %v2090, %v2174
  %v2179 = vadd.f32 %v2091, %v2176
  %v2180 = vmul.f32 %v1839, %v493
  %v2181 = vmul.f32 %v1840, %v496
  %2182 = vrot.lane.b32.xlu0 %v1843, 96
  %v2183 = vpop.permute.xlu0 %2182
  %2186 = vrot.lane.b32.xlu0 %v2180, 120
  %v2187 = vpop.permute.xlu0 %2186
  %2188 = vrot.lane.b32.xlu0 %v2181, 120
  %v2189 = vpop.permute.xlu0 %2188
  %v2190 = vsel %vm509, %v2187, %v2189
  %v2193 = vsel %vm68, %v2183, 0
  %2195 = vmatprep.subr.mxu0 %v2189
  %2196 = vmatpush1.msra.mxu0 %v2190
  %2197 = vmatprep.subr.mxu0 0.0
  %2198 = vmatpush1.msra.mxu0 0.0
  %2199 = vmatprep.subr.mxu0 0.0
  %2200 = vmatpush1.msra.mxu0 0.0
  %2201 = vmatprep.subr.mxu0 0.0
  %2202 = vmatpush1.msra.mxu0 0.0
  %2203 = vmatprep.subr.mxu0 0.0
  %2204 = vmatpush1.msra.mxu0 0.0
  %2205 = vmatprep.subr.mxu0 0.0
  %2206 = vmatpush1.msra.mxu0 0.0
  %2207 = vmatprep.subr.mxu0 0.0
  %2208 = vmatpush1.msra.mxu0 0.0
  %2209 = vmatprep.subr.mxu0 0.0
  %2210 = vmatpush1.msra.mxu0 0.0
  %2211 = vmatprep.subr.mxu0 0.0
  %2212 = vmatpush1.msra.mxu0 0.0
  %2213 = vmatprep.subr.mxu0 0.0
  %2214 = vmatpush1.msra.mxu0 0.0
  %2215 = vmatprep.subr.mxu0 0.0
  %2216 = vmatpush1.msra.mxu0 0.0
  %2217 = vmatprep.subr.mxu0 0.0
  %2218 = vmatpush1.msra.mxu0 0.0
  %2219 = vmatprep.subr.mxu0 0.0
  %2220 = vmatpush1.msra.mxu0 0.0
  %2221 = vmatprep.subr.mxu0 0.0
  %2222 = vmatpush1.msra.mxu0 0.0
  %2223 = vmatprep.subr.mxu0 0.0
  %2224 = vmatpush1.msra.mxu0 0.0
  %2225 = vmatprep.subr.mxu0 0.0
  %2226 = vmatpush1.msra.mxu0 0.0
  %2227 = vmatprep.subr.mxu0 0.0
  %2228 = vmatpush1.msra.mxu0 0.0
  %2229 = vmatprep.subr.mxu0 0.0
  %2230 = vmatpush1.msra.mxu0 0.0
  %2231 = vmatprep.subr.mxu0 0.0
  %2232 = vmatpush1.msra.mxu0 0.0
  %2233 = vmatprep.subr.mxu0 0.0
  %2234 = vmatpush1.msra.mxu0 0.0
  %2235 = vmatprep.subr.mxu0 0.0
  %2236 = vmatpush1.msra.mxu0 0.0
  %2237 = vmatprep.subr.mxu0 0.0
  %2238 = vmatpush1.msra.mxu0 0.0
  %2239 = vmatprep.subr.mxu0 0.0
  %2240 = vmatpush1.msra.mxu0 0.0
  %2241 = vmatprep.subr.mxu0 0.0
  %2242 = vmatpush1.msra.mxu0 0.0
  %2243 = vmatprep.subr.mxu0 0.0
  %2244 = vmatpush1.msra.mxu0 0.0
  %2245 = vmatprep.subr.mxu0 0.0
  %2246 = vmatpush1.msra.mxu0 0.0
  %2247 = vmatprep.subr.mxu0 0.0
  %2248 = vmatpush1.msra.mxu0 0.0
  %2249 = vmatprep.subr.mxu0 0.0
  %2250 = vmatpush1.msra.mxu0 0.0
  %2251 = vmatprep.subr.mxu0 0.0
  %2252 = vmatpush1.msra.mxu0 0.0
  %2253 = vmatprep.subr.mxu0 0.0
  %2254 = vmatpush1.msra.mxu0 0.0
  %2255 = vmatprep.subr.mxu0 0.0
  %2256 = vmatpush1.msra.mxu0 0.0
  %2257 = vmatprep.subr.mxu0 0.0
  %2258 = vmatpush1.msra.mxu0 0.0
  %2259 = vmatprep.mubr.f32.mxu0 0.0
  %2260 = vmatmul.mubr.f32.gmra.mrb[0].mxu0 %v2193
  %v2261 = vpop.f32.mrb[0].mxu0
  %v2262 = vadd.f32 0.0, %v2261
  %v2263 = vpop.f32.mrb[0].mxu0
  %v2264 = vadd.f32 0.0, %v2263
  %2265 = vdwg.mxu0
  %v2266 = vadd.f32 %v2178, %v2262
  %v2267 = vadd.f32 %v2179, %v2264
  %v2268 = vmul.f32 %v1839, %v599
  %v2269 = vmul.f32 %v1840, %v603
  %2270 = vrot.lane.b32.xlu0 %v1843, 88
  %v2271 = vpop.permute.xlu0 %2270
  %2274 = vrot.lane.b32.xlu0 %v2268, 119
  %v2275 = vpop.permute.xlu0 %2274
  %2276 = vrot.lane.b32.xlu0 %v2269, 119
  %v2277 = vpop.permute.xlu0 %2276
  %v2278 = vsel %vm616, %v2275, %v2277
  %v2281 = vsel %vm68, %v2271, 0
  %2283 = vmatprep.subr.mxu0 %v2277
  %2284 = vmatpush1.msra.mxu0 %v2278
  %2285 = vmatprep.subr.mxu0 0.0
  %2286 = vmatpush1.msra.mxu0 0.0
  %2287 = vmatprep.subr.mxu0 0.0
  %2288 = vmatpush1.msra.mxu0 0.0
  %2289 = vmatprep.subr.mxu0 0.0
  %2290 = vmatpush1.msra.mxu0 0.0
  %2291 = vmatprep.subr.mxu0 0.0
  %2292 = vmatpush1.msra.mxu0 0.0
  %2293 = vmatprep.subr.mxu0 0.0
  %2294 = vmatpush1.msra.mxu0 0.0
  %2295 = vmatprep.subr.mxu0 0.0
  %2296 = vmatpush1.msra.mxu0 0.0
  %2297 = vmatprep.subr.mxu0 0.0
  %2298 = vmatpush1.msra.mxu0 0.0
  %2299 = vmatprep.subr.mxu0 0.0
  %2300 = vmatpush1.msra.mxu0 0.0
  %2301 = vmatprep.subr.mxu0 0.0
  %2302 = vmatpush1.msra.mxu0 0.0
  %2303 = vmatprep.subr.mxu0 0.0
  %2304 = vmatpush1.msra.mxu0 0.0
  %2305 = vmatprep.subr.mxu0 0.0
  %2306 = vmatpush1.msra.mxu0 0.0
  %2307 = vmatprep.subr.mxu0 0.0
  %2308 = vmatpush1.msra.mxu0 0.0
  %2309 = vmatprep.subr.mxu0 0.0
  %2310 = vmatpush1.msra.mxu0 0.0
  %2311 = vmatprep.subr.mxu0 0.0
  %2312 = vmatpush1.msra.mxu0 0.0
  %2313 = vmatprep.subr.mxu0 0.0
  %2314 = vmatpush1.msra.mxu0 0.0
  %2315 = vmatprep.subr.mxu0 0.0
  %2316 = vmatpush1.msra.mxu0 0.0
  %2317 = vmatprep.subr.mxu0 0.0
  %2318 = vmatpush1.msra.mxu0 0.0
  %2319 = vmatprep.subr.mxu0 0.0
  %2320 = vmatpush1.msra.mxu0 0.0
  %2321 = vmatprep.subr.mxu0 0.0
  %2322 = vmatpush1.msra.mxu0 0.0
  %2323 = vmatprep.subr.mxu0 0.0
  %2324 = vmatpush1.msra.mxu0 0.0
  %2325 = vmatprep.subr.mxu0 0.0
  %2326 = vmatpush1.msra.mxu0 0.0
  %2327 = vmatprep.subr.mxu0 0.0
  %2328 = vmatpush1.msra.mxu0 0.0
  %2329 = vmatprep.subr.mxu0 0.0
  %2330 = vmatpush1.msra.mxu0 0.0
  %2331 = vmatprep.subr.mxu0 0.0
  %2332 = vmatpush1.msra.mxu0 0.0
  %2333 = vmatprep.subr.mxu0 0.0
  %2334 = vmatpush1.msra.mxu0 0.0
  %2335 = vmatprep.subr.mxu0 0.0
  %2336 = vmatpush1.msra.mxu0 0.0
  %2337 = vmatprep.subr.mxu0 0.0
  %2338 = vmatpush1.msra.mxu0 0.0
  %2339 = vmatprep.subr.mxu0 0.0
  %2340 = vmatpush1.msra.mxu0 0.0
  %2341 = vmatprep.subr.mxu0 0.0
  %2342 = vmatpush1.msra.mxu0 0.0
  %2343 = vmatprep.subr.mxu0 0.0
  %2344 = vmatpush1.msra.mxu0 0.0
  %2345 = vmatprep.subr.mxu0 0.0
  %2346 = vmatpush1.msra.mxu0 0.0
  %2347 = vmatprep.mubr.f32.mxu0 0.0
  %2348 = vmatmul.mubr.f32.gmra.mrb[0].mxu0 %v2281
  %v2349 = vpop.f32.mrb[0].mxu0
  %v2350 = vadd.f32 0.0, %v2349
  %v2351 = vpop.f32.mrb[0].mxu0
  %v2352 = vadd.f32 0.0, %v2351
  %2353 = vdwg.mxu0
  %v2354 = vadd.f32 %v2266, %v2350
  %v2355 = vadd.f32 %v2267, %v2352
  %v2356 = vmul.f32 %v1839, %v706
  %v2357 = vmul.f32 %v1840, %v710
  %2358 = vrot.lane.b32.xlu0 %v1843, 80
  %v2359 = vpop.permute.xlu0 %2358
  %2362 = vrot.lane.b32.xlu0 %v2356, 114
  %v2363 = vpop.permute.xlu0 %2362
  %2364 = vrot.lane.b32.xlu0 %v2357, 114
  %v2365 = vpop.permute.xlu0 %2364
  %v2366 = vsel %vm723, %v2363, %v2365
  %v2369 = vsel %vm68, %v2359, 0
  %2371 = vmatprep.subr.mxu0 %v2365
  %2372 = vmatpush1.msra.mxu0 %v2366
  %2373 = vmatprep.subr.mxu0 0.0
  %2374 = vmatpush1.msra.mxu0 0.0
  %2375 = vmatprep.subr.mxu0 0.0
  %2376 = vmatpush1.msra.mxu0 0.0
  %2377 = vmatprep.subr.mxu0 0.0
  %2378 = vmatpush1.msra.mxu0 0.0
  %2379 = vmatprep.subr.mxu0 0.0
  %2380 = vmatpush1.msra.mxu0 0.0
  %2381 = vmatprep.subr.mxu0 0.0
  %2382 = vmatpush1.msra.mxu0 0.0
  %2383 = vmatprep.subr.mxu0 0.0
  %2384 = vmatpush1.msra.mxu0 0.0
  %2385 = vmatprep.subr.mxu0 0.0
  %2386 = vmatpush1.msra.mxu0 0.0
  %2387 = vmatprep.subr.mxu0 0.0
  %2388 = vmatpush1.msra.mxu0 0.0
  %2389 = vmatprep.subr.mxu0 0.0
  %2390 = vmatpush1.msra.mxu0 0.0
  %2391 = vmatprep.subr.mxu0 0.0
  %2392 = vmatpush1.msra.mxu0 0.0
  %2393 = vmatprep.subr.mxu0 0.0
  %2394 = vmatpush1.msra.mxu0 0.0
  %2395 = vmatprep.subr.mxu0 0.0
  %2396 = vmatpush1.msra.mxu0 0.0
  %2397 = vmatprep.subr.mxu0 0.0
  %2398 = vmatpush1.msra.mxu0 0.0
  %2399 = vmatprep.subr.mxu0 0.0
  %2400 = vmatpush1.msra.mxu0 0.0
  %2401 = vmatprep.subr.mxu0 0.0
  %2402 = vmatpush1.msra.mxu0 0.0
  %2403 = vmatprep.subr.mxu0 0.0
  %2404 = vmatpush1.msra.mxu0 0.0
  %2405 = vmatprep.subr.mxu0 0.0
  %2406 = vmatpush1.msra.mxu0 0.0
  %2407 = vmatprep.subr.mxu0 0.0
  %2408 = vmatpush1.msra.mxu0 0.0
  %2409 = vmatprep.subr.mxu0 0.0
  %2410 = vmatpush1.msra.mxu0 0.0
  %2411 = vmatprep.subr.mxu0 0.0
  %2412 = vmatpush1.msra.mxu0 0.0
  %2413 = vmatprep.subr.mxu0 0.0
  %2414 = vmatpush1.msra.mxu0 0.0
  %2415 = vmatprep.subr.mxu0 0.0
  %2416 = vmatpush1.msra.mxu0 0.0
  %2417 = vmatprep.subr.mxu0 0.0
  %2418 = vmatpush1.msra.mxu0 0.0
  %2419 = vmatprep.subr.mxu0 0.0
  %2420 = vmatpush1.msra.mxu0 0.0
  %2421 = vmatprep.subr.mxu0 0.0
  %2422 = vmatpush1.msra.mxu0 0.0
  %2423 = vmatprep.subr.mxu0 0.0
  %2424 = vmatpush1.msra.mxu0 0.0
  %2425 = vmatprep.subr.mxu0 0.0
  %2426 = vmatpush1.msra.mxu0 0.0
  %2427 = vmatprep.subr.mxu0 0.0
  %2428 = vmatpush1.msra.mxu0 0.0
  %2429 = vmatprep.subr.mxu0 0.0
  %2430 = vmatpush1.msra.mxu0 0.0
  %2431 = vmatprep.subr.mxu0 0.0
  %2432 = vmatpush1.msra.mxu0 0.0
  %2433 = vmatprep.subr.mxu0 0.0
  %2434 = vmatpush1.msra.mxu0 0.0
  %2435 = vmatprep.mubr.f32.mxu0 0.0
  %2436 = vmatmul.mubr.f32.gmra.mrb[0].mxu0 %v2369
  %v2437 = vpop.f32.mrb[0].mxu0
  %v2438 = vadd.f32 0.0, %v2437
  %v2439 = vpop.f32.mrb[0].mxu0
  %v2440 = vadd.f32 0.0, %v2439
  %2441 = vdwg.mxu0
  %v2442 = vadd.f32 %v2354, %v2438
  %v2443 = vadd.f32 %v2355, %v2440
  %v2444 = vmul.f32 %v1839, %v813
  %v2445 = vmul.f32 %v1840, %v817
  %2446 = vrot.lane.b32.xlu0 %v1843, 72
  %v2447 = vpop.permute.xlu0 %2446
  %2450 = vrot.lane.b32.xlu0 %v2444, 113
  %v2451 = vpop.permute.xlu0 %2450
  %2452 = vrot.lane.b32.xlu0 %v2445, 113
  %v2453 = vpop.permute.xlu0 %2452
  %v2454 = vsel %vm830, %v2451, %v2453
  %v2457 = vsel %vm68, %v2447, 0
  %2459 = vmatprep.subr.mxu0 %v2453
  %2460 = vmatpush1.msra.mxu0 %v2454
  %2461 = vmatprep.subr.mxu0 0.0
  %2462 = vmatpush1.msra.mxu0 0.0
  %2463 = vmatprep.subr.mxu0 0.0
  %2464 = vmatpush1.msra.mxu0 0.0
  %2465 = vmatprep.subr.mxu0 0.0
  %2466 = vmatpush1.msra.mxu0 0.0
  %2467 = vmatprep.subr.mxu0 0.0
  %2468 = vmatpush1.msra.mxu0 0.0
  %2469 = vmatprep.subr.mxu0 0.0
  %2470 = vmatpush1.msra.mxu0 0.0
  %2471 = vmatprep.subr.mxu0 0.0
  %2472 = vmatpush1.msra.mxu0 0.0
  %2473 = vmatprep.subr.mxu0 0.0
  %2474 = vmatpush1.msra.mxu0 0.0
  %2475 = vmatprep.subr.mxu0 0.0
  %2476 = vmatpush1.msra.mxu0 0.0
  %2477 = vmatprep.subr.mxu0 0.0
  %2478 = vmatpush1.msra.mxu0 0.0
  %2479 = vmatprep.subr.mxu0 0.0
  %2480 = vmatpush1.msra.mxu0 0.0
  %2481 = vmatprep.subr.mxu0 0.0
  %2482 = vmatpush1.msra.mxu0 0.0
  %2483 = vmatprep.subr.mxu0 0.0
  %2484 = vmatpush1.msra.mxu0 0.0
  %2485 = vmatprep.subr.mxu0 0.0
  %2486 = vmatpush1.msra.mxu0 0.0
  %2487 = vmatprep.subr.mxu0 0.0
  %2488 = vmatpush1.msra.mxu0 0.0
  %2489 = vmatprep.subr.mxu0 0.0
  %2490 = vmatpush1.msra.mxu0 0.0
  %2491 = vmatprep.subr.mxu0 0.0
  %2492 = vmatpush1.msra.mxu0 0.0
  %2493 = vmatprep.subr.mxu0 0.0
  %2494 = vmatpush1.msra.mxu0 0.0
  %2495 = vmatprep.subr.mxu0 0.0
  %2496 = vmatpush1.msra.mxu0 0.0
  %2497 = vmatprep.subr.mxu0 0.0
  %2498 = vmatpush1.msra.mxu0 0.0
  %2499 = vmatprep.subr.mxu0 0.0
  %2500 = vmatpush1.msra.mxu0 0.0
  %2501 = vmatprep.subr.mxu0 0.0
  %2502 = vmatpush1.msra.mxu0 0.0
  %2503 = vmatprep.subr.mxu0 0.0
  %2504 = vmatpush1.msra.mxu0 0.0
  %2505 = vmatprep.subr.mxu0 0.0
  %2506 = vmatpush1.msra.mxu0 0.0
  %2507 = vmatprep.subr.mxu0 0.0
  %2508 = vmatpush1.msra.mxu0 0.0
  %2509 = vmatprep.subr.mxu0 0.0
  %2510 = vmatpush1.msra.mxu0 0.0
  %2511 = vmatprep.subr.mxu0 0.0
  %2512 = vmatpush1.msra.mxu0 0.0
  %2513 = vmatprep.subr.mxu0 0.0
  %2514 = vmatpush1.msra.mxu0 0.0
  %2515 = vmatprep.subr.mxu0 0.0
  %2516 = vmatpush1.msra.mxu0 0.0
  %2517 = vmatprep.subr.mxu0 0.0
  %2518 = vmatpush1.msra.mxu0 0.0
  %2519 = vmatprep.subr.mxu0 0.0
  %2520 = vmatpush1.msra.mxu0 0.0
  %2521 = vmatprep.subr.mxu0 0.0
  %2522 = vmatpush1.msra.mxu0 0.0
  %2523 = vmatprep.mubr.f32.mxu0 0.0
  %2524 = vmatmul.mubr.f32.gmra.mrb[0].mxu0 %v2457
  %v2525 = vpop.f32.mrb[0].mxu0
  %v2526 = vadd.f32 0.0, %v2525
  %v2527 = vpop.f32.mrb[0].mxu0
  %v2528 = vadd.f32 0.0, %v2527
  %2529 = vdwg.mxu0
  %v2530 = vadd.f32 %v2442, %v2526
  %v2531 = vadd.f32 %v2443, %v2528
  %v2532 = vmul.f32 %v1839, %v920
  %v2533 = vmul.f32 %v1840, %v924
  %2534 = vrot.lane.b32.xlu0 %v1843, 64
  %v2535 = vpop.permute.xlu0 %2534
  %2538 = vrot.lane.b32.xlu0 %v2532, 112
  %v2539 = vpop.permute.xlu0 %2538
  %2540 = vrot.lane.b32.xlu0 %v2533, 112
  %v2541 = vpop.permute.xlu0 %2540
  %v2542 = vsel %vm937, %v2539, %v2541
  %v2545 = vsel %vm68, %v2535, 0
  %2547 = vmatprep.subr.mxu0 %v2541
  %2548 = vmatpush1.msra.mxu0 %v2542
  %2549 = vmatprep.subr.mxu0 0.0
  %2550 = vmatpush1.msra.mxu0 0.0
  %2551 = vmatprep.subr.mxu0 0.0
  %2552 = vmatpush1.msra.mxu0 0.0
  %2553 = vmatprep.subr.mxu0 0.0
  %2554 = vmatpush1.msra.mxu0 0.0
  %2555 = vmatprep.subr.mxu0 0.0
  %2556 = vmatpush1.msra.mxu0 0.0
  %2557 = vmatprep.subr.mxu0 0.0
  %2558 = vmatpush1.msra.mxu0 0.0
  %2559 = vmatprep.subr.mxu0 0.0
  %2560 = vmatpush1.msra.mxu0 0.0
  %2561 = vmatprep.subr.mxu0 0.0
  %2562 = vmatpush1.msra.mxu0 0.0
  %2563 = vmatprep.subr.mxu0 0.0
  %2564 = vmatpush1.msra.mxu0 0.0
  %2565 = vmatprep.subr.mxu0 0.0
  %2566 = vmatpush1.msra.mxu0 0.0
  %2567 = vmatprep.subr.mxu0 0.0
  %2568 = vmatpush1.msra.mxu0 0.0
  %2569 = vmatprep.subr.mxu0 0.0
  %2570 = vmatpush1.msra.mxu0 0.0
  %2571 = vmatprep.subr.mxu0 0.0
  %2572 = vmatpush1.msra.mxu0 0.0
  %2573 = vmatprep.subr.mxu0 0.0
  %2574 = vmatpush1.msra.mxu0 0.0
  %2575 = vmatprep.subr.mxu0 0.0
  %2576 = vmatpush1.msra.mxu0 0.0
  %2577 = vmatprep.subr.mxu0 0.0
  %2578 = vmatpush1.msra.mxu0 0.0
  %2579 = vmatprep.subr.mxu0 0.0
  %2580 = vmatpush1.msra.mxu0 0.0
  %2581 = vmatprep.subr.mxu0 0.0
  %2582 = vmatpush1.msra.mxu0 0.0
  %2583 = vmatprep.subr.mxu0 0.0
  %2584 = vmatpush1.msra.mxu0 0.0
  %2585 = vmatprep.subr.mxu0 0.0
  %2586 = vmatpush1.msra.mxu0 0.0
  %2587 = vmatprep.subr.mxu0 0.0
  %2588 = vmatpush1.msra.mxu0 0.0
  %2589 = vmatprep.subr.mxu0 0.0
  %2590 = vmatpush1.msra.mxu0 0.0
  %2591 = vmatprep.subr.mxu0 0.0
  %2592 = vmatpush1.msra.mxu0 0.0
  %2593 = vmatprep.subr.mxu0 0.0
  %2594 = vmatpush1.msra.mxu0 0.0
  %2595 = vmatprep.subr.mxu0 0.0
  %2596 = vmatpush1.msra.mxu0 0.0
  %2597 = vmatprep.subr.mxu0 0.0
  %2598 = vmatpush1.msra.mxu0 0.0
  %2599 = vmatprep.subr.mxu0 0.0
  %2600 = vmatpush1.msra.mxu0 0.0
  %2601 = vmatprep.subr.mxu0 0.0
  %2602 = vmatpush1.msra.mxu0 0.0
  %2603 = vmatprep.subr.mxu0 0.0
  %2604 = vmatpush1.msra.mxu0 0.0
  %2605 = vmatprep.subr.mxu0 0.0
  %2606 = vmatpush1.msra.mxu0 0.0
  %2607 = vmatprep.subr.mxu0 0.0
  %2608 = vmatpush1.msra.mxu0 0.0
  %2609 = vmatprep.subr.mxu0 0.0
  %2610 = vmatpush1.msra.mxu0 0.0
  %2611 = vmatprep.mubr.f32.mxu0 0.0
  %2612 = vmatmul.mubr.f32.gmra.mrb[0].mxu0 %v2545
  %v2613 = vpop.f32.mrb[0].mxu0
  %v2614 = vadd.f32 0.0, %v2613
  %v2615 = vpop.f32.mrb[0].mxu0
  %v2616 = vadd.f32 0.0, %v2615
  %2617 = vdwg.mxu0
  %v2618 = vadd.f32 %v2530, %v2614
  %v2619 = vadd.f32 %v2531, %v2616
  %v2620 = vld [vmem:[%s7] sm:$0xff]
  %2622 = vset.pattern.permute.xlu0 0
  %2623 = vperm.xlu0 %2622, %v2620
  %v2624 = vpop.permute.xlu0 %2623
  %v2626 = vadd.f32 %v2618, %v2624
  %v2627 = vadd.f32 %v2619, %v2624
  %v2628 = vmax.f32 %v2626, 0.0
  %v2629 = vmax.f32 %v2627, 0.0
  %2632 = vrot.lane.b32.xlu0 %v2628, 8
  %v2633 = vpop.permute.xlu0 %2632
  %2634 = vrot.lane.b32.xlu0 %v2629, 8
  %v2635 = vpop.permute.xlu0 %2634
  %v2636 = vsel %vm68, %v2633, %v2635
  %2639 = vst.msk [vmem:[#allocation2] sm:$0xff] %vm72, %v2633
  %2640 = vst.msk [vmem:[#allocation2 + $0x8] sm:$0xff] %vm74, %v2636
  %v2641 = vld [vmem:[#allocation2] sm:$0xff]
  %v2642 = vld [vmem:[#allocation2 + $0x8] sm:$0xff]
  %v2643 = vmul.f32 %v2641, %v81
  %v2644 = vmul.f32 %v2642, %v85
  %v2645 = vld [vmem:[%s8] sm:$0xff]
  %v2646 = vmul.f32 %v2641, %v100
  %v2647 = vmul.f32 %v2642, %v104
  %2649 = vrot.lane.b32.xlu0 %v2645, 120
  %v2650 = vpop.permute.xlu0 %2649
  %2653 = vrot.lane.b32.xlu0 %v2646, 127
  %v2654 = vpop.permute.xlu0 %2653
  %2655 = vrot.lane.b32.xlu0 %v2647, 127
  %v2656 = vpop.permute.xlu0 %2655
  %v2657 = vsel %vm118, %v2654, %v2656
  %v2660 = vsel %vm68, %v2650, 0
  %2662 = vmatprep.subr.mxu0 %v2656
  %2663 = vmatpush1.msra.mxu0 %v2657
  %2664 = vmatprep.subr.mxu0 0.0
  %2665 = vmatpush1.msra.mxu0 0.0
  %2666 = vmatprep.subr.mxu0 0.0
  %2667 = vmatpush1.msra.mxu0 0.0
  %2668 = vmatprep.subr.mxu0 0.0
  %2669 = vmatpush1.msra.mxu0 0.0
  %2670 = vmatprep.subr.mxu0 0.0
  %2671 = vmatpush1.msra.mxu0 0.0
  %2672 = vmatprep.subr.mxu0 0.0
  %2673 = vmatpush1.msra.mxu0 0.0
  %2674 = vmatprep.subr.mxu0 0.0
  %2675 = vmatpush1.msra.mxu0 0.0
  %2676 = vmatprep.subr.mxu0 0.0
  %2677 = vmatpush1.msra.mxu0 0.0
  %2678 = vmatprep.subr.mxu0 0.0
  %2679 = vmatpush1.msra.mxu0 0.0
  %2680 = vmatprep.subr.mxu0 0.0
  %2681 = vmatpush1.msra.mxu0 0.0
  %2682 = vmatprep.subr.mxu0 0.0
  %2683 = vmatpush1.msra.mxu0 0.0
  %2684 = vmatprep.subr.mxu0 0.0
  %2685 = vmatpush1.msra.mxu0 0.0
  %2686 = vmatprep.subr.mxu0 0.0
  %2687 = vmatpush1.msra.mxu0 0.0
  %2688 = vmatprep.subr.mxu0 0.0
  %2689 = vmatpush1.msra.mxu0 0.0
  %2690 = vmatprep.subr.mxu0 0.0
  %2691 = vmatpush1.msra.mxu0 0.0
  %2692 = vmatprep.subr.mxu0 0.0
  %2693 = vmatpush1.msra.mxu0 0.0
  %2694 = vmatprep.subr.mxu0 0.0
  %2695 = vmatpush1.msra.mxu0 0.0
  %2696 = vmatprep.subr.mxu0 0.0
  %2697 = vmatpush1.msra.mxu0 0.0
  %2698 = vmatprep.subr.mxu0 0.0
  %2699 = vmatpush1.msra.mxu0 0.0
  %2700 = vmatprep.subr.mxu0 0.0
  %2701 = vmatpush1.msra.mxu0 0.0
  %2702 = vmatprep.subr.mxu0 0.0
  %2703 = vmatpush1.msra.mxu0 0.0
  %2704 = vmatprep.subr.mxu0 0.0
  %2705 = vmatpush1.msra.mxu0 0.0
  %2706 = vmatprep.subr.mxu0 0.0
  %2707 = vmatpush1.msra.mxu0 0.0
  %2708 = vmatprep.subr.mxu0 0.0
  %2709 = vmatpush1.msra.mxu0 0.0
  %2710 = vmatprep.subr.mxu0 0.0
  %2711 = vmatpush1.msra.mxu0 0.0
  %2712 = vmatprep.subr.mxu0 0.0
  %2713 = vmatpush1.msra.mxu0 0.0
  %2714 = vmatprep.subr.mxu0 0.0
  %2715 = vmatpush1.msra.mxu0 0.0
  %2716 = vmatprep.subr.mxu0 0.0
  %2717 = vmatpush1.msra.mxu0 0.0
  %2718 = vmatprep.subr.mxu0 0.0
  %2719 = vmatpush1.msra.mxu0 0.0
  %2720 = vmatprep.subr.mxu0 0.0
  %2721 = vmatpush1.msra.mxu0 0.0
  %2722 = vmatprep.subr.mxu0 0.0
  %2723 = vmatpush1.msra.mxu0 0.0
  %2724 = vmatprep.subr.mxu0 0.0
  %2725 = vmatpush1.msra.mxu0 0.0
  %2726 = vmatprep.mubr.f32.mxu0 0.0
  %2727 = vmatmul.mubr.f32.gmra.mrb[0].mxu0 %v2660
  %v2728 = vpop.f32.mrb[0].mxu0
  %v2729 = vadd.f32 0.0, %v2728
  %v2730 = vpop.f32.mrb[0].mxu0
  %v2731 = vadd.f32 0.0, %v2730
  %2732 = vdwg.mxu0
  %v2733 = vsel %vm68, %v2645, 0
  %2735 = vmatprep.subr.mxu0 %v2644
  %2736 = vmatpush1.msra.mxu0 %v2643
  %2737 = vmatprep.subr.mxu0 0.0
  %2738 = vmatpush1.msra.mxu0 0.0
  %2739 = vmatprep.subr.mxu0 0.0
  %2740 = vmatpush1.msra.mxu0 0.0
  %2741 = vmatprep.subr.mxu0 0.0
  %2742 = vmatpush1.msra.mxu0 0.0
  %2743 = vmatprep.subr.mxu0 0.0
  %2744 = vmatpush1.msra.mxu0 0.0
  %2745 = vmatprep.subr.mxu0 0.0
  %2746 = vmatpush1.msra.mxu0 0.0
  %2747 = vmatprep.subr.mxu0 0.0
  %2748 = vmatpush1.msra.mxu0 0.0
  %2749 = vmatprep.subr.mxu0 0.0
  %2750 = vmatpush1.msra.mxu0 0.0
  %2751 = vmatprep.subr.mxu0 0.0
  %2752 = vmatpush1.msra.mxu0 0.0
  %2753 = vmatprep.subr.mxu0 0.0
  %2754 = vmatpush1.msra.mxu0 0.0
  %2755 = vmatprep.subr.mxu0 0.0
  %2756 = vmatpush1.msra.mxu0 0.0
  %2757 = vmatprep.subr.mxu0 0.0
  %2758 = vmatpush1.msra.mxu0 0.0
  %2759 = vmatprep.subr.mxu0 0.0
  %2760 = vmatpush1.msra.mxu0 0.0
  %2761 = vmatprep.subr.mxu0 0.0
  %2762 = vmatpush1.msra.mxu0 0.0
  %2763 = vmatprep.subr.mxu0 0.0
  %2764 = vmatpush1.msra.mxu0 0.0
  %2765 = vmatprep.subr.mxu0 0.0
  %2766 = vmatpush1.msra.mxu0 0.0
  %2767 = vmatprep.subr.mxu0 0.0
  %2768 = vmatpush1.msra.mxu0 0.0
  %2769 = vmatprep.subr.mxu0 0.0
  %2770 = vmatpush1.msra.mxu0 0.0
  %2771 = vmatprep.subr.mxu0 0.0
  %2772 = vmatpush1.msra.mxu0 0.0
  %2773 = vmatprep.subr.mxu0 0.0
  %2774 = vmatpush1.msra.mxu0 0.0
  %2775 = vmatprep.subr.mxu0 0.0
  %2776 = vmatpush1.msra.mxu0 0.0
  %2777 = vmatprep.subr.mxu0 0.0
  %2778 = vmatpush1.msra.mxu0 0.0
  %2779 = vmatprep.subr.mxu0 0.0
  %2780 = vmatpush1.msra.mxu0 0.0
  %2781 = vmatprep.subr.mxu0 0.0
  %2782 = vmatpush1.msra.mxu0 0.0
  %2783 = vmatprep.subr.mxu0 0.0
  %2784 = vmatpush1.msra.mxu0 0.0
  %2785 = vmatprep.subr.mxu0 0.0
  %2786 = vmatpush1.msra.mxu0 0.0
  %2787 = vmatprep.subr.mxu0 0.0
  %2788 = vmatpush1.msra.mxu0 0.0
  %2789 = vmatprep.subr.mxu0 0.0
  %2790 = vmatpush1.msra.mxu0 0.0
  %2791 = vmatprep.subr.mxu0 0.0
  %2792 = vmatpush1.msra.mxu0 0.0
  %2793 = vmatprep.subr.mxu0 0.0
  %2794 = vmatpush1.msra.mxu0 0.0
  %2795 = vmatprep.subr.mxu0 0.0
  %2796 = vmatpush1.msra.mxu0 0.0
  %2797 = vmatprep.subr.mxu0 0.0
  %2798 = vmatpush1.msra.mxu0 0.0
  %2799 = vmatprep.mubr.f32.mxu0 0.0
  %2800 = vmatmul.mubr.f32.gmra.mrb[0].mxu0 %v2733
  %v2801 = vpop.f32.mrb[0].mxu0
  %v2802 = vadd.f32 %v2729, %v2801
  %v2803 = vpop.f32.mrb[0].mxu0
  %v2804 = vadd.f32 %v2731, %v2803
  %2805 = vdwg.mxu0
  %v2806 = vmul.f32 %v2641, %v279
  %v2807 = vmul.f32 %v2642, %v283
  %2808 = vrot.lane.b32.xlu0 %v2645, 112
  %v2809 = vpop.permute.xlu0 %2808
  %2812 = vrot.lane.b32.xlu0 %v2806, 126
  %v2813 = vpop.permute.xlu0 %2812
  %2814 = vrot.lane.b32.xlu0 %v2807, 126
  %v2815 = vpop.permute.xlu0 %2814
  %v2816 = vsel %vm296, %v2813, %v2815
  %v2819 = vsel %vm68, %v2809, 0
  %2821 = vmatprep.subr.mxu0 %v2815
  %2822 = vmatpush1.msra.mxu0 %v2816
  %2823 = vmatprep.subr.mxu0 0.0
  %2824 = vmatpush1.msra.mxu0 0.0
  %2825 = vmatprep.subr.mxu0 0.0
  %2826 = vmatpush1.msra.mxu0 0.0
  %2827 = vmatprep.subr.mxu0 0.0
  %2828 = vmatpush1.msra.mxu0 0.0
  %2829 = vmatprep.subr.mxu0 0.0
  %2830 = vmatpush1.msra.mxu0 0.0
  %2831 = vmatprep.subr.mxu0 0.0
  %2832 = vmatpush1.msra.mxu0 0.0
  %2833 = vmatprep.subr.mxu0 0.0
  %2834 = vmatpush1.msra.mxu0 0.0
  %2835 = vmatprep.subr.mxu0 0.0
  %2836 = vmatpush1.msra.mxu0 0.0
  %2837 = vmatprep.subr.mxu0 0.0
  %2838 = vmatpush1.msra.mxu0 0.0
  %2839 = vmatprep.subr.mxu0 0.0
  %2840 = vmatpush1.msra.mxu0 0.0
  %2841 = vmatprep.subr.mxu0 0.0
  %2842 = vmatpush1.msra.mxu0 0.0
  %2843 = vmatprep.subr.mxu0 0.0
  %2844 = vmatpush1.msra.mxu0 0.0
  %2845 = vmatprep.subr.mxu0 0.0
  %2846 = vmatpush1.msra.mxu0 0.0
  %2847 = vmatprep.subr.mxu0 0.0
  %2848 = vmatpush1.msra.mxu0 0.0
  %2849 = vmatprep.subr.mxu0 0.0
  %2850 = vmatpush1.msra.mxu0 0.0
  %2851 = vmatprep.subr.mxu0 0.0
  %2852 = vmatpush1.msra.mxu0 0.0
  %2853 = vmatprep.subr.mxu0 0.0
  %2854 = vmatpush1.msra.mxu0 0.0
  %2855 = vmatprep.subr.mxu0 0.0
  %2856 = vmatpush1.msra.mxu0 0.0
  %2857 = vmatprep.subr.mxu0 0.0
  %2858 = vmatpush1.msra.mxu0 0.0
  %2859 = vmatprep.subr.mxu0 0.0
  %2860 = vmatpush1.msra.mxu0 0.0
  %2861 = vmatprep.subr.mxu0 0.0
  %2862 = vmatpush1.msra.mxu0 0.0
  %2863 = vmatprep.subr.mxu0 0.0
  %2864 = vmatpush1.msra.mxu0 0.0
  %2865 = vmatprep.subr.mxu0 0.0
  %2866 = vmatpush1.msra.mxu0 0.0
  %2867 = vmatprep.subr.mxu0 0.0
  %2868 = vmatpush1.msra.mxu0 0.0
  %2869 = vmatprep.subr.mxu0 0.0
  %2870 = vmatpush1.msra.mxu0 0.0
  %2871 = vmatprep.subr.mxu0 0.0
  %2872 = vmatpush1.msra.mxu0 0.0
  %2873 = vmatprep.subr.mxu0 0.0
  %2874 = vmatpush1.msra.mxu0 0.0
  %2875 = vmatprep.subr.mxu0 0.0
  %2876 = vmatpush1.msra.mxu0 0.0
  %2877 = vmatprep.subr.mxu0 0.0
  %2878 = vmatpush1.msra.mxu0 0.0
  %2879 = vmatprep.subr.mxu0 0.0
  %2880 = vmatpush1.msra.mxu0 0.0
  %2881 = vmatprep.subr.mxu0 0.0
  %2882 = vmatpush1.msra.mxu0 0.0
  %2883 = vmatprep.subr.mxu0 0.0
  %2884 = vmatpush1.msra.mxu0 0.0
  %2885 = vmatprep.mubr.f32.mxu0 0.0
  %2886 = vmatmul.mubr.f32.gmra.mrb[0].mxu0 %v2819
  %v2887 = vpop.f32.mrb[0].mxu0
  %v2888 = vadd.f32 0.0, %v2887
  %v2889 = vpop.f32.mrb[0].mxu0
  %v2890 = vadd.f32 0.0, %v2889
  %2891 = vdwg.mxu0
  %v2892 = vadd.f32 %v2802, %v2888
  %v2893 = vadd.f32 %v2804, %v2890
  %v2894 = vmul.f32 %v2641, %v386
  %v2895 = vmul.f32 %v2642, %v390
  %2896 = vrot.lane.b32.xlu0 %v2645, 104
  %v2897 = vpop.permute.xlu0 %2896
  %2900 = vrot.lane.b32.xlu0 %v2894, 121
  %v2901 = vpop.permute.xlu0 %2900
  %2902 = vrot.lane.b32.xlu0 %v2895, 121
  %v2903 = vpop.permute.xlu0 %2902
  %v2904 = vsel %vm403, %v2901, %v2903
  %v2907 = vsel %vm68, %v2897, 0
  %2909 = vmatprep.subr.mxu0 %v2903
  %2910 = vmatpush1.msra.mxu0 %v2904
  %2911 = vmatprep.subr.mxu0 0.0
  %2912 = vmatpush1.msra.mxu0 0.0
  %2913 = vmatprep.subr.mxu0 0.0
  %2914 = vmatpush1.msra.mxu0 0.0
  %2915 = vmatprep.subr.mxu0 0.0
  %2916 = vmatpush1.msra.mxu0 0.0
  %2917 = vmatprep.subr.mxu0 0.0
  %2918 = vmatpush1.msra.mxu0 0.0
  %2919 = vmatprep.subr.mxu0 0.0
  %2920 = vmatpush1.msra.mxu0 0.0
  %2921 = vmatprep.subr.mxu0 0.0
  %2922 = vmatpush1.msra.mxu0 0.0
  %2923 = vmatprep.subr.mxu0 0.0
  %2924 = vmatpush1.msra.mxu0 0.0
  %2925 = vmatprep.subr.mxu0 0.0
  %2926 = vmatpush1.msra.mxu0 0.0
  %2927 = vmatprep.subr.mxu0 0.0
  %2928 = vmatpush1.msra.mxu0 0.0
  %2929 = vmatprep.subr.mxu0 0.0
  %2930 = vmatpush1.msra.mxu0 0.0
  %2931 = vmatprep.subr.mxu0 0.0
  %2932 = vmatpush1.msra.mxu0 0.0
  %2933 = vmatprep.subr.mxu0 0.0
  %2934 = vmatpush1.msra.mxu0 0.0
  %2935 = vmatprep.subr.mxu0 0.0
  %2936 = vmatpush1.msra.mxu0 0.0
  %2937 = vmatprep.subr.mxu0 0.0
  %2938 = vmatpush1.msra.mxu0 0.0
  %2939 = vmatprep.subr.mxu0 0.0
  %2940 = vmatpush1.msra.mxu0 0.0
  %2941 = vmatprep.subr.mxu0 0.0
  %2942 = vmatpush1.msra.mxu0 0.0
  %2943 = vmatprep.subr.mxu0 0.0
  %2944 = vmatpush1.msra.mxu0 0.0
  %2945 = vmatprep.subr.mxu0 0.0
  %2946 = vmatpush1.msra.mxu0 0.0
  %2947 = vmatprep.subr.mxu0 0.0
  %2948 = vmatpush1.msra.mxu0 0.0
  %2949 = vmatprep.subr.mxu0 0.0
  %2950 = vmatpush1.msra.mxu0 0.0
  %2951 = vmatprep.subr.mxu0 0.0
  %2952 = vmatpush1.msra.mxu0 0.0
  %2953 = vmatprep.subr.mxu0 0.0
  %2954 = vmatpush1.msra.mxu0 0.0
  %2955 = vmatprep.subr.mxu0 0.0
  %2956 = vmatpush1.msra.mxu0 0.0
  %2957 = vmatprep.subr.mxu0 0.0
  %2958 = vmatpush1.msra.mxu0 0.0
  %2959 = vmatprep.subr.mxu0 0.0
  %2960 = vmatpush1.msra.mxu0 0.0
  %2961 = vmatprep.subr.mxu0 0.0
  %2962 = vmatpush1.msra.mxu0 0.0
  %2963 = vmatprep.subr.mxu0 0.0
  %2964 = vmatpush1.msra.mxu0 0.0
  %2965 = vmatprep.subr.mxu0 0.0
  %2966 = vmatpush1.msra.mxu0 0.0
  %2967 = vmatprep.subr.mxu0 0.0
  %2968 = vmatpush1.msra.mxu0 0.0
  %2969 = vmatprep.subr.mxu0 0.0
  %2970 = vmatpush1.msra.mxu0 0.0
  %2971 = vmatprep.subr.mxu0 0.0
  %2972 = vmatpush1.msra.mxu0 0.0
  %2973 = vmatprep.mubr.f32.mxu0 0.0
  %2974 = vmatmul.mubr.f32.gmra.mrb[0].mxu0 %v2907
  %v2975 = vpop.f32.mrb[0].mxu0
  %v2976 = vadd.f32 0.0, %v2975
  %v2977 = vpop.f32.mrb[0].mxu0
  %v2978 = vadd.f32 0.0, %v2977
  %2979 = vdwg.mxu0
  %v2980 = vadd.f32 %v2892, %v2976
  %v2981 = vadd.f32 %v2893, %v2978
  %v2982 = vmul.f32 %v2641, %v493
  %v2983 = vmul.f32 %v2642, %v496
  %2984 = vrot.lane.b32.xlu0 %v2645, 96
  %v2985 = vpop.permute.xlu0 %2984
  %2988 = vrot.lane.b32.xlu0 %v2982, 120
  %v2989 = vpop.permute.xlu0 %2988
  %2990 = vrot.lane.b32.xlu0 %v2983, 120
  %v2991 = vpop.permute.xlu0 %2990
  %v2992 = vsel %vm509, %v2989, %v2991
  %v2995 = vsel %vm68, %v2985, 0
  %2997 = vmatprep.subr.mxu0 %v2991
  %2998 = vmatpush1.msra.mxu0 %v2992
  %2999 = vmatprep.subr.mxu0 0.0
  %3000 = vmatpush1.msra.mxu0 0.0
  %3001 = vmatprep.subr.mxu0 0.0
  %3002 = vmatpush1.msra.mxu0 0.0
  %3003 = vmatprep.subr.mxu0 0.0
  %3004 = vmatpush1.msra.mxu0 0.0
  %3005 = vmatprep.subr.mxu0 0.0
  %3006 = vmatpush1.msra.mxu0 0.0
  %3007 = vmatprep.subr.mxu0 0.0
  %3008 = vmatpush1.msra.mxu0 0.0
  %3009 = vmatprep.subr.mxu0 0.0
  %3010 = vmatpush1.msra.mxu0 0.0
  %3011 = vmatprep.subr.mxu0 0.0
  %3012 = vmatpush1.msra.mxu0 0.0
  %3013 = vmatprep.subr.mxu0 0.0
  %3014 = vmatpush1.msra.mxu0 0.0
  %3015 = vmatprep.subr.mxu0 0.0
  %3016 = vmatpush1.msra.mxu0 0.0
  %3017 = vmatprep.subr.mxu0 0.0
  %3018 = vmatpush1.msra.mxu0 0.0
  %3019 = vmatprep.subr.mxu0 0.0
  %3020 = vmatpush1.msra.mxu0 0.0
  %3021 = vmatprep.subr.mxu0 0.0
  %3022 = vmatpush1.msra.mxu0 0.0
  %3023 = vmatprep.subr.mxu0 0.0
  %3024 = vmatpush1.msra.mxu0 0.0
  %3025 = vmatprep.subr.mxu0 0.0
  %3026 = vmatpush1.msra.mxu0 0.0
  %3027 = vmatprep.subr.mxu0 0.0
  %3028 = vmatpush1.msra.mxu0 0.0
  %3029 = vmatprep.subr.mxu0 0.0
  %3030 = vmatpush1.msra.mxu0 0.0
  %3031 = vmatprep.subr.mxu0 0.0
  %3032 = vmatpush1.msra.mxu0 0.0
  %3033 = vmatprep.subr.mxu0 0.0
  %3034 = vmatpush1.msra.mxu0 0.0
  %3035 = vmatprep.subr.mxu0 0.0
  %3036 = vmatpush1.msra.mxu0 0.0
  %3037 = vmatprep.subr.mxu0 0.0
  %3038 = vmatpush1.msra.mxu0 0.0
  %3039 = vmatprep.subr.mxu0 0.0
  %3040 = vmatpush1.msra.mxu0 0.0
  %3041 = vmatprep.subr.mxu0 0.0
  %3042 = vmatpush1.msra.mxu0 0.0
  %3043 = vmatprep.subr.mxu0 0.0
  %3044 = vmatpush1.msra.mxu0 0.0
  %3045 = vmatprep.subr.mxu0 0.0
  %3046 = vmatpush1.msra.mxu0 0.0
  %3047 = vmatprep.subr.mxu0 0.0
  %3048 = vmatpush1.msra.mxu0 0.0
  %3049 = vmatprep.subr.mxu0 0.0
  %3050 = vmatpush1.msra.mxu0 0.0
  %3051 = vmatprep.subr.mxu0 0.0
  %3052 = vmatpush1.msra.mxu0 0.0
  %3053 = vmatprep.subr.mxu0 0.0
  %3054 = vmatpush1.msra.mxu0 0.0
  %3055 = vmatprep.subr.mxu0 0.0
  %3056 = vmatpush1.msra.mxu0 0.0
  %3057 = vmatprep.subr.mxu0 0.0
  %3058 = vmatpush1.msra.mxu0 0.0
  %3059 = vmatprep.subr.mxu0 0.0
  %3060 = vmatpush1.msra.mxu0 0.0
  %3061 = vmatprep.mubr.f32.mxu0 0.0
  %3062 = vmatmul.mubr.f32.gmra.mrb[0].mxu0 %v2995
  %v3063 = vpop.f32.mrb[0].mxu0
  %v3064 = vadd.f32 0.0, %v3063
  %v3065 = vpop.f32.mrb[0].mxu0
  %v3066 = vadd.f32 0.0, %v3065
  %3067 = vdwg.mxu0
  %v3068 = vadd.f32 %v2980, %v3064
  %v3069 = vadd.f32 %v2981, %v3066
  %v3070 = vmul.f32 %v2641, %v599
  %v3071 = vmul.f32 %v2642, %v603
  %3072 = vrot.lane.b32.xlu0 %v2645, 88
  %v3073 = vpop.permute.xlu0 %3072
  %3076 = vrot.lane.b32.xlu0 %v3070, 119
  %v3077 = vpop.permute.xlu0 %3076
  %3078 = vrot.lane.b32.xlu0 %v3071, 119
  %v3079 = vpop.permute.xlu0 %3078
  %v3080 = vsel %vm616, %v3077, %v3079
  %v3083 = vsel %vm68, %v3073, 0
  %3085 = vmatprep.subr.mxu0 %v3079
  %3086 = vmatpush1.msra.mxu0 %v3080
  %3087 = vmatprep.subr.mxu0 0.0
  %3088 = vmatpush1.msra.mxu0 0.0
  %3089 = vmatprep.subr.mxu0 0.0
  %3090 = vmatpush1.msra.mxu0 0.0
  %3091 = vmatprep.subr.mxu0 0.0
  %3092 = vmatpush1.msra.mxu0 0.0
  %3093 = vmatprep.subr.mxu0 0.0
  %3094 = vmatpush1.msra.mxu0 0.0
  %3095 = vmatprep.subr.mxu0 0.0
  %3096 = vmatpush1.msra.mxu0 0.0
  %3097 = vmatprep.subr.mxu0 0.0
  %3098 = vmatpush1.msra.mxu0 0.0
  %3099 = vmatprep.subr.mxu0 0.0
  %3100 = vmatpush1.msra.mxu0 0.0
  %3101 = vmatprep.subr.mxu0 0.0
  %3102 = vmatpush1.msra.mxu0 0.0
  %3103 = vmatprep.subr.mxu0 0.0
  %3104 = vmatpush1.msra.mxu0 0.0
  %3105 = vmatprep.subr.mxu0 0.0
  %3106 = vmatpush1.msra.mxu0 0.0
  %3107 = vmatprep.subr.mxu0 0.0
  %3108 = vmatpush1.msra.mxu0 0.0
  %3109 = vmatprep.subr.mxu0 0.0
  %3110 = vmatpush1.msra.mxu0 0.0
  %3111 = vmatprep.subr.mxu0 0.0
  %3112 = vmatpush1.msra.mxu0 0.0
  %3113 = vmatprep.subr.mxu0 0.0
  %3114 = vmatpush1.msra.mxu0 0.0
  %3115 = vmatprep.subr.mxu0 0.0
  %3116 = vmatpush1.msra.mxu0 0.0
  %3117 = vmatprep.subr.mxu0 0.0
  %3118 = vmatpush1.msra.mxu0 0.0
  %3119 = vmatprep.subr.mxu0 0.0
  %3120 = vmatpush1.msra.mxu0 0.0
  %3121 = vmatprep.subr.mxu0 0.0
  %3122 = vmatpush1.msra.mxu0 0.0
  %3123 = vmatprep.subr.mxu0 0.0
  %3124 = vmatpush1.msra.mxu0 0.0
  %3125 = vmatprep.subr.mxu0 0.0
  %3126 = vmatpush1.msra.mxu0 0.0
  %3127 = vmatprep.subr.mxu0 0.0
  %3128 = vmatpush1.msra.mxu0 0.0
  %3129 = vmatprep.subr.mxu0 0.0
  %3130 = vmatpush1.msra.mxu0 0.0
  %3131 = vmatprep.subr.mxu0 0.0
  %3132 = vmatpush1.msra.mxu0 0.0
  %3133 = vmatprep.subr.mxu0 0.0
  %3134 = vmatpush1.msra.mxu0 0.0
  %3135 = vmatprep.subr.mxu0 0.0
  %3136 = vmatpush1.msra.mxu0 0.0
  %3137 = vmatprep.subr.mxu0 0.0
  %3138 = vmatpush1.msra.mxu0 0.0
  %3139 = vmatprep.subr.mxu0 0.0
  %3140 = vmatpush1.msra.mxu0 0.0
  %3141 = vmatprep.subr.mxu0 0.0
  %3142 = vmatpush1.msra.mxu0 0.0
  %3143 = vmatprep.subr.mxu0 0.0
  %3144 = vmatpush1.msra.mxu0 0.0
  %3145 = vmatprep.subr.mxu0 0.0
  %3146 = vmatpush1.msra.mxu0 0.0
  %3147 = vmatprep.subr.mxu0 0.0
  %3148 = vmatpush1.msra.mxu0 0.0
  %3149 = vmatprep.mubr.f32.mxu0 0.0
  %3150 = vmatmul.mubr.f32.gmra.mrb[0].mxu0 %v3083
  %v3151 = vpop.f32.mrb[0].mxu0
  %v3152 = vadd.f32 0.0, %v3151
  %v3153 = vpop.f32.mrb[0].mxu0
  %v3154 = vadd.f32 0.0, %v3153
  %3155 = vdwg.mxu0
  %v3156 = vadd.f32 %v3068, %v3152
  %v3157 = vadd.f32 %v3069, %v3154
  %v3158 = vmul.f32 %v2641, %v706
  %v3159 = vmul.f32 %v2642, %v710
  %3160 = vrot.lane.b32.xlu0 %v2645, 80
  %v3161 = vpop.permute.xlu0 %3160
  %3164 = vrot.lane.b32.xlu0 %v3158, 114
  %v3165 = vpop.permute.xlu0 %3164
  %3166 = vrot.lane.b32.xlu0 %v3159, 114
  %v3167 = vpop.permute.xlu0 %3166
  %v3168 = vsel %vm723, %v3165, %v3167
  %v3171 = vsel %vm68, %v3161, 0
  %3173 = vmatprep.subr.mxu0 %v3167
  %3174 = vmatpush1.msra.mxu0 %v3168
  %3175 = vmatprep.subr.mxu0 0.0
  %3176 = vmatpush1.msra.mxu0 0.0
  %3177 = vmatprep.subr.mxu0 0.0
  %3178 = vmatpush1.msra.mxu0 0.0
  %3179 = vmatprep.subr.mxu0 0.0
  %3180 = vmatpush1.msra.mxu0 0.0
  %3181 = vmatprep.subr.mxu0 0.0
  %3182 = vmatpush1.msra.mxu0 0.0
  %3183 = vmatprep.subr.mxu0 0.0
  %3184 = vmatpush1.msra.mxu0 0.0
  %3185 = vmatprep.subr.mxu0 0.0
  %3186 = vmatpush1.msra.mxu0 0.0
  %3187 = vmatprep.subr.mxu0 0.0
  %3188 = vmatpush1.msra.mxu0 0.0
  %3189 = vmatprep.subr.mxu0 0.0
  %3190 = vmatpush1.msra.mxu0 0.0
  %3191 = vmatprep.subr.mxu0 0.0
  %3192 = vmatpush1.msra.mxu0 0.0
  %3193 = vmatprep.subr.mxu0 0.0
  %3194 = vmatpush1.msra.mxu0 0.0
  %3195 = vmatprep.subr.mxu0 0.0
  %3196 = vmatpush1.msra.mxu0 0.0
  %3197 = vmatprep.subr.mxu0 0.0
  %3198 = vmatpush1.msra.mxu0 0.0
  %3199 = vmatprep.subr.mxu0 0.0
  %3200 = vmatpush1.msra.mxu0 0.0
  %3201 = vmatprep.subr.mxu0 0.0
  %3202 = vmatpush1.msra.mxu0 0.0
  %3203 = vmatprep.subr.mxu0 0.0
  %3204 = vmatpush1.msra.mxu0 0.0
  %3205 = vmatprep.subr.mxu0 0.0
  %3206 = vmatpush1.msra.mxu0 0.0
  %3207 = vmatprep.subr.mxu0 0.0
  %3208 = vmatpush1.msra.mxu0 0.0
  %3209 = vmatprep.subr.mxu0 0.0
  %3210 = vmatpush1.msra.mxu0 0.0
  %3211 = vmatprep.subr.mxu0 0.0
  %3212 = vmatpush1.msra.mxu0 0.0
  %3213 = vmatprep.subr.mxu0 0.0
  %3214 = vmatpush1.msra.mxu0 0.0
  %3215 = vmatprep.subr.mxu0 0.0
  %3216 = vmatpush1.msra.mxu0 0.0
  %3217 = vmatprep.subr.mxu0 0.0
  %3218 = vmatpush1.msra.mxu0 0.0
  %3219 = vmatprep.subr.mxu0 0.0
  %3220 = vmatpush1.msra.mxu0 0.0
  %3221 = vmatprep.subr.mxu0 0.0
  %3222 = vmatpush1.msra.mxu0 0.0
  %3223 = vmatprep.subr.mxu0 0.0
  %3224 = vmatpush1.msra.mxu0 0.0
  %3225 = vmatprep.subr.mxu0 0.0
  %3226 = vmatpush1.msra.mxu0 0.0
  %3227 = vmatprep.subr.mxu0 0.0
  %3228 = vmatpush1.msra.mxu0 0.0
  %3229 = vmatprep.subr.mxu0 0.0
  %3230 = vmatpush1.msra.mxu0 0.0
  %3231 = vmatprep.subr.mxu0 0.0
  %3232 = vmatpush1.msra.mxu0 0.0
  %3233 = vmatprep.subr.mxu0 0.0
  %3234 = vmatpush1.msra.mxu0 0.0
  %3235 = vmatprep.subr.mxu0 0.0
  %3236 = vmatpush1.msra.mxu0 0.0
  %3237 = vmatprep.mubr.f32.mxu0 0.0
  %3238 = vmatmul.mubr.f32.gmra.mrb[0].mxu0 %v3171
  %v3239 = vpop.f32.mrb[0].mxu0
  %v3240 = vadd.f32 0.0, %v3239
  %v3241 = vpop.f32.mrb[0].mxu0
  %v3242 = vadd.f32 0.0, %v3241
  %3243 = vdwg.mxu0
  %v3244 = vadd.f32 %v3156, %v3240
  %v3245 = vadd.f32 %v3157, %v3242
  %v3246 = vmul.f32 %v2641, %v813
  %v3247 = vmul.f32 %v2642, %v817
  %3248 = vrot.lane.b32.xlu0 %v2645, 72
  %v3249 = vpop.permute.xlu0 %3248
  %3252 = vrot.lane.b32.xlu0 %v3246, 113
  %v3253 = vpop.permute.xlu0 %3252
  %3254 = vrot.lane.b32.xlu0 %v3247, 113
  %v3255 = vpop.permute.xlu0 %3254
  %v3256 = vsel %vm830, %v3253, %v3255
  %v3259 = vsel %vm68, %v3249, 0
  %3261 = vmatprep.subr.mxu0 %v3255
  %3262 = vmatpush1.msra.mxu0 %v3256
  %3263 = vmatprep.subr.mxu0 0.0
  %3264 = vmatpush1.msra.mxu0 0.0
  %3265 = vmatprep.subr.mxu0 0.0
  %3266 = vmatpush1.msra.mxu0 0.0
  %3267 = vmatprep.subr.mxu0 0.0
  %3268 = vmatpush1.msra.mxu0 0.0
  %3269 = vmatprep.subr.mxu0 0.0
  %3270 = vmatpush1.msra.mxu0 0.0
  %3271 = vmatprep.subr.mxu0 0.0
  %3272 = vmatpush1.msra.mxu0 0.0
  %3273 = vmatprep.subr.mxu0 0.0
  %3274 = vmatpush1.msra.mxu0 0.0
  %3275 = vmatprep.subr.mxu0 0.0
  %3276 = vmatpush1.msra.mxu0 0.0
  %3277 = vmatprep.subr.mxu0 0.0
  %3278 = vmatpush1.msra.mxu0 0.0
  %3279 = vmatprep.subr.mxu0 0.0
  %3280 = vmatpush1.msra.mxu0 0.0
  %3281 = vmatprep.subr.mxu0 0.0
  %3282 = vmatpush1.msra.mxu0 0.0
  %3283 = vmatprep.subr.mxu0 0.0
  %3284 = vmatpush1.msra.mxu0 0.0
  %3285 = vmatprep.subr.mxu0 0.0
  %3286 = vmatpush1.msra.mxu0 0.0
  %3287 = vmatprep.subr.mxu0 0.0
  %3288 = vmatpush1.msra.mxu0 0.0
  %3289 = vmatprep.subr.mxu0 0.0
  %3290 = vmatpush1.msra.mxu0 0.0
  %3291 = vmatprep.subr.mxu0 0.0
  %3292 = vmatpush1.msra.mxu0 0.0
  %3293 = vmatprep.subr.mxu0 0.0
  %3294 = vmatpush1.msra.mxu0 0.0
  %3295 = vmatprep.subr.mxu0 0.0
  %3296 = vmatpush1.msra.mxu0 0.0
  %3297 = vmatprep.subr.mxu0 0.0
  %3298 = vmatpush1.msra.mxu0 0.0
  %3299 = vmatprep.subr.mxu0 0.0
  %3300 = vmatpush1.msra.mxu0 0.0
  %3301 = vmatprep.subr.mxu0 0.0
  %3302 = vmatpush1.msra.mxu0 0.0
  %3303 = vmatprep.subr.mxu0 0.0
  %3304 = vmatpush1.msra.mxu0 0.0
  %3305 = vmatprep.subr.mxu0 0.0
  %3306 = vmatpush1.msra.mxu0 0.0
  %3307 = vmatprep.subr.mxu0 0.0
  %3308 = vmatpush1.msra.mxu0 0.0
  %3309 = vmatprep.subr.mxu0 0.0
  %3310 = vmatpush1.msra.mxu0 0.0
  %3311 = vmatprep.subr.mxu0 0.0
  %3312 = vmatpush1.msra.mxu0 0.0
  %3313 = vmatprep.subr.mxu0 0.0
  %3314 = vmatpush1.msra.mxu0 0.0
  %3315 = vmatprep.subr.mxu0 0.0
  %3316 = vmatpush1.msra.mxu0 0.0
  %3317 = vmatprep.subr.mxu0 0.0
  %3318 = vmatpush1.msra.mxu0 0.0
  %3319 = vmatprep.subr.mxu0 0.0
  %3320 = vmatpush1.msra.mxu0 0.0
  %3321 = vmatprep.subr.mxu0 0.0
  %3322 = vmatpush1.msra.mxu0 0.0
  %3323 = vmatprep.subr.mxu0 0.0
  %3324 = vmatpush1.msra.mxu0 0.0
  %3325 = vmatprep.mubr.f32.mxu0 0.0
  %3326 = vmatmul.mubr.f32.gmra.mrb[0].mxu0 %v3259
  %v3327 = vpop.f32.mrb[0].mxu0
  %v3328 = vadd.f32 0.0, %v3327
  %v3329 = vpop.f32.mrb[0].mxu0
  %v3330 = vadd.f32 0.0, %v3329
  %3331 = vdwg.mxu0
  %v3332 = vadd.f32 %v3244, %v3328
  %v3333 = vadd.f32 %v3245, %v3330
  %v3334 = vmul.f32 %v2641, %v920
  %v3335 = vmul.f32 %v2642, %v924
  %3336 = vrot.lane.b32.xlu0 %v2645, 64
  %v3337 = vpop.permute.xlu0 %3336
  %3340 = vrot.lane.b32.xlu0 %v3334, 112
  %v3341 = vpop.permute.xlu0 %3340
  %3342 = vrot.lane.b32.xlu0 %v3335, 112
  %v3343 = vpop.permute.xlu0 %3342
  %v3344 = vsel %vm937, %v3341, %v3343
  %v3347 = vsel %vm68, %v3337, 0
  %3349 = vmatprep.subr.mxu0 %v3343
  %3350 = vmatpush1.msra.mxu0 %v3344
  %3351 = vmatprep.subr.mxu0 0.0
  %3352 = vmatpush1.msra.mxu0 0.0
  %3353 = vmatprep.subr.mxu0 0.0
  %3354 = vmatpush1.msra.mxu0 0.0
  %3355 = vmatprep.subr.mxu0 0.0
  %3356 = vmatpush1.msra.mxu0 0.0
  %3357 = vmatprep.subr.mxu0 0.0
  %3358 = vmatpush1.msra.mxu0 0.0
  %3359 = vmatprep.subr.mxu0 0.0
  %3360 = vmatpush1.msra.mxu0 0.0
  %3361 = vmatprep.subr.mxu0 0.0
  %3362 = vmatpush1.msra.mxu0 0.0
  %3363 = vmatprep.subr.mxu0 0.0
  %3364 = vmatpush1.msra.mxu0 0.0
  %3365 = vmatprep.subr.mxu0 0.0
  %3366 = vmatpush1.msra.mxu0 0.0
  %3367 = vmatprep.subr.mxu0 0.0
  %3368 = vmatpush1.msra.mxu0 0.0
  %3369 = vmatprep.subr.mxu0 0.0
  %3370 = vmatpush1.msra.mxu0 0.0
  %3371 = vmatprep.subr.mxu0 0.0
  %3372 = vmatpush1.msra.mxu0 0.0
  %3373 = vmatprep.subr.mxu0 0.0
  %3374 = vmatpush1.msra.mxu0 0.0
  %3375 = vmatprep.subr.mxu0 0.0
  %3376 = vmatpush1.msra.mxu0 0.0
  %3377 = vmatprep.subr.mxu0 0.0
  %3378 = vmatpush1.msra.mxu0 0.0
  %3379 = vmatprep.subr.mxu0 0.0
  %3380 = vmatpush1.msra.mxu0 0.0
  %3381 = vmatprep.subr.mxu0 0.0
  %3382 = vmatpush1.msra.mxu0 0.0
  %3383 = vmatprep.subr.mxu0 0.0
  %3384 = vmatpush1.msra.mxu0 0.0
  %3385 = vmatprep.subr.mxu0 0.0
  %3386 = vmatpush1.msra.mxu0 0.0
  %3387 = vmatprep.subr.mxu0 0.0
  %3388 = vmatpush1.msra.mxu0 0.0
  %3389 = vmatprep.subr.mxu0 0.0
  %3390 = vmatpush1.msra.mxu0 0.0
  %3391 = vmatprep.subr.mxu0 0.0
  %3392 = vmatpush1.msra.mxu0 0.0
  %3393 = vmatprep.subr.mxu0 0.0
  %3394 = vmatpush1.msra.mxu0 0.0
  %3395 = vmatprep.subr.mxu0 0.0
  %3396 = vmatpush1.msra.mxu0 0.0
  %3397 = vmatprep.subr.mxu0 0.0
  %3398 = vmatpush1.msra.mxu0 0.0
  %3399 = vmatprep.subr.mxu0 0.0
  %3400 = vmatpush1.msra.mxu0 0.0
  %3401 = vmatprep.subr.mxu0 0.0
  %3402 = vmatpush1.msra.mxu0 0.0
  %3403 = vmatprep.subr.mxu0 0.0
  %3404 = vmatpush1.msra.mxu0 0.0
  %3405 = vmatprep.subr.mxu0 0.0
  %3406 = vmatpush1.msra.mxu0 0.0
  %3407 = vmatprep.subr.mxu0 0.0
  %3408 = vmatpush1.msra.mxu0 0.0
  %3409 = vmatprep.subr.mxu0 0.0
  %3410 = vmatpush1.msra.mxu0 0.0
  %3411 = vmatprep.subr.mxu0 0.0
  %3412 = vmatpush1.msra.mxu0 0.0
  %3413 = vmatprep.mubr.f32.mxu0 0.0
  %3414 = vmatmul.mubr.f32.gmra.mrb[0].mxu0 %v3347
  %v3415 = vpop.f32.mrb[0].mxu0
  %v3416 = vadd.f32 0.0, %v3415
  %v3417 = vpop.f32.mrb[0].mxu0
  %v3418 = vadd.f32 0.0, %v3417
  %3419 = vdwg.mxu0
  %v3420 = vadd.f32 %v3332, %v3416
  %v3421 = vadd.f32 %v3333, %v3418
  %v3422 = vld [vmem:[%s9] sm:$0xff]
  %3424 = vset.pattern.permute.xlu0 0
  %3425 = vperm.xlu0 %3424, %v3422
  %v3426 = vpop.permute.xlu0 %3425
  %v3428 = vadd.f32 %v3420, %v3426
  %v3429 = vadd.f32 %v3421, %v3426
  %v3430 = vmax.f32 %v3428, 0.0
  %v3431 = vmax.f32 %v3429, 0.0
  %vm3432 = vcmask 393216
  %3433 = vst.msk [vmem:[#allocation3] sm:$0x1] %vm3432, %v3430
  %3435 = vrot.lane.b32.xlu0 %v3430, 79
  %v3436 = vpop.permute.xlu0 %3435
  %3438 = vst.msk [vmem:[#allocation3 + $0x1] sm:$0x1] %vm3432, %v3436
  %3440 = vrot.lane.b32.xlu0 %v3430, 30
  %v3441 = vpop.permute.xlu0 %3440
  %3442 = vrot.lane.b32.xlu0 %v3431, 30
  %v3443 = vpop.permute.xlu0 %3442
  %vm3444 = vcmask 244736
  %v3445 = vsel %vm3444, %v3441, %v3443
  %3447 = vst.msk [vmem:[#allocation3 + $0x2] sm:$0x1] %vm3432, %v3445
  %3448 = vrot.lane.b32.xlu0 %v3431, 109
  %v3449 = vpop.permute.xlu0 %3448
  %3451 = vst.msk [vmem:[#allocation3 + $0x3] sm:$0x1] %vm3432, %v3449
  %s3452 = scalar_lea.vmem [#allocation3], 4
  %vm3453 = vcmask 394241
  %3454 = vst.msk [vmem:[%s3452 - $0x1] sm:$0x2] %vm3453, %v3430
  %3455 = vst.msk [vmem:[%s3452] sm:$0x2] %vm3453, %v3436
  %3456 = vst.msk [vmem:[%s3452 + $0x1] sm:$0x2] %vm3453, %v3445
  %3457 = vst.msk [vmem:[%s3452 + $0x2] sm:$0x2] %vm3453, %v3449
  %s3458 = scalar_lea.vmem [#allocation3], 8
  %vm3459 = vcmask 395266
  %3460 = vst.msk [vmem:[%s3458 - $0x2] sm:$0x4] %vm3459, %v3430
  %3461 = vst.msk [vmem:[%s3458 - $0x1] sm:$0x4] %vm3459, %v3436
  %3462 = vst.msk [vmem:[%s3458] sm:$0x4] %vm3459, %v3445
  %3463 = vst.msk [vmem:[%s3458 + $0x1] sm:$0x4] %vm3459, %v3449
  %s3464 = scalar_lea.vmem [#allocation3], 12
  %vm3465 = vcmask 396291
  %3466 = vst.msk [vmem:[%s3464 - $0x3] sm:$0x8] %vm3465, %v3430
  %3467 = vst.msk [vmem:[%s3464 - $0x2] sm:$0x8] %vm3465, %v3436
  %3468 = vst.msk [vmem:[%s3464 - $0x1] sm:$0x8] %vm3465, %v3445
  %3469 = vst.msk [vmem:[%s3464] sm:$0x8] %vm3465, %v3449
  %s3470 = scalar_lea.vmem [#allocation3], 16
  %vm3471 = vcmask 397316
  %3472 = vst.msk [vmem:[%s3470 - $0x4] sm:$0x10] %vm3471, %v3430
  %3473 = vst.msk [vmem:[%s3470 - $0x3] sm:$0x10] %vm3471, %v3436
  %3474 = vst.msk [vmem:[%s3470 - $0x2] sm:$0x10] %vm3471, %v3445
  %3475 = vst.msk [vmem:[%s3470 - $0x1] sm:$0x10] %vm3471, %v3449
  %s3476 = scalar_lea.vmem [#allocation3], 20
  %vm3477 = vcmask 398341
  %3478 = vst.msk [vmem:[%s3476 - $0x5] sm:$0x20] %vm3477, %v3430
  %3479 = vst.msk [vmem:[%s3476 - $0x4] sm:$0x20] %vm3477, %v3436
  %3480 = vst.msk [vmem:[%s3476 - $0x3] sm:$0x20] %vm3477, %v3445
  %3481 = vst.msk [vmem:[%s3476 - $0x2] sm:$0x20] %vm3477, %v3449
  %s3482 = scalar_lea.vmem [#allocation3], 24
  %vm3483 = vcmask 399366
  %3484 = vst.msk [vmem:[%s3482 - $0x6] sm:$0x40] %vm3483, %v3430
  %3485 = vst.msk [vmem:[%s3482 - $0x5] sm:$0x40] %vm3483, %v3436
  %3486 = vst.msk [vmem:[%s3482 - $0x4] sm:$0x40] %vm3483, %v3445
  %3487 = vst.msk [vmem:[%s3482 - $0x3] sm:$0x40] %vm3483, %v3449
  %s3488 = scalar_lea.vmem [#allocation3], 28
  %vm3489 = vcmask 400391
  %3490 = vst.msk [vmem:[%s3488 - $0x7] sm:$0x80] %vm3489, %v3430
  %3491 = vst.msk [vmem:[%s3488 - $0x6] sm:$0x80] %vm3489, %v3436
  %3492 = vst.msk [vmem:[%s3488 - $0x5] sm:$0x80] %vm3489, %v3445
  %3493 = vst.msk [vmem:[%s3488 - $0x4] sm:$0x80] %vm3489, %v3449
  %v3494 = vld [vmem:[#allocation3] sm:$0xf]
  %v3495 = vld [vmem:[%s10] sm:$0xff]
  %v3496 = vld [vmem:[%s10 + $0x8] sm:$0xff]
  %v3497 = vld [vmem:[%s10 + $0x10] sm:$0xff]
  %v3498 = vld [vmem:[%s10 + $0x18] sm:$0xff]
  %v3499 = vld [vmem:[%s10 + $0x20] sm:$0xff]
  %v3500 = vld [vmem:[%s10 + $0x28] sm:$0xff]
  %v3501 = vld [vmem:[%s10 + $0x30] sm:$0x1]
  %v3502 = vld [vmem:[%s3452] sm:$0xf]
  %v3503 = vld [vmem:[%s10 + $0x31] sm:$0xff]
  %v3504 = vld [vmem:[%s10 + $0x39] sm:$0xff]
  %v3505 = vld [vmem:[%s10 + $0x41] sm:$0xff]
  %v3506 = vld [vmem:[%s10 + $0x49] sm:$0xff]
  %v3507 = vld [vmem:[%s10 + $0x51] sm:$0xff]
  %v3508 = vld [vmem:[%s10 + $0x59] sm:$0xff]
  %v3509 = vld [vmem:[%s10 + $0x61] sm:$0x1]
  %vm3510 = vcmask 400384
  %v3512 = vsel %vm3510, %v3502, 0
  %vm3514 = vcmask 1040384
  %v3516 = vsel %vm3514, %v3509, 0
  %3518 = vmatprep.subr.mxu0 0.0
  %3519 = vmatpush1.msra.mxu0 %v3503
  %3520 = vmatprep.subr.mxu0 0.0
  %3521 = vmatpush1.msra.mxu0 %v3504
  %3522 = vmatprep.subr.mxu0 0.0
  %3523 = vmatpush1.msra.mxu0 %v3505
  %3524 = vmatprep.subr.mxu0 0.0
  %3525 = vmatpush1.msra.mxu0 %v3506
  %3526 = vmatprep.subr.mxu0 0.0
  %3527 = vmatpush1.msra.mxu0 %v3507
  %3528 = vmatprep.subr.mxu0 0.0
  %3529 = vmatpush1.msra.mxu0 %v3508
  %3530 = vmatprep.subr.mxu0 0.0
  %3531 = vmatpush1.msra.mxu0 %v3516
  %3532 = vmatprep.subr.mxu0 0.0
  %3533 = vmatpush1.msra.mxu0 0.0
  %3534 = vmatprep.subr.mxu0 0.0
  %3535 = vmatpush1.msra.mxu0 0.0
  %3536 = vmatprep.subr.mxu0 0.0
  %3537 = vmatpush1.msra.mxu0 0.0
  %3538 = vmatprep.subr.mxu0 0.0
  %3539 = vmatpush1.msra.mxu0 0.0
  %3540 = vmatprep.subr.mxu0 0.0
  %3541 = vmatpush1.msra.mxu0 0.0
  %3542 = vmatprep.subr.mxu0 0.0
  %3543 = vmatpush1.msra.mxu0 0.0
  %3544 = vmatprep.subr.mxu0 0.0
  %3545 = vmatpush1.msra.mxu0 0.0
  %3546 = vmatprep.subr.mxu0 0.0
  %3547 = vmatpush1.msra.mxu0 0.0
  %3548 = vmatprep.subr.mxu0 0.0
  %3549 = vmatpush1.msra.mxu0 0.0
  %3550 = vmatprep.subr.mxu0 0.0
  %3551 = vmatpush1.msra.mxu0 0.0
  %3552 = vmatprep.subr.mxu0 0.0
  %3553 = vmatpush1.msra.mxu0 0.0
  %3554 = vmatprep.subr.mxu0 0.0
  %3555 = vmatpush1.msra.mxu0 0.0
  %3556 = vmatprep.subr.mxu0 0.0
  %3557 = vmatpush1.msra.mxu0 0.0
  %3558 = vmatprep.subr.mxu0 0.0
  %3559 = vmatpush1.msra.mxu0 0.0
  %3560 = vmatprep.subr.mxu0 0.0
  %3561 = vmatpush1.msra.mxu0 0.0
  %3562 = vmatprep.subr.mxu0 0.0
  %3563 = vmatpush1.msra.mxu0 0.0
  %3564 = vmatprep.subr.mxu0 0.0
  %3565 = vmatpush1.msra.mxu0 0.0
  %3566 = vmatprep.subr.mxu0 0.0
  %3567 = vmatpush1.msra.mxu0 0.0
  %3568 = vmatprep.subr.mxu0 0.0
  %3569 = vmatpush1.msra.mxu0 0.0
  %3570 = vmatprep.subr.mxu0 0.0
  %3571 = vmatpush1.msra.mxu0 0.0
  %3572 = vmatprep.subr.mxu0 0.0
  %3573 = vmatpush1.msra.mxu0 0.0
  %3574 = vmatprep.subr.mxu0 0.0
  %3575 = vmatpush1.msra.mxu0 0.0
  %3576 = vmatprep.subr.mxu0 0.0
  %3577 = vmatpush1.msra.mxu0 0.0
  %3578 = vmatprep.subr.mxu0 0.0
  %3579 = vmatpush1.msra.mxu0 0.0
  %3580 = vmatprep.subr.mxu0 0.0
  %3581 = vmatpush1.msra.mxu0 0.0
  %3582 = vmatprep.mubr.f32.mxu0 0.0
  %3583 = vmatmul.mubr.f32.gmra.mrb[0].mxu0 %v3512
  %v3584 = vpop.f32.mrb[0].mxu0
  %v3585 = vadd.f32 0.0, %v3584
  %v3586 = vpop.f32.mrb[0].mxu0
  %3587 = vdwg.mxu0
  %v3589 = vsel %vm3510, %v3494, 0
  %v3592 = vsel %vm3514, %v3501, 0
  %3594 = vmatprep.subr.mxu0 0.0
  %3595 = vmatpush1.msra.mxu0 %v3495
  %3596 = vmatprep.subr.mxu0 0.0
  %3597 = vmatpush1.msra.mxu0 %v3496
  %3598 = vmatprep.subr.mxu0 0.0
  %3599 = vmatpush1.msra.mxu0 %v3497
  %3600 = vmatprep.subr.mxu0 0.0
  %3601 = vmatpush1.msra.mxu0 %v3498
  %3602 = vmatprep.subr.mxu0 0.0
  %3603 = vmatpush1.msra.mxu0 %v3499
  %3604 = vmatprep.subr.mxu0 0.0
  %3605 = vmatpush1.msra.mxu0 %v3500
  %3606 = vmatprep.subr.mxu0 0.0
  %3607 = vmatpush1.msra.mxu0 %v3592
  %3608 = vmatprep.subr.mxu0 0.0
  %3609 = vmatpush1.msra.mxu0 0.0
  %3610 = vmatprep.subr.mxu0 0.0
  %3611 = vmatpush1.msra.mxu0 0.0
  %3612 = vmatprep.subr.mxu0 0.0
  %3613 = vmatpush1.msra.mxu0 0.0
  %3614 = vmatprep.subr.mxu0 0.0
  %3615 = vmatpush1.msra.mxu0 0.0
  %3616 = vmatprep.subr.mxu0 0.0
  %3617 = vmatpush1.msra.mxu0 0.0
  %3618 = vmatprep.subr.mxu0 0.0
  %3619 = vmatpush1.msra.mxu0 0.0
  %3620 = vmatprep.subr.mxu0 0.0
  %3621 = vmatpush1.msra.mxu0 0.0
  %3622 = vmatprep.subr.mxu0 0.0
  %3623 = vmatpush1.msra.mxu0 0.0
  %3624 = vmatprep.subr.mxu0 0.0
  %3625 = vmatpush1.msra.mxu0 0.0
  %3626 = vmatprep.subr.mxu0 0.0
  %3627 = vmatpush1.msra.mxu0 0.0
  %3628 = vmatprep.subr.mxu0 0.0
  %3629 = vmatpush1.msra.mxu0 0.0
  %3630 = vmatprep.subr.mxu0 0.0
  %3631 = vmatpush1.msra.mxu0 0.0
  %3632 = vmatprep.subr.mxu0 0.0
  %3633 = vmatpush1.msra.mxu0 0.0
  %3634 = vmatprep.subr.mxu0 0.0
  %3635 = vmatpush1.msra.mxu0 0.0
  %3636 = vmatprep.subr.mxu0 0.0
  %3637 = vmatpush1.msra.mxu0 0.0
  %3638 = vmatprep.subr.mxu0 0.0
  %3639 = vmatpush1.msra.mxu0 0.0
  %3640 = vmatprep.subr.mxu0 0.0
  %3641 = vmatpush1.msra.mxu0 0.0
  %3642 = vmatprep.subr.mxu0 0.0
  %3643 = vmatpush1.msra.mxu0 0.0
  %3644 = vmatprep.subr.mxu0 0.0
  %3645 = vmatpush1.msra.mxu0 0.0
  %3646 = vmatprep.subr.mxu0 0.0
  %3647 = vmatpush1.msra.mxu0 0.0
  %3648 = vmatprep.subr.mxu0 0.0
  %3649 = vmatpush1.msra.mxu0 0.0
  %3650 = vmatprep.subr.mxu0 0.0
  %3651 = vmatpush1.msra.mxu0 0.0
  %3652 = vmatprep.subr.mxu0 0.0
  %3653 = vmatpush1.msra.mxu0 0.0
  %3654 = vmatprep.subr.mxu0 0.0
  %3655 = vmatpush1.msra.mxu0 0.0
  %3656 = vmatprep.subr.mxu0 0.0
  %3657 = vmatpush1.msra.mxu0 0.0
  %3658 = vmatprep.mubr.f32.mxu0 0.0
  %3659 = vmatmul.mubr.f32.gmra.mrb[0].mxu0 %v3589
  %v3660 = vpop.f32.mrb[0].mxu0
  %v3661 = vadd.f32 %v3585, %v3660
  %v3662 = vpop.f32.mrb[0].mxu0
  %3663 = vdwg.mxu0
  %v3664 = vld [vmem:[%s3458] sm:$0xf]
  %v3665 = vld [vmem:[%s10 + $0x62] sm:$0xff]
  %v3666 = vld [vmem:[%s10 + $0x6a] sm:$0xff]
  %v3667 = vld [vmem:[%s10 + $0x72] sm:$0xff]
  %v3668 = vld [vmem:[%s10 + $0x7a] sm:$0xff]
  %v3669 = vld [vmem:[%s10 + $0x82] sm:$0xff]
  %v3670 = vld [vmem:[%s10 + $0x8a] sm:$0xff]
  %v3671 = vld [vmem:[%s10 + $0x92] sm:$0x1]
  %v3673 = vsel %vm3510, %v3664, 0
  %v3676 = vsel %vm3514, %v3671, 0
  %3678 = vmatprep.subr.mxu0 0.0
  %3679 = vmatpush1.msra.mxu0 %v3665
  %3680 = vmatprep.subr.mxu0 0.0
  %3681 = vmatpush1.msra.mxu0 %v3666
  %3682 = vmatprep.subr.mxu0 0.0
  %3683 = vmatpush1.msra.mxu0 %v3667
  %3684 = vmatprep.subr.mxu0 0.0
  %3685 = vmatpush1.msra.mxu0 %v3668
  %3686 = vmatprep.subr.mxu0 0.0
  %3687 = vmatpush1.msra.mxu0 %v3669
  %3688 = vmatprep.subr.mxu0 0.0
  %3689 = vmatpush1.msra.mxu0 %v3670
  %3690 = vmatprep.subr.mxu0 0.0
  %3691 = vmatpush1.msra.mxu0 %v3676
  %3692 = vmatprep.subr.mxu0 0.0
  %3693 = vmatpush1.msra.mxu0 0.0
  %3694 = vmatprep.subr.mxu0 0.0
  %3695 = vmatpush1.msra.mxu0 0.0
  %3696 = vmatprep.subr.mxu0 0.0
  %3697 = vmatpush1.msra.mxu0 0.0
  %3698 = vmatprep.subr.mxu0 0.0
  %3699 = vmatpush1.msra.mxu0 0.0
  %3700 = vmatprep.subr.mxu0 0.0
  %3701 = vmatpush1.msra.mxu0 0.0
  %3702 = vmatprep.subr.mxu0 0.0
  %3703 = vmatpush1.msra.mxu0 0.0
  %3704 = vmatprep.subr.mxu0 0.0
  %3705 = vmatpush1.msra.mxu0 0.0
  %3706 = vmatprep.subr.mxu0 0.0
  %3707 = vmatpush1.msra.mxu0 0.0
  %3708 = vmatprep.subr.mxu0 0.0
  %3709 = vmatpush1.msra.mxu0 0.0
  %3710 = vmatprep.subr.mxu0 0.0
  %3711 = vmatpush1.msra.mxu0 0.0
  %3712 = vmatprep.subr.mxu0 0.0
  %3713 = vmatpush1.msra.mxu0 0.0
  %3714 = vmatprep.subr.mxu0 0.0
  %3715 = vmatpush1.msra.mxu0 0.0
  %3716 = vmatprep.subr.mxu0 0.0
  %3717 = vmatpush1.msra.mxu0 0.0
  %3718 = vmatprep.subr.mxu0 0.0
  %3719 = vmatpush1.msra.mxu0 0.0
  %3720 = vmatprep.subr.mxu0 0.0
  %3721 = vmatpush1.msra.mxu0 0.0
  %3722 = vmatprep.subr.mxu0 0.0
  %3723 = vmatpush1.msra.mxu0 0.0
  %3724 = vmatprep.subr.mxu0 0.0
  %3725 = vmatpush1.msra.mxu0 0.0
  %3726 = vmatprep.subr.mxu0 0.0
  %3727 = vmatpush1.msra.mxu0 0.0
  %3728 = vmatprep.subr.mxu0 0.0
  %3729 = vmatpush1.msra.mxu0 0.0
  %3730 = vmatprep.subr.mxu0 0.0
  %3731 = vmatpush1.msra.mxu0 0.0
  %3732 = vmatprep.subr.mxu0 0.0
  %3733 = vmatpush1.msra.mxu0 0.0
  %3734 = vmatprep.subr.mxu0 0.0
  %3735 = vmatpush1.msra.mxu0 0.0
  %3736 = vmatprep.subr.mxu0 0.0
  %3737 = vmatpush1.msra.mxu0 0.0
  %3738 = vmatprep.subr.mxu0 0.0
  %3739 = vmatpush1.msra.mxu0 0.0
  %3740 = vmatprep.subr.mxu0 0.0
  %3741 = vmatpush1.msra.mxu0 0.0
  %3742 = vmatprep.mubr.f32.mxu0 0.0
  %3743 = vmatmul.mubr.f32.gmra.mrb[0].mxu0 %v3673
  %v3744 = vpop.f32.mrb[0].mxu0
  %v3745 = vadd.f32 0.0, %v3744
  %v3746 = vpop.f32.mrb[0].mxu0
  %3747 = vdwg.mxu0
  %v3748 = vadd.f32 %v3661, %v3745
  %v3749 = vld [vmem:[%s3464] sm:$0xf]
  %v3750 = vld [vmem:[%s10 + $0x93] sm:$0xff]
  %v3751 = vld [vmem:[%s10 + $0x9b] sm:$0xff]
  %v3752 = vld [vmem:[%s10 + $0xa3] sm:$0xff]
  %v3753 = vld [vmem:[%s10 + $0xab] sm:$0xff]
  %v3754 = vld [vmem:[%s10 + $0xb3] sm:$0xff]
  %v3755 = vld [vmem:[%s10 + $0xbb] sm:$0xff]
  %v3756 = vld [vmem:[%s10 + $0xc3] sm:$0x1]
  %v3758 = vsel %vm3510, %v3749, 0
  %v3761 = vsel %vm3514, %v3756, 0
  %3763 = vmatprep.subr.mxu0 0.0
  %3764 = vmatpush1.msra.mxu0 %v3750
  %3765 = vmatprep.subr.mxu0 0.0
  %3766 = vmatpush1.msra.mxu0 %v3751
  %3767 = vmatprep.subr.mxu0 0.0
  %3768 = vmatpush1.msra.mxu0 %v3752
  %3769 = vmatprep.subr.mxu0 0.0
  %3770 = vmatpush1.msra.mxu0 %v3753
  %3771 = vmatprep.subr.mxu0 0.0
  %3772 = vmatpush1.msra.mxu0 %v3754
  %3773 = vmatprep.subr.mxu0 0.0
  %3774 = vmatpush1.msra.mxu0 %v3755
  %3775 = vmatprep.subr.mxu0 0.0
  %3776 = vmatpush1.msra.mxu0 %v3761
  %3777 = vmatprep.subr.mxu0 0.0
  %3778 = vmatpush1.msra.mxu0 0.0
  %3779 = vmatprep.subr.mxu0 0.0
  %3780 = vmatpush1.msra.mxu0 0.0
  %3781 = vmatprep.subr.mxu0 0.0
  %3782 = vmatpush1.msra.mxu0 0.0
  %3783 = vmatprep.subr.mxu0 0.0
  %3784 = vmatpush1.msra.mxu0 0.0
  %3785 = vmatprep.subr.mxu0 0.0
  %3786 = vmatpush1.msra.mxu0 0.0
  %3787 = vmatprep.subr.mxu0 0.0
  %3788 = vmatpush1.msra.mxu0 0.0
  %3789 = vmatprep.subr.mxu0 0.0
  %3790 = vmatpush1.msra.mxu0 0.0
  %3791 = vmatprep.subr.mxu0 0.0
  %3792 = vmatpush1.msra.mxu0 0.0
  %3793 = vmatprep.subr.mxu0 0.0
  %3794 = vmatpush1.msra.mxu0 0.0
  %3795 = vmatprep.subr.mxu0 0.0
  %3796 = vmatpush1.msra.mxu0 0.0
  %3797 = vmatprep.subr.mxu0 0.0
  %3798 = vmatpush1.msra.mxu0 0.0
  %3799 = vmatprep.subr.mxu0 0.0
  %3800 = vmatpush1.msra.mxu0 0.0
  %3801 = vmatprep.subr.mxu0 0.0
  %3802 = vmatpush1.msra.mxu0 0.0
  %3803 = vmatprep.subr.mxu0 0.0
  %3804 = vmatpush1.msra.mxu0 0.0
  %3805 = vmatprep.subr.mxu0 0.0
  %3806 = vmatpush1.msra.mxu0 0.0
  %3807 = vmatprep.subr.mxu0 0.0
  %3808 = vmatpush1.msra.mxu0 0.0
  %3809 = vmatprep.subr.mxu0 0.0
  %3810 = vmatpush1.msra.mxu0 0.0
  %3811 = vmatprep.subr.mxu0 0.0
  %3812 = vmatpush1.msra.mxu0 0.0
  %3813 = vmatprep.subr.mxu0 0.0
  %3814 = vmatpush1.msra.mxu0 0.0
  %3815 = vmatprep.subr.mxu0 0.0
  %3816 = vmatpush1.msra.mxu0 0.0
  %3817 = vmatprep.subr.mxu0 0.0
  %3818 = vmatpush1.msra.mxu0 0.0
  %3819 = vmatprep.subr.mxu0 0.0
  %3820 = vmatpush1.msra.mxu0 0.0
  %3821 = vmatprep.subr.mxu0 0.0
  %3822 = vmatpush1.msra.mxu0 0.0
  %3823 = vmatprep.subr.mxu0 0.0
  %3824 = vmatpush1.msra.mxu0 0.0
  %3825 = vmatprep.subr.mxu0 0.0
  %3826 = vmatpush1.msra.mxu0 0.0
  %3827 = vmatprep.mubr.f32.mxu0 0.0
  %3828 = vmatmul.mubr.f32.gmra.mrb[0].mxu0 %v3758
  %v3829 = vpop.f32.mrb[0].mxu0
  %v3830 = vadd.f32 0.0, %v3829
  %v3831 = vpop.f32.mrb[0].mxu0
  %3832 = vdwg.mxu0
  %v3833 = vadd.f32 %v3748, %v3830
  %v3834 = vld [vmem:[%s3470] sm:$0xf]
  %v3835 = vld [vmem:[%s10 + $0xc4] sm:$0xff]
  %v3836 = vld [vmem:[%s10 + $0xcc] sm:$0xff]
  %v3837 = vld [vmem:[%s10 + $0xd4] sm:$0xff]
  %v3838 = vld [vmem:[%s10 + $0xdc] sm:$0xff]
  %v3839 = vld [vmem:[%s10 + $0xe4] sm:$0xff]
  %v3840 = vld [vmem:[%s10 + $0xec] sm:$0xff]
  %v3841 = vld [vmem:[%s10 + $0xf4] sm:$0x1]
  %v3843 = vsel %vm3510, %v3834, 0
  %v3846 = vsel %vm3514, %v3841, 0
  %3848 = vmatprep.subr.mxu0 0.0
  %3849 = vmatpush1.msra.mxu0 %v3835
  %3850 = vmatprep.subr.mxu0 0.0
  %3851 = vmatpush1.msra.mxu0 %v3836
  %3852 = vmatprep.subr.mxu0 0.0
  %3853 = vmatpush1.msra.mxu0 %v3837
  %3854 = vmatprep.subr.mxu0 0.0
  %3855 = vmatpush1.msra.mxu0 %v3838
  %3856 = vmatprep.subr.mxu0 0.0
  %3857 = vmatpush1.msra.mxu0 %v3839
  %3858 = vmatprep.subr.mxu0 0.0
  %3859 = vmatpush1.msra.mxu0 %v3840
  %3860 = vmatprep.subr.mxu0 0.0
  %3861 = vmatpush1.msra.mxu0 %v3846
  %3862 = vmatprep.subr.mxu0 0.0
  %3863 = vmatpush1.msra.mxu0 0.0
  %3864 = vmatprep.subr.mxu0 0.0
  %3865 = vmatpush1.msra.mxu0 0.0
  %3866 = vmatprep.subr.mxu0 0.0
  %3867 = vmatpush1.msra.mxu0 0.0
  %3868 = vmatprep.subr.mxu0 0.0
  %3869 = vmatpush1.msra.mxu0 0.0
  %3870 = vmatprep.subr.mxu0 0.0
  %3871 = vmatpush1.msra.mxu0 0.0
  %3872 = vmatprep.subr.mxu0 0.0
  %3873 = vmatpush1.msra.mxu0 0.0
  %3874 = vmatprep.subr.mxu0 0.0
  %3875 = vmatpush1.msra.mxu0 0.0
  %3876 = vmatprep.subr.mxu0 0.0
  %3877 = vmatpush1.msra.mxu0 0.0
  %3878 = vmatprep.subr.mxu0 0.0
  %3879 = vmatpush1.msra.mxu0 0.0
  %3880 = vmatprep.subr.mxu0 0.0
  %3881 = vmatpush1.msra.mxu0 0.0
  %3882 = vmatprep.subr.mxu0 0.0
  %3883 = vmatpush1.msra.mxu0 0.0
  %3884 = vmatprep.subr.mxu0 0.0
  %3885 = vmatpush1.msra.mxu0 0.0
  %3886 = vmatprep.subr.mxu0 0.0
  %3887 = vmatpush1.msra.mxu0 0.0
  %3888 = vmatprep.subr.mxu0 0.0
  %3889 = vmatpush1.msra.mxu0 0.0
  %3890 = vmatprep.subr.mxu0 0.0
  %3891 = vmatpush1.msra.mxu0 0.0
  %3892 = vmatprep.subr.mxu0 0.0
  %3893 = vmatpush1.msra.mxu0 0.0
  %3894 = vmatprep.subr.mxu0 0.0
  %3895 = vmatpush1.msra.mxu0 0.0
  %3896 = vmatprep.subr.mxu0 0.0
  %3897 = vmatpush1.msra.mxu0 0.0
  %3898 = vmatprep.subr.mxu0 0.0
  %3899 = vmatpush1.msra.mxu0 0.0
  %3900 = vmatprep.subr.mxu0 0.0
  %3901 = vmatpush1.msra.mxu0 0.0
  %3902 = vmatprep.subr.mxu0 0.0
  %3903 = vmatpush1.msra.mxu0 0.0
  %3904 = vmatprep.subr.mxu0 0.0
  %3905 = vmatpush1.msra.mxu0 0.0
  %3906 = vmatprep.subr.mxu0 0.0
  %3907 = vmatpush1.msra.mxu0 0.0
  %3908 = vmatprep.subr.mxu0 0.0
  %3909 = vmatpush1.msra.mxu0 0.0
  %3910 = vmatprep.subr.mxu0 0.0
  %3911 = vmatpush1.msra.mxu0 0.0
  %3912 = vmatprep.mubr.f32.mxu0 0.0
  %3913 = vmatmul.mubr.f32.gmra.mrb[0].mxu0 %v3843
  %v3914 = vpop.f32.mrb[0].mxu0
  %v3915 = vadd.f32 0.0, %v3914
  %v3916 = vpop.f32.mrb[0].mxu0
  %3917 = vdwg.mxu0
  %v3918 = vadd.f32 %v3833, %v3915
  %v3919 = vld [vmem:[%s3476] sm:$0xf]
  %v3920 = vld [vmem:[%s10 + $0xf5] sm:$0xff]
  %v3921 = vld [vmem:[%s10 + $0xfd] sm:$0xff]
  %v3922 = vld [vmem:[%s10 + $0x105] sm:$0xff]
  %v3923 = vld [vmem:[%s10 + $0x10d] sm:$0xff]
  %v3924 = vld [vmem:[%s10 + $0x115] sm:$0xff]
  %v3925 = vld [vmem:[%s10 + $0x11d] sm:$0xff]
  %v3926 = vld [vmem:[%s10 + $0x125] sm:$0x1]
  %v3928 = vsel %vm3510, %v3919, 0
  %v3931 = vsel %vm3514, %v3926, 0
  %3933 = vmatprep.subr.mxu0 0.0
  %3934 = vmatpush1.msra.mxu0 %v3920
  %3935 = vmatprep.subr.mxu0 0.0
  %3936 = vmatpush1.msra.mxu0 %v3921
  %3937 = vmatprep.subr.mxu0 0.0
  %3938 = vmatpush1.msra.mxu0 %v3922
  %3939 = vmatprep.subr.mxu0 0.0
  %3940 = vmatpush1.msra.mxu0 %v3923
  %3941 = vmatprep.subr.mxu0 0.0
  %3942 = vmatpush1.msra.mxu0 %v3924
  %3943 = vmatprep.subr.mxu0 0.0
  %3944 = vmatpush1.msra.mxu0 %v3925
  %3945 = vmatprep.subr.mxu0 0.0
  %3946 = vmatpush1.msra.mxu0 %v3931
  %3947 = vmatprep.subr.mxu0 0.0
  %3948 = vmatpush1.msra.mxu0 0.0
  %3949 = vmatprep.subr.mxu0 0.0
  %3950 = vmatpush1.msra.mxu0 0.0
  %3951 = vmatprep.subr.mxu0 0.0
  %3952 = vmatpush1.msra.mxu0 0.0
  %3953 = vmatprep.subr.mxu0 0.0
  %3954 = vmatpush1.msra.mxu0 0.0
  %3955 = vmatprep.subr.mxu0 0.0
  %3956 = vmatpush1.msra.mxu0 0.0
  %3957 = vmatprep.subr.mxu0 0.0
  %3958 = vmatpush1.msra.mxu0 0.0
  %3959 = vmatprep.subr.mxu0 0.0
  %3960 = vmatpush1.msra.mxu0 0.0
  %3961 = vmatprep.subr.mxu0 0.0
  %3962 = vmatpush1.msra.mxu0 0.0
  %3963 = vmatprep.subr.mxu0 0.0
  %3964 = vmatpush1.msra.mxu0 0.0
  %3965 = vmatprep.subr.mxu0 0.0
  %3966 = vmatpush1.msra.mxu0 0.0
  %3967 = vmatprep.subr.mxu0 0.0
  %3968 = vmatpush1.msra.mxu0 0.0
  %3969 = vmatprep.subr.mxu0 0.0
  %3970 = vmatpush1.msra.mxu0 0.0
  %3971 = vmatprep.subr.mxu0 0.0
  %3972 = vmatpush1.msra.mxu0 0.0
  %3973 = vmatprep.subr.mxu0 0.0
  %3974 = vmatpush1.msra.mxu0 0.0
  %3975 = vmatprep.subr.mxu0 0.0
  %3976 = vmatpush1.msra.mxu0 0.0
  %3977 = vmatprep.subr.mxu0 0.0
  %3978 = vmatpush1.msra.mxu0 0.0
  %3979 = vmatprep.subr.mxu0 0.0
  %3980 = vmatpush1.msra.mxu0 0.0
  %3981 = vmatprep.subr.mxu0 0.0
  %3982 = vmatpush1.msra.mxu0 0.0
  %3983 = vmatprep.subr.mxu0 0.0
  %3984 = vmatpush1.msra.mxu0 0.0
  %3985 = vmatprep.subr.mxu0 0.0
  %3986 = vmatpush1.msra.mxu0 0.0
  %3987 = vmatprep.subr.mxu0 0.0
  %3988 = vmatpush1.msra.mxu0 0.0
  %3989 = vmatprep.subr.mxu0 0.0
  %3990 = vmatpush1.msra.mxu0 0.0
  %3991 = vmatprep.subr.mxu0 0.0
  %3992 = vmatpush1.msra.mxu0 0.0
  %3993 = vmatprep.subr.mxu0 0.0
  %3994 = vmatpush1.msra.mxu0 0.0
  %3995 = vmatprep.subr.mxu0 0.0
  %3996 = vmatpush1.msra.mxu0 0.0
  %3997 = vmatprep.mubr.f32.mxu0 0.0
  %3998 = vmatmul.mubr.f32.gmra.mrb[0].mxu0 %v3928
  %v3999 = vpop.f32.mrb[0].mxu0
  %v4000 = vadd.f32 0.0, %v3999
  %v4001 = vpop.f32.mrb[0].mxu0
  %4002 = vdwg.mxu0
  %v4003 = vadd.f32 %v3918, %v4000
  %v4004 = vld [vmem:[%s3482] sm:$0xf]
  %v4005 = vld [vmem:[%s10 + $0x126] sm:$0xff]
  %v4006 = vld [vmem:[%s10 + $0x12e] sm:$0xff]
  %v4007 = vld [vmem:[%s10 + $0x136] sm:$0xff]
  %v4008 = vld [vmem:[%s10 + $0x13e] sm:$0xff]
  %v4009 = vld [vmem:[%s10 + $0x146] sm:$0xff]
  %v4010 = vld [vmem:[%s10 + $0x14e] sm:$0xff]
  %v4011 = vld [vmem:[%s10 + $0x156] sm:$0x1]
  %v4013 = vsel %vm3510, %v4004, 0
  %v4016 = vsel %vm3514, %v4011, 0
  %4018 = vmatprep.subr.mxu0 0.0
  %4019 = vmatpush1.msra.mxu0 %v4005
  %4020 = vmatprep.subr.mxu0 0.0
  %4021 = vmatpush1.msra.mxu0 %v4006
  %4022 = vmatprep.subr.mxu0 0.0
  %4023 = vmatpush1.msra.mxu0 %v4007
  %4024 = vmatprep.subr.mxu0 0.0
  %4025 = vmatpush1.msra.mxu0 %v4008
  %4026 = vmatprep.subr.mxu0 0.0
  %4027 = vmatpush1.msra.mxu0 %v4009
  %4028 = vmatprep.subr.mxu0 0.0
  %4029 = vmatpush1.msra.mxu0 %v4010
  %4030 = vmatprep.subr.mxu0 0.0
  %4031 = vmatpush1.msra.mxu0 %v4016
  %4032 = vmatprep.subr.mxu0 0.0
  %4033 = vmatpush1.msra.mxu0 0.0
  %4034 = vmatprep.subr.mxu0 0.0
  %4035 = vmatpush1.msra.mxu0 0.0
  %4036 = vmatprep.subr.mxu0 0.0
  %4037 = vmatpush1.msra.mxu0 0.0
  %4038 = vmatprep.subr.mxu0 0.0
  %4039 = vmatpush1.msra.mxu0 0.0
  %4040 = vmatprep.subr.mxu0 0.0
  %4041 = vmatpush1.msra.mxu0 0.0
  %4042 = vmatprep.subr.mxu0 0.0
  %4043 = vmatpush1.msra.mxu0 0.0
  %4044 = vmatprep.subr.mxu0 0.0
  %4045 = vmatpush1.msra.mxu0 0.0
  %4046 = vmatprep.subr.mxu0 0.0
  %4047 = vmatpush1.msra.mxu0 0.0
  %4048 = vmatprep.subr.mxu0 0.0
  %4049 = vmatpush1.msra.mxu0 0.0
  %4050 = vmatprep.subr.mxu0 0.0
  %4051 = vmatpush1.msra.mxu0 0.0
  %4052 = vmatprep.subr.mxu0 0.0
  %4053 = vmatpush1.msra.mxu0 0.0
  %4054 = vmatprep.subr.mxu0 0.0
  %4055 = vmatpush1.msra.mxu0 0.0
  %4056 = vmatprep.subr.mxu0 0.0
  %4057 = vmatpush1.msra.mxu0 0.0
  %4058 = vmatprep.subr.mxu0 0.0
  %4059 = vmatpush1.msra.mxu0 0.0
  %4060 = vmatprep.subr.mxu0 0.0
  %4061 = vmatpush1.msra.mxu0 0.0
  %4062 = vmatprep.subr.mxu0 0.0
  %4063 = vmatpush1.msra.mxu0 0.0
  %4064 = vmatprep.subr.mxu0 0.0
  %4065 = vmatpush1.msra.mxu0 0.0
  %4066 = vmatprep.subr.mxu0 0.0
  %4067 = vmatpush1.msra.mxu0 0.0
  %4068 = vmatprep.subr.mxu0 0.0
  %4069 = vmatpush1.msra.mxu0 0.0
  %4070 = vmatprep.subr.mxu0 0.0
  %4071 = vmatpush1.msra.mxu0 0.0
  %4072 = vmatprep.subr.mxu0 0.0
  %4073 = vmatpush1.msra.mxu0 0.0
  %4074 = vmatprep.subr.mxu0 0.0
  %4075 = vmatpush1.msra.mxu0 0.0
  %4076 = vmatprep.subr.mxu0 0.0
  %4077 = vmatpush1.msra.mxu0 0.0
  %4078 = vmatprep.subr.mxu0 0.0
  %4079 = vmatpush1.msra.mxu0 0.0
  %4080 = vmatprep.subr.mxu0 0.0
  %4081 = vmatpush1.msra.mxu0 0.0
  %4082 = vmatprep.mubr.f32.mxu0 0.0
  %4083 = vmatmul.mubr.f32.gmra.mrb[0].mxu0 %v4013
  %v4084 = vpop.f32.mrb[0].mxu0
  %v4085 = vadd.f32 0.0, %v4084
  %v4086 = vpop.f32.mrb[0].mxu0
  %4087 = vdwg.mxu0
  %v4088 = vadd.f32 %v4003, %v4085
  %v4089 = vld [vmem:[%s3488] sm:$0xf]
  %v4090 = vld [vmem:[%s10 + $0x157] sm:$0xff]
  %v4091 = vld [vmem:[%s10 + $0x15f] sm:$0xff]
  %v4092 = vld [vmem:[%s10 + $0x167] sm:$0xff]
  %v4093 = vld [vmem:[%s10 + $0x16f] sm:$0xff]
  %v4094 = vld [vmem:[%s10 + $0x177] sm:$0xff]
  %v4095 = vld [vmem:[%s10 + $0x17f] sm:$0xff]
  %v4096 = vld [vmem:[%s10 + $0x187] sm:$0x1]
  %v4098 = vsel %vm3510, %v4089, 0
  %v4101 = vsel %vm3514, %v4096, 0
  %4103 = vmatprep.subr.mxu0 0.0
  %4104 = vmatpush1.msra.mxu0 %v4090
  %4105 = vmatprep.subr.mxu0 0.0
  %4106 = vmatpush1.msra.mxu0 %v4091
  %4107 = vmatprep.subr.mxu0 0.0
  %4108 = vmatpush1.msra.mxu0 %v4092
  %4109 = vmatprep.subr.mxu0 0.0
  %4110 = vmatpush1.msra.mxu0 %v4093
  %4111 = vmatprep.subr.mxu0 0.0
  %4112 = vmatpush1.msra.mxu0 %v4094
  %4113 = vmatprep.subr.mxu0 0.0
  %4114 = vmatpush1.msra.mxu0 %v4095
  %4115 = vmatprep.subr.mxu0 0.0
  %4116 = vmatpush1.msra.mxu0 %v4101
  %4117 = vmatprep.subr.mxu0 0.0
  %4118 = vmatpush1.msra.mxu0 0.0
  %4119 = vmatprep.subr.mxu0 0.0
  %4120 = vmatpush1.msra.mxu0 0.0
  %4121 = vmatprep.subr.mxu0 0.0
  %4122 = vmatpush1.msra.mxu0 0.0
  %4123 = vmatprep.subr.mxu0 0.0
  %4124 = vmatpush1.msra.mxu0 0.0
  %4125 = vmatprep.subr.mxu0 0.0
  %4126 = vmatpush1.msra.mxu0 0.0
  %4127 = vmatprep.subr.mxu0 0.0
  %4128 = vmatpush1.msra.mxu0 0.0
  %4129 = vmatprep.subr.mxu0 0.0
  %4130 = vmatpush1.msra.mxu0 0.0
  %4131 = vmatprep.subr.mxu0 0.0
  %4132 = vmatpush1.msra.mxu0 0.0
  %4133 = vmatprep.subr.mxu0 0.0
  %4134 = vmatpush1.msra.mxu0 0.0
  %4135 = vmatprep.subr.mxu0 0.0
  %4136 = vmatpush1.msra.mxu0 0.0
  %4137 = vmatprep.subr.mxu0 0.0
  %4138 = vmatpush1.msra.mxu0 0.0
  %4139 = vmatprep.subr.mxu0 0.0
  %4140 = vmatpush1.msra.mxu0 0.0
  %4141 = vmatprep.subr.mxu0 0.0
  %4142 = vmatpush1.msra.mxu0 0.0
  %4143 = vmatprep.subr.mxu0 0.0
  %4144 = vmatpush1.msra.mxu0 0.0
  %4145 = vmatprep.subr.mxu0 0.0
  %4146 = vmatpush1.msra.mxu0 0.0
  %4147 = vmatprep.subr.mxu0 0.0
  %4148 = vmatpush1.msra.mxu0 0.0
  %4149 = vmatprep.subr.mxu0 0.0
  %4150 = vmatpush1.msra.mxu0 0.0
  %4151 = vmatprep.subr.mxu0 0.0
  %4152 = vmatpush1.msra.mxu0 0.0
  %4153 = vmatprep.subr.mxu0 0.0
  %4154 = vmatpush1.msra.mxu0 0.0
  %4155 = vmatprep.subr.mxu0 0.0
  %4156 = vmatpush1.msra.mxu0 0.0
  %4157 = vmatprep.subr.mxu0 0.0
  %4158 = vmatpush1.msra.mxu0 0.0
  %4159 = vmatprep.subr.mxu0 0.0
  %4160 = vmatpush1.msra.mxu0 0.0
  %4161 = vmatprep.subr.mxu0 0.0
  %4162 = vmatpush1.msra.mxu0 0.0
  %4163 = vmatprep.subr.mxu0 0.0
  %4164 = vmatpush1.msra.mxu0 0.0
  %4165 = vmatprep.subr.mxu0 0.0
  %4166 = vmatpush1.msra.mxu0 0.0
  %4167 = vmatprep.mubr.f32.mxu0 0.0
  %4168 = vmatmul.mubr.f32.gmra.mrb[0].mxu0 %v4098
  %v4169 = vpop.f32.mrb[0].mxu0
  %v4170 = vadd.f32 0.0, %v4169
  %v4171 = vpop.f32.mrb[0].mxu0
  %4172 = vdwg.mxu0
  %v4173 = vadd.f32 %v4088, %v4170
  %v4174 = vld [vmem:[%s11] sm:$0x1]
  %v4176 = vlaneseq
  %v4177 = vshrl.u32 %v4176, 7
  %v4178 = vsub.s32 0, %v4177
  %v4179 = vrot.slane %v4174, %v4178
  %v4181 = vadd.f32 %v4173, %v4179
  %v4182 = vmax.f32 %v4181, 0.0
  %v4183 = vld [vmem:[%s12] sm:$0xff]
  %v4184 = vld [vmem:[%s12 + $0x8] sm:$0xff]
  %v4185 = vld [vmem:[%s12 + $0x10] sm:$0xff]
  %v4186 = vld [vmem:[%s12 + $0x18] sm:$0xff]
  %v4187 = vld [vmem:[%s12 + $0x20] sm:$0xff]
  %v4188 = vld [vmem:[%s12 + $0x28] sm:$0xff]
  %v4189 = vld [vmem:[%s12 + $0x30] sm:$0xff]
  %v4190 = vld [vmem:[%s12 + $0x38] sm:$0xff]
  %v4191 = vld [vmem:[%s13] sm:$0x1]
  %v4193 = vlaneseq
  %v4194 = vshrl.u32 %v4193, 7
  %v4195 = vsub.s32 0, %v4194
  %v4196 = vrot.slane %v4191, %v4195
  %vm4198 = vcmask 523264
  %v4200 = vsel %vm4198, %v4182, 0
  %4202 = vmatprep.subr.mxu0 0.0
  %4203 = vmatpush1.msra.mxu0 %v4183
  %4204 = vmatprep.subr.mxu0 0.0
  %4205 = vmatpush1.msra.mxu0 %v4184
  %4206 = vmatprep.subr.mxu0 0.0
  %4207 = vmatpush1.msra.mxu0 %v4185
  %4208 = vmatprep.subr.mxu0 0.0
  %4209 = vmatpush1.msra.mxu0 %v4186
  %4210 = vmatprep.subr.mxu0 0.0
  %4211 = vmatpush1.msra.mxu0 %v4187
  %4212 = vmatprep.subr.mxu0 0.0
  %4213 = vmatpush1.msra.mxu0 %v4188
  %4214 = vmatprep.subr.mxu0 0.0
  %4215 = vmatpush1.msra.mxu0 %v4189
  %4216 = vmatprep.subr.mxu0 0.0
  %4217 = vmatpush1.msra.mxu0 %v4190
  %4218 = vmatprep.subr.mxu0 0.0
  %4219 = vmatpush1.msra.mxu0 0.0
  %4220 = vmatprep.subr.mxu0 0.0
  %4221 = vmatpush1.msra.mxu0 0.0
  %4222 = vmatprep.subr.mxu0 0.0
  %4223 = vmatpush1.msra.mxu0 0.0
  %4224 = vmatprep.subr.mxu0 0.0
  %4225 = vmatpush1.msra.mxu0 0.0
  %4226 = vmatprep.subr.mxu0 0.0
  %4227 = vmatpush1.msra.mxu0 0.0
  %4228 = vmatprep.subr.mxu0 0.0
  %4229 = vmatpush1.msra.mxu0 0.0
  %4230 = vmatprep.subr.mxu0 0.0
  %4231 = vmatpush1.msra.mxu0 0.0
  %4232 = vmatprep.subr.mxu0 0.0
  %4233 = vmatpush1.msra.mxu0 0.0
  %4234 = vmatprep.subr.mxu0 0.0
  %4235 = vmatpush1.msra.mxu0 0.0
  %4236 = vmatprep.subr.mxu0 0.0
  %4237 = vmatpush1.msra.mxu0 0.0
  %4238 = vmatprep.subr.mxu0 0.0
  %4239 = vmatpush1.msra.mxu0 0.0
  %4240 = vmatprep.subr.mxu0 0.0
  %4241 = vmatpush1.msra.mxu0 0.0
  %4242 = vmatprep.subr.mxu0 0.0
  %4243 = vmatpush1.msra.mxu0 0.0
  %4244 = vmatprep.subr.mxu0 0.0
  %4245 = vmatpush1.msra.mxu0 0.0
  %4246 = vmatprep.subr.mxu0 0.0
  %4247 = vmatpush1.msra.mxu0 0.0
  %4248 = vmatprep.subr.mxu0 0.0
  %4249 = vmatpush1.msra.mxu0 0.0
  %4250 = vmatprep.subr.mxu0 0.0
  %4251 = vmatpush1.msra.mxu0 0.0
  %4252 = vmatprep.subr.mxu0 0.0
  %4253 = vmatpush1.msra.mxu0 0.0
  %4254 = vmatprep.subr.mxu0 0.0
  %4255 = vmatpush1.msra.mxu0 0.0
  %4256 = vmatprep.subr.mxu0 0.0
  %4257 = vmatpush1.msra.mxu0 0.0
  %4258 = vmatprep.subr.mxu0 0.0
  %4259 = vmatpush1.msra.mxu0 0.0
  %4260 = vmatprep.subr.mxu0 0.0
  %4261 = vmatpush1.msra.mxu0 0.0
  %4262 = vmatprep.subr.mxu0 0.0
  %4263 = vmatpush1.msra.mxu0 0.0
  %4264 = vmatprep.subr.mxu0 0.0
  %4265 = vmatpush1.msra.mxu0 0.0
  %4266 = vmatprep.mubr.f32.mxu0 0.0
  %4267 = vmatmul.mubr.f32.gmra.mrb[0].mxu0 %v4200
  %v4268 = vpop.f32.mrb[0].mxu0
  %v4269 = vadd.f32 %v4196, %v4268
  %v4270 = vpop.f32.mrb[0].mxu0
  %4271 = vdwg.mxu0
  %v4272 = vld [vmem:[%s14] sm:$0xff]
  %v4273 = vld [vmem:[%s14 + $0x8] sm:$0xff]
  %v4274 = vld [vmem:[%s14 + $0x10] sm:$0xff]
  %v4275 = vld [vmem:[%s14 + $0x18] sm:$0xff]
  %v4276 = vld [vmem:[%s14 + $0x20] sm:$0xff]
  %v4277 = vld [vmem:[%s14 + $0x28] sm:$0xff]
  %v4278 = vld [vmem:[%s14 + $0x30] sm:$0xff]
  %v4279 = vld [vmem:[%s14 + $0x38] sm:$0xff]
  %v4280 = vld [vmem:[%s14 + $0x40] sm:$0xff]
  %v4281 = vld [vmem:[%s14 + $0x48] sm:$0xff]
  %v4282 = vld [vmem:[%s14 + $0x50] sm:$0xff]
  %v4283 = vld [vmem:[%s14 + $0x58] sm:$0xff]
  %v4284 = vld [vmem:[%s14 + $0x60] sm:$0xff]
  %v4285 = vld [vmem:[%s14 + $0x68] sm:$0xff]
  %v4286 = vld [vmem:[%s14 + $0x70] sm:$0xff]
  %v4287 = vld [vmem:[%s14 + $0x78] sm:$0xff]
  %v4288 = vld [vmem:[%s15] sm:$0x1]
  %v4290 = vlaneseq
  %v4291 = vshrl.u32 %v4290, 7
  %v4292 = vsub.s32 0, %v4291
  %v4293 = vrot.slane %v4288, %v4292
  %4295 = vmatprep.subr.mxu0 0.0
  %4296 = vmatpush1.msra.mxu0 %v4272
  %4297 = vmatprep.subr.mxu0 0.0
  %4298 = vmatpush1.msra.mxu0 %v4273
  %4299 = vmatprep.subr.mxu0 0.0
  %4300 = vmatpush1.msra.mxu0 %v4274
  %4301 = vmatprep.subr.mxu0 0.0
  %4302 = vmatpush1.msra.mxu0 %v4275
  %4303 = vmatprep.subr.mxu0 0.0
  %4304 = vmatpush1.msra.mxu0 %v4276
  %4305 = vmatprep.subr.mxu0 0.0
  %4306 = vmatpush1.msra.mxu0 %v4277
  %4307 = vmatprep.subr.mxu0 0.0
  %4308 = vmatpush1.msra.mxu0 %v4278
  %4309 = vmatprep.subr.mxu0 0.0
  %4310 = vmatpush1.msra.mxu0 %v4279
  %4311 = vmatprep.subr.mxu0 0.0
  %4312 = vmatpush1.msra.mxu0 %v4280
  %4313 = vmatprep.subr.mxu0 0.0
  %4314 = vmatpush1.msra.mxu0 %v4281
  %4315 = vmatprep.subr.mxu0 0.0
  %4316 = vmatpush1.msra.mxu0 %v4282
  %4317 = vmatprep.subr.mxu0 0.0
  %4318 = vmatpush1.msra.mxu0 %v4283
  %4319 = vmatprep.subr.mxu0 0.0
  %4320 = vmatpush1.msra.mxu0 %v4284
  %4321 = vmatprep.subr.mxu0 0.0
  %4322 = vmatpush1.msra.mxu0 %v4285
  %4323 = vmatprep.subr.mxu0 0.0
  %4324 = vmatpush1.msra.mxu0 %v4286
  %4325 = vmatprep.subr.mxu0 0.0
  %4326 = vmatpush1.msra.mxu0 %v4287
  %4327 = vmatprep.subr.mxu0 0.0
  %4328 = vmatpush1.msra.mxu0 0.0
  %4329 = vmatprep.subr.mxu0 0.0
  %4330 = vmatpush1.msra.mxu0 0.0
  %4331 = vmatprep.subr.mxu0 0.0
  %4332 = vmatpush1.msra.mxu0 0.0
  %4333 = vmatprep.subr.mxu0 0.0
  %4334 = vmatpush1.msra.mxu0 0.0
  %4335 = vmatprep.subr.mxu0 0.0
  %4336 = vmatpush1.msra.mxu0 0.0
  %4337 = vmatprep.subr.mxu0 0.0
  %4338 = vmatpush1.msra.mxu0 0.0
  %4339 = vmatprep.subr.mxu0 0.0
  %4340 = vmatpush1.msra.mxu0 0.0
  %4341 = vmatprep.subr.mxu0 0.0
  %4342 = vmatpush1.msra.mxu0 0.0
  %4343 = vmatprep.subr.mxu0 0.0
  %4344 = vmatpush1.msra.mxu0 0.0
  %4345 = vmatprep.subr.mxu0 0.0
  %4346 = vmatpush1.msra.mxu0 0.0
  %4347 = vmatprep.subr.mxu0 0.0
  %4348 = vmatpush1.msra.mxu0 0.0
  %4349 = vmatprep.subr.mxu0 0.0
  %4350 = vmatpush1.msra.mxu0 0.0
  %4351 = vmatprep.subr.mxu0 0.0
  %4352 = vmatpush1.msra.mxu0 0.0
  %4353 = vmatprep.subr.mxu0 0.0
  %4354 = vmatpush1.msra.mxu0 0.0
  %4355 = vmatprep.subr.mxu0 0.0
  %4356 = vmatpush1.msra.mxu0 0.0
  %4357 = vmatprep.subr.mxu0 0.0
  %4358 = vmatpush1.msra.mxu0 0.0
  %4359 = vmatprep.mubr.f32.mxu0 0.0
  %4360 = vmatmul.mubr.f32.gmra.mrb[0].mxu0 %v4269
  %v4361 = vpop.f32.mrb[0].mxu0
  %v4362 = vadd.f32 %v4293, %v4361
  %v4363 = vpop.f32.mrb[0].mxu0
  %4364 = vdwg.mxu0
  %v4365 = vadd.f32 %v4269, %v4362
  %4366 = vst [vmem:[%s16] sm:$0xf] %v4365
  // Predicated region
  $region66: #{multipos3d_track_head_forward.1} parent=0 // pred_check
    _
  $region67: #{multipos3d_track_head_forward.1} parent=0 // pred_check_branch
    %4368 = sbr.rel (0) target = $region69
  $region68: #{multipos3d_track_head_forward.1} parent=0 // pred_region
    _
  $region69: #{multipos3d_track_head_forward.1} parent=0 // pred_fallthru
    _
  // Predicated region
  $region70: #{multipos3d_track_head_forward.1} parent=0 // pred_check
    _
  $region71: #{multipos3d_track_head_forward.1} parent=0 // pred_check_branch
    %4370 = sbr.rel (0) target = $region73
  $region72: #{multipos3d_track_head_forward.1} parent=0 // pred_region
    _
  $region73: #{multipos3d_track_head_forward.1} parent=0 // pred_fallthru
    _

</llo_original>
